<compile_context>
chip_gen: v7x
topology: tpu7x:2x2x1
jax: 0.10.0
libtpu: 0.0.40
codegen_flags: <defaults>
</compile_context>

<pallas_src>
import jax
import jax.numpy as jnp
from jax.experimental import pallas as pl
from jax.experimental.pallas import tpu as pltpu

VOCAB = 50
D_MODEL = 32
N_HEADS = 4
D_HEAD = D_MODEL // N_HEADS
D_FF = 64
N_LAYERS = 2
MAX_SEQ = 16
LN_EPS = 1e-5
INIT_RANGE = 0.02

# packed weight-slab column layout: [ Wqkv (3D) | Wo (D) | W1 (D_FF) ]
_WQKV_OFF = 0
_WO_OFF = 3 * D_MODEL
_W1_OFF = 4 * D_MODEL
_W_COLS = 4 * D_MODEL + D_FF
_V_COLS = 3 * D_MODEL  # vector slab lane width (bqkv is the widest row)


def _layernorm(h, w, b):
    mu = jnp.mean(h, axis=-1, keepdims=True)
    var = jnp.mean(jnp.square(h - mu), axis=-1, keepdims=True)
    return (h - mu) * jax.lax.rsqrt(var + LN_EPS) * w + b


def encoder_stack_kernel(x_ref, w_ref, w2_ref, v_ref, out_ref):
    """Full encoder stack for one batch block.

    x_ref / out_ref : (Bb, S, D) VMEM tiles.
    w_ref           : (L, D, 3D + D + D_FF)  -- Wqkv | Wo | W1 per layer.
    w2_ref          : (L, D_FF, D)
    v_ref           : (L, 8, 3D) rows = bqkv, bo, ln1w, ln1b, ln2w, ln2b, b1, b2
                      (each zero-padded on the lane axis to 3D).
    """
    Bb, S, D = x_ref.shape
    x = x_ref[...].astype(jnp.float32)  # stays resident in VMEM across layers

    for l in range(N_LAYERS):  # static unroll over layers (N_LAYERS=2)
        w_row = w_ref[l]                                   # (D, 192)
        wqkv = w_row[:, _WQKV_OFF:_WO_OFF]                 # (D, 3D), scale folded in
        wo = w_row[:, _WO_OFF:_W1_OFF]                     # (D, D)
        w1 = w_row[:, _W1_OFF:]                            # (D, D_FF)
        w2 = w2_ref[l]                                     # (D_FF, D)

        vecs = v_ref[l]                                    # (8, 3D)
        bqkv = vecs[0:1, :]                                # (1, 3D), scale folded into bq
        bo = vecs[1:2, :D_MODEL]
        ln1w = vecs[2:3, :D_MODEL]
        ln1b = vecs[3:4, :D_MODEL]
        ln2w = vecs[4:5, :D_MODEL]
        ln2b = vecs[5:6, :D_MODEL]
        b1 = vecs[6:7, :D_FF]
        b2 = vecs[7:8, :D_MODEL]

        # ---- self-attention block (pre-norm) --------------------------------
        xn = _layernorm(x, ln1w, ln1b)                     # (Bb, S, D)
        xn2 = xn.reshape(Bb * S, D_MODEL)
        qkv = jnp.dot(xn2, wqkv, preferred_element_type=jnp.float32) + bqkv  # (Bb*S, 3D)

        sa = jnp.zeros((Bb * S, D_MODEL), jnp.float32)
        for h in range(N_HEADS):                           # static unroll over heads
            off = h * D_HEAD
            qh = qkv[:, off:off + D_HEAD].reshape(Bb, S, D_HEAD)
            kh = qkv[:, D_MODEL + off:D_MODEL + off + D_HEAD].reshape(Bb, S, D_HEAD)
            vh = qkv[:, 2 * D_MODEL + off:2 * D_MODEL + off + D_HEAD].reshape(Bb, S, D_HEAD)

            # scores (scale already folded into Wq/bq), batched over the batch axis
            s = jnp.einsum('bqd,bkd->bqk', qh, kh,
                           preferred_element_type=jnp.float32)        # (Bb, S, S)
            m = jnp.max(s, axis=-1, keepdims=True)
            p = jnp.exp(s - m)
            p = p * pl.reciprocal(jnp.sum(p, axis=-1, keepdims=True), approx=True)
            ctx = jnp.einsum('bqk,bkd->bqd', p, vh,
                             preferred_element_type=jnp.float32)      # (Bb, S, Dh)

            # fold the head-concat into the output projection: Wo row-slice
            # (sublane slice) instead of a lane concatenate.
            sa += jnp.dot(ctx.reshape(Bb * S, D_HEAD), wo[off:off + D_HEAD, :],
                          preferred_element_type=jnp.float32)

        x = x + (sa + bo).reshape(Bb, S, D_MODEL)          # residual (dropout p=0)

        # ---- feed-forward block (pre-norm) -----------------------------------
        xn = _layernorm(x, ln2w, ln2b)
        h1 = jnp.dot(xn.reshape(Bb * S, D_MODEL), w1,
                     preferred_element_type=jnp.float32) + b1
        h1 = jax.nn.gelu(h1, approximate=True)  # TODO(synk): exact erf GELU if config.activation demands it
        ff = jnp.dot(h1, w2, preferred_element_type=jnp.float32) + b2
        x = x + ff.reshape(Bb, S, D_MODEL)

    out_ref[...] = x.astype(out_ref.dtype)


def _num_batch_blocks(B):
    """1 block on single-TC chips (v5e/v6e); >=2 on v7x so both TCs get work."""
    kind = ""
    try:
        kind = jax.devices()[0].device_kind.lower()
    except Exception:
        pass
    n = 2 if ("v7" in kind or "7x" in kind) else 1
    while n > 1 and B % n != 0:
        n -= 1
    return max(1, min(n, B))


def encoder_stack(x, w_slab, w2_slab, v_slab):
    """Run the whole encoder stack in a single pallas_call."""
    B, S, D = x.shape
    nb = _num_batch_blocks(B)
    bb = B // nb

    return pl.pallas_call(
        encoder_stack_kernel,
        out_shape=jax.ShapeDtypeStruct((B, S, D), x.dtype),
        grid=(nb,),
        in_specs=[
            pl.BlockSpec((bb, S, D), lambda i: (i, 0, 0)),
            pl.BlockSpec(w_slab.shape, lambda i: (0, 0, 0)),
            pl.BlockSpec(w2_slab.shape, lambda i: (0, 0, 0)),
            pl.BlockSpec(v_slab.shape, lambda i: (0, 0, 0)),
        ],
        out_specs=pl.BlockSpec((bb, S, D), lambda i: (i, 0, 0)),
        compiler_params=pltpu.CompilerParams(
            dimension_semantics=("parallel",)),
    )(x, w_slab, w2_slab, v_slab)


def init_params(key):
    """Deterministic init matching Encoder._init_weights semantics.

    Weights are stored [in, out] (the kernel computes x @ W + b); PyTorch
    nn.Linear weights ([out, in]) must be transposed when ported.
    """
    n_linear = 6 * N_LAYERS  # wq, wk, wv, wo, w1, w2 per layer
    keys = jax.random.split(key, 2 + n_linear)
    ki = iter(keys)

    def normal(k, shape):
        return (INIT_RANGE * jax.random.normal(k, shape)).astype(jnp.float32)

    params = {
        "tok_emb": normal(next(ki), (VOCAB, D_MODEL)),
        "pos_emb": normal(next(ki), (MAX_SEQ, D_MODEL)),
        "layers": [],
    }
    for _ in range(N_LAYERS):
        layer = {
            "wq": normal(next(ki), (D_MODEL, D_MODEL)),
            "bq": jnp.zeros((D_MODEL,), jnp.float32),
            "wk": normal(next(ki), (D_MODEL, D_MODEL)),
            "bk": jnp.zeros((D_MODEL,), jnp.float32),
            "wv": normal(next(ki), (D_MODEL, D_MODEL)),
            "bv": jnp.zeros((D_MODEL,), jnp.float32),
            "wo": normal(next(ki), (D_MODEL, D_MODEL)),
            "bo": jnp.zeros((D_MODEL,), jnp.float32),
            "ln1w": jnp.ones((D_MODEL,), jnp.float32),
            "ln1b": jnp.zeros((D_MODEL,), jnp.float32),
            "ln2w": jnp.ones((D_MODEL,), jnp.float32),
            "ln2b": jnp.zeros((D_MODEL,), jnp.float32),
            "w1": normal(next(ki), (D_MODEL, D_FF)),
            "b1": jnp.zeros((D_FF,), jnp.float32),
            "w2": normal(next(ki), (D_FF, D_MODEL)),
            "b2": jnp.zeros((D_MODEL,), jnp.float32),
        }
        params["layers"].append(layer)
    return params


def pack_layer_params(layers):
    """Pack per-layer params into 3 slabs; fold 1/sqrt(d_head) into Wq/bq."""
    scale = 1.0 / (D_HEAD ** 0.5)
    w_rows, w2s, v_rows = [], [], []

    def pad(v):
        return jnp.pad(v, (0, _V_COLS - v.shape[0]))

    for lp in layers:
        wqkv = jnp.concatenate([lp["wq"] * scale, lp["wk"], lp["wv"]], axis=1)   # (D, 3D)
        w_rows.append(jnp.concatenate([wqkv, lp["wo"], lp["w1"]], axis=1))       # (D, 192)
        w2s.append(lp["w2"])                                                     # (D_FF, D)
        bqkv = jnp.concatenate([lp["bq"] * scale, lp["bk"], lp["bv"]])           # (3D,)
        v_rows.append(jnp.stack([
            bqkv, pad(lp["bo"]), pad(lp["ln1w"]), pad(lp["ln1b"]),
            pad(lp["ln2w"]), pad(lp["ln2b"]), pad(lp["b1"]), pad(lp["b2"]),
        ]))                                                                      # (8, 3D)
    return jnp.stack(w_rows), jnp.stack(w2s), jnp.stack(v_rows)


@jax.jit
def encoder_forward(tokens, tok_emb, pos_emb, w_slab, w2_slab, v_slab):
    """Full Encoder.forward: embedding lookups in plain JAX (gather glue);
    the whole layer stack in one Pallas kernel."""
    B, S = tokens.shape
    x = tok_emb[tokens] * (D_MODEL ** 0.5)        # token embedding * sqrt(d_model)
    x = x + pos_emb[:S][None, :, :]               # positional embedding
    # dropout p=0 -> identity
    return encoder_stack(x, w_slab, w2_slab, v_slab)


def encoder_reference(tokens, params):
    """Pure-JAX reference of the module forward (eval mode, mask=None)."""
    S = tokens.shape[1]
    x = params["tok_emb"][tokens] * (D_MODEL ** 0.5)
    x = x + params["pos_emb"][:S][None, :, :]
    scale = 1.0 / (D_HEAD ** 0.5)
    for lp in params["layers"]:
        xn = _layernorm(x, lp["ln1w"], lp["ln1b"])
        q = xn @ lp["wq"] + lp["bq"]
        k = xn @ lp["wk"] + lp["bk"]
        v = xn @ lp["wv"] + lp["bv"]
        B_, S_, _ = q.shape
        qh = q.reshape(B_, S_, N_HEADS, D_HEAD).transpose(0, 2, 1, 3)
        kh = k.reshape(B_, S_, N_HEADS, D_HEAD).transpose(0, 2, 1, 3)
        vh = v.reshape(B_, S_, N_HEADS, D_HEAD).transpose(0, 2, 1, 3)
        s = jnp.einsum('bhqd,bhkd->bhqk', qh, kh) * scale
        p = jax.nn.softmax(s, axis=-1)
        ctx = jnp.einsum('bhqk,bhkd->bhqd', p, vh)
        ctx = ctx.transpose(0, 2, 1, 3).reshape(B_, S_, D_MODEL)
        x = x + (ctx @ lp["wo"] + lp["bo"])
        xn = _layernorm(x, lp["ln2w"], lp["ln2b"])
        h1 = jax.nn.gelu(xn @ lp["w1"] + lp["b1"], approximate=True)
        x = x + (h1 @ lp["w2"] + lp["b2"])
    return x


if __name__ == "__main__":
    key = jax.random.PRNGKey(0)
    k_param, k_tok = jax.random.split(key)
    params = init_params(k_param)
    w_slab, w2_slab, v_slab = pack_layer_params(params["layers"])

    B, S = 2, 8
    tokens = jax.random.randint(k_tok, (B, S), 0, VOCAB)

    out = encoder_forward(tokens, params["tok_emb"], params["pos_emb"],
                          w_slab, w2_slab, v_slab)
    jax.block_until_ready(out)

    assert out.shape == (B, S, D_MODEL)
    assert bool(jnp.all(jnp.isfinite(out)))

    ref = encoder_reference(tokens, params)
    assert bool(jnp.allclose(out, ref, atol=1e-2, rtol=1e-2)), "kernel/reference mismatch"

    print("KERNEL_OK")
</pallas_src>

<mosaic_0001>
module attributes {stable_mosaic.version = 11 : i64} {
  func.func @encoder_stack_kernel(%arg0: i32, %arg1: memref<2x8x32xf32, #tpu.memory_space<vmem>>, %arg2: memref<2x32x192xf32, #tpu.memory_space<vmem>>, %arg3: memref<2x64x32xf32, #tpu.memory_space<vmem>>, %arg4: memref<2x8x96xf32, #tpu.memory_space<vmem>>, %arg5: memref<2x8x32xf32, #tpu.memory_space<vmem>>) attributes {dimension_semantics = [#tpu.dimension_semantics<parallel>], iteration_bounds = array<i64: 1>, scalar_prefetch = 0 : i64, scratch_operands = 0 : i64, tpu.core_type = #tpu.core_type<tc>, window_params = [{transform_indices = @transform_0, window_bounds = array<i64: 2, 8, 32>}, {pipeline_mode = #tpu.pipeline_mode<synchronous>, transform_indices = @transform_1, window_bounds = array<i64: 2, 32, 192>}, {pipeline_mode = #tpu.pipeline_mode<synchronous>, transform_indices = @transform_2, window_bounds = array<i64: 2, 64, 32>}, {pipeline_mode = #tpu.pipeline_mode<synchronous>, transform_indices = @transform_3, window_bounds = array<i64: 2, 8, 96>}, {transform_indices = @transform_4, window_bounds = array<i64: 2, 8, 32>}]} {
    %c0 = arith.constant 0 : index
    %c0_0 = arith.constant 0 : index
    %c0_1 = arith.constant 0 : index
    %0 = vector.load %arg1[%c0, %c0_0, %c0_1] : memref<2x8x32xf32, #tpu.memory_space<vmem>>, vector<2x8x32xf32>
    %c0_2 = arith.constant 0 : index
    %c0_3 = arith.constant 0 : index
    %c0_4 = arith.constant 0 : index
    %1 = vector.load %arg2[%c0_2, %c0_3, %c0_4] : memref<2x32x192xf32, #tpu.memory_space<vmem>>, vector<1x32x192xf32>
    %2 = vector.shape_cast %1 : vector<1x32x192xf32> to vector<32x192xf32>
    %3 = vector.extract_strided_slice %2 {offsets = [0, 0], sizes = [32, 96], strides = [1, 1]} : vector<32x192xf32> to vector<32x96xf32>
    %4 = vector.extract_strided_slice %2 {offsets = [0, 96], sizes = [32, 32], strides = [1, 1]} : vector<32x192xf32> to vector<32x32xf32>
    %5 = vector.extract_strided_slice %2 {offsets = [0, 128], sizes = [32, 64], strides = [1, 1]} : vector<32x192xf32> to vector<32x64xf32>
    %c0_5 = arith.constant 0 : index
    %c0_6 = arith.constant 0 : index
    %c0_7 = arith.constant 0 : index
    %6 = vector.load %arg3[%c0_5, %c0_6, %c0_7] : memref<2x64x32xf32, #tpu.memory_space<vmem>>, vector<1x64x32xf32>
    %7 = vector.shape_cast %6 : vector<1x64x32xf32> to vector<64x32xf32>
    %c0_8 = arith.constant 0 : index
    %c0_9 = arith.constant 0 : index
    %c0_10 = arith.constant 0 : index
    %8 = vector.load %arg4[%c0_8, %c0_9, %c0_10] : memref<2x8x96xf32, #tpu.memory_space<vmem>>, vector<1x8x96xf32>
    %9 = vector.shape_cast %8 : vector<1x8x96xf32> to vector<8x96xf32>
    %10 = vector.extract_strided_slice %9 {offsets = [0, 0], sizes = [1, 96], strides = [1, 1]} : vector<8x96xf32> to vector<1x96xf32>
    %11 = vector.extract_strided_slice %9 {offsets = [1, 0], sizes = [1, 32], strides = [1, 1]} : vector<8x96xf32> to vector<1x32xf32>
    %12 = vector.extract_strided_slice %9 {offsets = [2, 0], sizes = [1, 32], strides = [1, 1]} : vector<8x96xf32> to vector<1x32xf32>
    %13 = vector.extract_strided_slice %9 {offsets = [3, 0], sizes = [1, 32], strides = [1, 1]} : vector<8x96xf32> to vector<1x32xf32>
    %14 = vector.extract_strided_slice %9 {offsets = [4, 0], sizes = [1, 32], strides = [1, 1]} : vector<8x96xf32> to vector<1x32xf32>
    %15 = vector.extract_strided_slice %9 {offsets = [5, 0], sizes = [1, 32], strides = [1, 1]} : vector<8x96xf32> to vector<1x32xf32>
    %16 = vector.extract_strided_slice %9 {offsets = [6, 0], sizes = [1, 64], strides = [1, 1]} : vector<8x96xf32> to vector<1x64xf32>
    %17 = vector.extract_strided_slice %9 {offsets = [7, 0], sizes = [1, 32], strides = [1, 1]} : vector<8x96xf32> to vector<1x32xf32>
    %cst = arith.constant dense<0.000000e+00> : vector<2x8xf32>
    %18 = vector.multi_reduction <add>, %0, %cst [2] : vector<2x8x32xf32> to vector<2x8xf32>
    %19 = vector.shape_cast %18 : vector<2x8xf32> to vector<2x8x1xf32>
    %cst_11 = arith.constant 3.200000e+01 : f32
    %20 = vector.broadcast %cst_11 : f32 to vector<2x8x1xf32>
    %21 = arith.divf %19, %20 : vector<2x8x1xf32>
    %22 = vector.broadcast %21 : vector<2x8x1xf32> to vector<2x8x32xf32>
    %23 = arith.subf %0, %22 : vector<2x8x32xf32>
    %24 = arith.mulf %23, %23 : vector<2x8x32xf32>
    %cst_12 = arith.constant dense<0.000000e+00> : vector<2x8xf32>
    %25 = vector.multi_reduction <add>, %24, %cst_12 [2] : vector<2x8x32xf32> to vector<2x8xf32>
    %26 = vector.shape_cast %25 : vector<2x8xf32> to vector<2x8x1xf32>
    %cst_13 = arith.constant 3.200000e+01 : f32
    %27 = vector.broadcast %cst_13 : f32 to vector<2x8x1xf32>
    %28 = arith.divf %26, %27 : vector<2x8x1xf32>
    %29 = vector.broadcast %21 : vector<2x8x1xf32> to vector<2x8x32xf32>
    %30 = arith.subf %0, %29 : vector<2x8x32xf32>
    %cst_14 = arith.constant 9.99999974E-6 : f32
    %31 = vector.broadcast %cst_14 : f32 to vector<2x8x1xf32>
    %32 = arith.addf %28, %31 : vector<2x8x1xf32>
    %33 = math.rsqrt %32 : vector<2x8x1xf32>
    %34 = vector.broadcast %33 : vector<2x8x1xf32> to vector<2x8x32xf32>
    %35 = arith.mulf %30, %34 : vector<2x8x32xf32>
    %36 = vector.shape_cast %12 : vector<1x32xf32> to vector<1x1x32xf32>
    %37 = vector.broadcast %36 : vector<1x1x32xf32> to vector<2x8x32xf32>
    %38 = arith.mulf %35, %37 : vector<2x8x32xf32>
    %39 = vector.shape_cast %13 : vector<1x32xf32> to vector<1x1x32xf32>
    %40 = vector.broadcast %39 : vector<1x1x32xf32> to vector<2x8x32xf32>
    %41 = arith.addf %38, %40 : vector<2x8x32xf32>
    %42 = vector.shape_cast %41 : vector<2x8x32xf32> to vector<16x32xf32>
    %cst_15 = arith.constant dense<0.000000e+00> : vector<16x96xf32>
    %43 = tpu.matmul %42, %3, %cst_15 {dimension_numbers = #tpu.dot_dimension_numbers<[1], [0], [0], [1], [0, 0, 1, 1], [], []>} : vector<16x32xf32>, vector<32x96xf32>, vector<16x96xf32> -> vector<16x96xf32>
    %44 = vector.broadcast %10 : vector<1x96xf32> to vector<16x96xf32>
    %45 = arith.addf %43, %44 : vector<16x96xf32>
    %cst_16 = arith.constant 0.000000e+00 : f32
    %46 = vector.broadcast %cst_16 : f32 to vector<16x32xf32>
    %47 = vector.extract_strided_slice %45 {offsets = [0, 0], sizes = [16, 8], strides = [1, 1]} : vector<16x96xf32> to vector<16x8xf32>
    %48 = vector.shape_cast %47 : vector<16x8xf32> to vector<2x8x8xf32>
    %49 = vector.extract_strided_slice %45 {offsets = [0, 32], sizes = [16, 8], strides = [1, 1]} : vector<16x96xf32> to vector<16x8xf32>
    %50 = vector.shape_cast %49 : vector<16x8xf32> to vector<2x8x8xf32>
    %51 = vector.extract_strided_slice %45 {offsets = [0, 64], sizes = [16, 8], strides = [1, 1]} : vector<16x96xf32> to vector<16x8xf32>
    %52 = vector.shape_cast %51 : vector<16x8xf32> to vector<2x8x8xf32>
    "tpu.trace_start"() <{level = 10 : i32, message = "bqd,bkd->bqk"}> : () -> ()
    %cst_17 = arith.constant dense<0.000000e+00> : vector<2x8x8xf32>
    %53 = tpu.matmul %48, %50, %cst_17 {dimension_numbers = #tpu.dot_dimension_numbers<[2], [2], [1], [1], [0, 0, 0, 1, 1, 1], [0], [0]>} : vector<2x8x8xf32>, vector<2x8x8xf32>, vector<2x8x8xf32> -> vector<2x8x8xf32>
    "tpu.trace_stop"() : () -> ()
    %cst_18 = arith.constant dense<0xFF800000> : vector<2x8xf32>
    %54 = vector.multi_reduction <maximumf>, %53, %cst_18 [2] : vector<2x8x8xf32> to vector<2x8xf32>
    %55 = vector.shape_cast %54 : vector<2x8xf32> to vector<2x8x1xf32>
    %56 = vector.broadcast %55 : vector<2x8x1xf32> to vector<2x8x8xf32>
    %57 = arith.subf %53, %56 : vector<2x8x8xf32>
    %58 = math.exp %57 : vector<2x8x8xf32>
    %cst_19 = arith.constant dense<0.000000e+00> : vector<2x8xf32>
    %59 = vector.multi_reduction <add>, %58, %cst_19 [2] : vector<2x8x8xf32> to vector<2x8xf32>
    %60 = vector.shape_cast %59 : vector<2x8xf32> to vector<2x8x1xf32>
    %61 = tpu.reciprocal %60 {approx = true} : vector<2x8x1xf32> -> vector<2x8x1xf32>
    %62 = vector.broadcast %61 : vector<2x8x1xf32> to vector<2x8x8xf32>
    %63 = arith.mulf %58, %62 : vector<2x8x8xf32>
    "tpu.trace_start"() <{level = 10 : i32, message = "bqk,bkd->bqd"}> : () -> ()
    %cst_20 = arith.constant dense<0.000000e+00> : vector<2x8x8xf32>
    %64 = tpu.matmul %63, %52, %cst_20 {dimension_numbers = #tpu.dot_dimension_numbers<[2], [1], [1], [2], [0, 0, 0, 1, 1, 2], [0], [0]>} : vector<2x8x8xf32>, vector<2x8x8xf32>, vector<2x8x8xf32> -> vector<2x8x8xf32>
    "tpu.trace_stop"() : () -> ()
    %65 = vector.shape_cast %64 : vector<2x8x8xf32> to vector<16x8xf32>
    %66 = vector.extract_strided_slice %4 {offsets = [0, 0], sizes = [8, 32], strides = [1, 1]} : vector<32x32xf32> to vector<8x32xf32>
    %cst_21 = arith.constant dense<0.000000e+00> : vector<16x32xf32>
    %67 = tpu.matmul %65, %66, %cst_21 {dimension_numbers = #tpu.dot_dimension_numbers<[1], [0], [0], [1], [0, 0, 1, 1], [], []>} : vector<16x8xf32>, vector<8x32xf32>, vector<16x32xf32> -> vector<16x32xf32>
    %68 = arith.addf %46, %67 : vector<16x32xf32>
    %69 = vector.extract_strided_slice %45 {offsets = [0, 8], sizes = [16, 8], strides = [1, 1]} : vector<16x96xf32> to vector<16x8xf32>
    %70 = vector.shape_cast %69 : vector<16x8xf32> to vector<2x8x8xf32>
    %71 = vector.extract_strided_slice %45 {offsets = [0, 40], sizes = [16, 8], strides = [1, 1]} : vector<16x96xf32> to vector<16x8xf32>
    %72 = vector.shape_cast %71 : vector<16x8xf32> to vector<2x8x8xf32>
    %73 = vector.extract_strided_slice %45 {offsets = [0, 72], sizes = [16, 8], strides = [1, 1]} : vector<16x96xf32> to vector<16x8xf32>
    %74 = vector.shape_cast %73 : vector<16x8xf32> to vector<2x8x8xf32>
    "tpu.trace_start"() <{level = 10 : i32, message = "bqd,bkd->bqk"}> : () -> ()
    %cst_22 = arith.constant dense<0.000000e+00> : vector<2x8x8xf32>
    %75 = tpu.matmul %70, %72, %cst_22 {dimension_numbers = #tpu.dot_dimension_numbers<[2], [2], [1], [1], [0, 0, 0, 1, 1, 1], [0], [0]>} : vector<2x8x8xf32>, vector<2x8x8xf32>, vector<2x8x8xf32> -> vector<2x8x8xf32>
    "tpu.trace_stop"() : () -> ()
    %cst_23 = arith.constant dense<0xFF800000> : vector<2x8xf32>
    %76 = vector.multi_reduction <maximumf>, %75, %cst_23 [2] : vector<2x8x8xf32> to vector<2x8xf32>
    %77 = vector.shape_cast %76 : vector<2x8xf32> to vector<2x8x1xf32>
    %78 = vector.broadcast %77 : vector<2x8x1xf32> to vector<2x8x8xf32>
    %79 = arith.subf %75, %78 : vector<2x8x8xf32>
    %80 = math.exp %79 : vector<2x8x8xf32>
    %cst_24 = arith.constant dense<0.000000e+00> : vector<2x8xf32>
    %81 = vector.multi_reduction <add>, %80, %cst_24 [2] : vector<2x8x8xf32> to vector<2x8xf32>
    %82 = vector.shape_cast %81 : vector<2x8xf32> to vector<2x8x1xf32>
    %83 = tpu.reciprocal %82 {approx = true} : vector<2x8x1xf32> -> vector<2x8x1xf32>
    %84 = vector.broadcast %83 : vector<2x8x1xf32> to vector<2x8x8xf32>
    %85 = arith.mulf %80, %84 : vector<2x8x8xf32>
    "tpu.trace_start"() <{level = 10 : i32, message = "bqk,bkd->bqd"}> : () -> ()
    %cst_25 = arith.constant dense<0.000000e+00> : vector<2x8x8xf32>
    %86 = tpu.matmul %85, %74, %cst_25 {dimension_numbers = #tpu.dot_dimension_numbers<[2], [1], [1], [2], [0, 0, 0, 1, 1, 2], [0], [0]>} : vector<2x8x8xf32>, vector<2x8x8xf32>, vector<2x8x8xf32> -> vector<2x8x8xf32>
    "tpu.trace_stop"() : () -> ()
    %87 = vector.shape_cast %86 : vector<2x8x8xf32> to vector<16x8xf32>
    %88 = vector.extract_strided_slice %4 {offsets = [8, 0], sizes = [8, 32], strides = [1, 1]} : vector<32x32xf32> to vector<8x32xf32>
    %cst_26 = arith.constant dense<0.000000e+00> : vector<16x32xf32>
    %89 = tpu.matmul %87, %88, %cst_26 {dimension_numbers = #tpu.dot_dimension_numbers<[1], [0], [0], [1], [0, 0, 1, 1], [], []>} : vector<16x8xf32>, vector<8x32xf32>, vector<16x32xf32> -> vector<16x32xf32>
    %90 = arith.addf %68, %89 : vector<16x32xf32>
    %91 = vector.extract_strided_slice %45 {offsets = [0, 16], sizes = [16, 8], strides = [1, 1]} : vector<16x96xf32> to vector<16x8xf32>
    %92 = vector.shape_cast %91 : vector<16x8xf32> to vector<2x8x8xf32>
    %93 = vector.extract_strided_slice %45 {offsets = [0, 48], sizes = [16, 8], strides = [1, 1]} : vector<16x96xf32> to vector<16x8xf32>
    %94 = vector.shape_cast %93 : vector<16x8xf32> to vector<2x8x8xf32>
    %95 = vector.extract_strided_slice %45 {offsets = [0, 80], sizes = [16, 8], strides = [1, 1]} : vector<16x96xf32> to vector<16x8xf32>
    %96 = vector.shape_cast %95 : vector<16x8xf32> to vector<2x8x8xf32>
    "tpu.trace_start"() <{level = 10 : i32, message = "bqd,bkd->bqk"}> : () -> ()
    %cst_27 = arith.constant dense<0.000000e+00> : vector<2x8x8xf32>
    %97 = tpu.matmul %92, %94, %cst_27 {dimension_numbers = #tpu.dot_dimension_numbers<[2], [2], [1], [1], [0, 0, 0, 1, 1, 1], [0], [0]>} : vector<2x8x8xf32>, vector<2x8x8xf32>, vector<2x8x8xf32> -> vector<2x8x8xf32>
    "tpu.trace_stop"() : () -> ()
    %cst_28 = arith.constant dense<0xFF800000> : vector<2x8xf32>
    %98 = vector.multi_reduction <maximumf>, %97, %cst_28 [2] : vector<2x8x8xf32> to vector<2x8xf32>
    %99 = vector.shape_cast %98 : vector<2x8xf32> to vector<2x8x1xf32>
    %100 = vector.broadcast %99 : vector<2x8x1xf32> to vector<2x8x8xf32>
    %101 = arith.subf %97, %100 : vector<2x8x8xf32>
    %102 = math.exp %101 : vector<2x8x8xf32>
    %cst_29 = arith.constant dense<0.000000e+00> : vector<2x8xf32>
    %103 = vector.multi_reduction <add>, %102, %cst_29 [2] : vector<2x8x8xf32> to vector<2x8xf32>
    %104 = vector.shape_cast %103 : vector<2x8xf32> to vector<2x8x1xf32>
    %105 = tpu.reciprocal %104 {approx = true} : vector<2x8x1xf32> -> vector<2x8x1xf32>
    %106 = vector.broadcast %105 : vector<2x8x1xf32> to vector<2x8x8xf32>
    %107 = arith.mulf %102, %106 : vector<2x8x8xf32>
    "tpu.trace_start"() <{level = 10 : i32, message = "bqk,bkd->bqd"}> : () -> ()
    %cst_30 = arith.constant dense<0.000000e+00> : vector<2x8x8xf32>
    %108 = tpu.matmul %107, %96, %cst_30 {dimension_numbers = #tpu.dot_dimension_numbers<[2], [1], [1], [2], [0, 0, 0, 1, 1, 2], [0], [0]>} : vector<2x8x8xf32>, vector<2x8x8xf32>, vector<2x8x8xf32> -> vector<2x8x8xf32>
    "tpu.trace_stop"() : () -> ()
    %109 = vector.shape_cast %108 : vector<2x8x8xf32> to vector<16x8xf32>
    %110 = vector.extract_strided_slice %4 {offsets = [16, 0], sizes = [8, 32], strides = [1, 1]} : vector<32x32xf32> to vector<8x32xf32>
    %cst_31 = arith.constant dense<0.000000e+00> : vector<16x32xf32>
    %111 = tpu.matmul %109, %110, %cst_31 {dimension_numbers = #tpu.dot_dimension_numbers<[1], [0], [0], [1], [0, 0, 1, 1], [], []>} : vector<16x8xf32>, vector<8x32xf32>, vector<16x32xf32> -> vector<16x32xf32>
    %112 = arith.addf %90, %111 : vector<16x32xf32>
    %113 = vector.extract_strided_slice %45 {offsets = [0, 24], sizes = [16, 8], strides = [1, 1]} : vector<16x96xf32> to vector<16x8xf32>
    %114 = vector.shape_cast %113 : vector<16x8xf32> to vector<2x8x8xf32>
    %115 = vector.extract_strided_slice %45 {offsets = [0, 56], sizes = [16, 8], strides = [1, 1]} : vector<16x96xf32> to vector<16x8xf32>
    %116 = vector.shape_cast %115 : vector<16x8xf32> to vector<2x8x8xf32>
    %117 = vector.extract_strided_slice %45 {offsets = [0, 88], sizes = [16, 8], strides = [1, 1]} : vector<16x96xf32> to vector<16x8xf32>
    %118 = vector.shape_cast %117 : vector<16x8xf32> to vector<2x8x8xf32>
    "tpu.trace_start"() <{level = 10 : i32, message = "bqd,bkd->bqk"}> : () -> ()
    %cst_32 = arith.constant dense<0.000000e+00> : vector<2x8x8xf32>
    %119 = tpu.matmul %114, %116, %cst_32 {dimension_numbers = #tpu.dot_dimension_numbers<[2], [2], [1], [1], [0, 0, 0, 1, 1, 1], [0], [0]>} : vector<2x8x8xf32>, vector<2x8x8xf32>, vector<2x8x8xf32> -> vector<2x8x8xf32>
    "tpu.trace_stop"() : () -> ()
    %cst_33 = arith.constant dense<0xFF800000> : vector<2x8xf32>
    %120 = vector.multi_reduction <maximumf>, %119, %cst_33 [2] : vector<2x8x8xf32> to vector<2x8xf32>
    %121 = vector.shape_cast %120 : vector<2x8xf32> to vector<2x8x1xf32>
    %122 = vector.broadcast %121 : vector<2x8x1xf32> to vector<2x8x8xf32>
    %123 = arith.subf %119, %122 : vector<2x8x8xf32>
    %124 = math.exp %123 : vector<2x8x8xf32>
    %cst_34 = arith.constant dense<0.000000e+00> : vector<2x8xf32>
    %125 = vector.multi_reduction <add>, %124, %cst_34 [2] : vector<2x8x8xf32> to vector<2x8xf32>
    %126 = vector.shape_cast %125 : vector<2x8xf32> to vector<2x8x1xf32>
    %127 = tpu.reciprocal %126 {approx = true} : vector<2x8x1xf32> -> vector<2x8x1xf32>
    %128 = vector.broadcast %127 : vector<2x8x1xf32> to vector<2x8x8xf32>
    %129 = arith.mulf %124, %128 : vector<2x8x8xf32>
    "tpu.trace_start"() <{level = 10 : i32, message = "bqk,bkd->bqd"}> : () -> ()
    %cst_35 = arith.constant dense<0.000000e+00> : vector<2x8x8xf32>
    %130 = tpu.matmul %129, %118, %cst_35 {dimension_numbers = #tpu.dot_dimension_numbers<[2], [1], [1], [2], [0, 0, 0, 1, 1, 2], [0], [0]>} : vector<2x8x8xf32>, vector<2x8x8xf32>, vector<2x8x8xf32> -> vector<2x8x8xf32>
    "tpu.trace_stop"() : () -> ()
    %131 = vector.shape_cast %130 : vector<2x8x8xf32> to vector<16x8xf32>
    %132 = vector.extract_strided_slice %4 {offsets = [24, 0], sizes = [8, 32], strides = [1, 1]} : vector<32x32xf32> to vector<8x32xf32>
    %cst_36 = arith.constant dense<0.000000e+00> : vector<16x32xf32>
    %133 = tpu.matmul %131, %132, %cst_36 {dimension_numbers = #tpu.dot_dimension_numbers<[1], [0], [0], [1], [0, 0, 1, 1], [], []>} : vector<16x8xf32>, vector<8x32xf32>, vector<16x32xf32> -> vector<16x32xf32>
    %134 = arith.addf %112, %133 : vector<16x32xf32>
    %135 = vector.broadcast %11 : vector<1x32xf32> to vector<16x32xf32>
    %136 = arith.addf %134, %135 : vector<16x32xf32>
    %137 = vector.shape_cast %136 : vector<16x32xf32> to vector<2x8x32xf32>
    %138 = arith.addf %0, %137 : vector<2x8x32xf32>
    %cst_37 = arith.constant dense<0.000000e+00> : vector<2x8xf32>
    %139 = vector.multi_reduction <add>, %138, %cst_37 [2] : vector<2x8x32xf32> to vector<2x8xf32>
    %140 = vector.shape_cast %139 : vector<2x8xf32> to vector<2x8x1xf32>
    %cst_38 = arith.constant 3.200000e+01 : f32
    %141 = vector.broadcast %cst_38 : f32 to vector<2x8x1xf32>
    %142 = arith.divf %140, %141 : vector<2x8x1xf32>
    %143 = vector.broadcast %142 : vector<2x8x1xf32> to vector<2x8x32xf32>
    %144 = arith.subf %138, %143 : vector<2x8x32xf32>
    %145 = arith.mulf %144, %144 : vector<2x8x32xf32>
    %cst_39 = arith.constant dense<0.000000e+00> : vector<2x8xf32>
    %146 = vector.multi_reduction <add>, %145, %cst_39 [2] : vector<2x8x32xf32> to vector<2x8xf32>
    %147 = vector.shape_cast %146 : vector<2x8xf32> to vector<2x8x1xf32>
    %cst_40 = arith.constant 3.200000e+01 : f32
    %148 = vector.broadcast %cst_40 : f32 to vector<2x8x1xf32>
    %149 = arith.divf %147, %148 : vector<2x8x1xf32>
    %150 = vector.broadcast %142 : vector<2x8x1xf32> to vector<2x8x32xf32>
    %151 = arith.subf %138, %150 : vector<2x8x32xf32>
    %cst_41 = arith.constant 9.99999974E-6 : f32
    %152 = vector.broadcast %cst_41 : f32 to vector<2x8x1xf32>
    %153 = arith.addf %149, %152 : vector<2x8x1xf32>
    %154 = math.rsqrt %153 : vector<2x8x1xf32>
    %155 = vector.broadcast %154 : vector<2x8x1xf32> to vector<2x8x32xf32>
    %156 = arith.mulf %151, %155 : vector<2x8x32xf32>
    %157 = vector.shape_cast %14 : vector<1x32xf32> to vector<1x1x32xf32>
    %158 = vector.broadcast %157 : vector<1x1x32xf32> to vector<2x8x32xf32>
    %159 = arith.mulf %156, %158 : vector<2x8x32xf32>
    %160 = vector.shape_cast %15 : vector<1x32xf32> to vector<1x1x32xf32>
    %161 = vector.broadcast %160 : vector<1x1x32xf32> to vector<2x8x32xf32>
    %162 = arith.addf %159, %161 : vector<2x8x32xf32>
    %163 = vector.shape_cast %162 : vector<2x8x32xf32> to vector<16x32xf32>
    %cst_42 = arith.constant dense<0.000000e+00> : vector<16x64xf32>
    %164 = tpu.matmul %163, %5, %cst_42 {dimension_numbers = #tpu.dot_dimension_numbers<[1], [0], [0], [1], [0, 0, 1, 1], [], []>} : vector<16x32xf32>, vector<32x64xf32>, vector<16x64xf32> -> vector<16x64xf32>
    %165 = vector.broadcast %16 : vector<1x64xf32> to vector<16x64xf32>
    %166 = arith.addf %164, %165 : vector<16x64xf32>
    %167 = arith.mulf %166, %166 : vector<16x64xf32>
    %168 = arith.mulf %166, %167 : vector<16x64xf32>
    %cst_43 = arith.constant 4.471500e-02 : f32
    %169 = vector.broadcast %cst_43 : f32 to vector<16x64xf32>
    %170 = arith.mulf %169, %168 : vector<16x64xf32>
    %171 = arith.addf %166, %170 : vector<16x64xf32>
    %cst_44 = arith.constant 0.797884583 : f32
    %172 = vector.broadcast %cst_44 : f32 to vector<16x64xf32>
    %173 = arith.mulf %172, %171 : vector<16x64xf32>
    %174 = math.tanh %173 : vector<16x64xf32>
    %cst_45 = arith.constant 1.000000e+00 : f32
    %175 = vector.broadcast %cst_45 : f32 to vector<16x64xf32>
    %176 = arith.addf %175, %174 : vector<16x64xf32>
    %cst_46 = arith.constant 5.000000e-01 : f32
    %177 = vector.broadcast %cst_46 : f32 to vector<16x64xf32>
    %178 = arith.mulf %177, %176 : vector<16x64xf32>
    %179 = arith.mulf %166, %178 : vector<16x64xf32>
    %cst_47 = arith.constant dense<0.000000e+00> : vector<16x32xf32>
    %180 = tpu.matmul %179, %7, %cst_47 {dimension_numbers = #tpu.dot_dimension_numbers<[1], [0], [0], [1], [0, 0, 1, 1], [], []>} : vector<16x64xf32>, vector<64x32xf32>, vector<16x32xf32> -> vector<16x32xf32>
    %181 = vector.broadcast %17 : vector<1x32xf32> to vector<16x32xf32>
    %182 = arith.addf %180, %181 : vector<16x32xf32>
    %183 = vector.shape_cast %182 : vector<16x32xf32> to vector<2x8x32xf32>
    %184 = arith.addf %138, %183 : vector<2x8x32xf32>
    %c1 = arith.constant 1 : index
    %c0_48 = arith.constant 0 : index
    %c0_49 = arith.constant 0 : index
    %185 = vector.load %arg2[%c1, %c0_48, %c0_49] : memref<2x32x192xf32, #tpu.memory_space<vmem>>, vector<1x32x192xf32>
    %186 = vector.shape_cast %185 : vector<1x32x192xf32> to vector<32x192xf32>
    %187 = vector.extract_strided_slice %186 {offsets = [0, 0], sizes = [32, 96], strides = [1, 1]} : vector<32x192xf32> to vector<32x96xf32>
    %188 = vector.extract_strided_slice %186 {offsets = [0, 96], sizes = [32, 32], strides = [1, 1]} : vector<32x192xf32> to vector<32x32xf32>
    %189 = vector.extract_strided_slice %186 {offsets = [0, 128], sizes = [32, 64], strides = [1, 1]} : vector<32x192xf32> to vector<32x64xf32>
    %c1_50 = arith.constant 1 : index
    %c0_51 = arith.constant 0 : index
    %c0_52 = arith.constant 0 : index
    %190 = vector.load %arg3[%c1_50, %c0_51, %c0_52] : memref<2x64x32xf32, #tpu.memory_space<vmem>>, vector<1x64x32xf32>
    %191 = vector.shape_cast %190 : vector<1x64x32xf32> to vector<64x32xf32>
    %c1_53 = arith.constant 1 : index
    %c0_54 = arith.constant 0 : index
    %c0_55 = arith.constant 0 : index
    %192 = vector.load %arg4[%c1_53, %c0_54, %c0_55] : memref<2x8x96xf32, #tpu.memory_space<vmem>>, vector<1x8x96xf32>
    %193 = vector.shape_cast %192 : vector<1x8x96xf32> to vector<8x96xf32>
    %194 = vector.extract_strided_slice %193 {offsets = [0, 0], sizes = [1, 96], strides = [1, 1]} : vector<8x96xf32> to vector<1x96xf32>
    %195 = vector.extract_strided_slice %193 {offsets = [1, 0], sizes = [1, 32], strides = [1, 1]} : vector<8x96xf32> to vector<1x32xf32>
    %196 = vector.extract_strided_slice %193 {offsets = [2, 0], sizes = [1, 32], strides = [1, 1]} : vector<8x96xf32> to vector<1x32xf32>
    %197 = vector.extract_strided_slice %193 {offsets = [3, 0], sizes = [1, 32], strides = [1, 1]} : vector<8x96xf32> to vector<1x32xf32>
    %198 = vector.extract_strided_slice %193 {offsets = [4, 0], sizes = [1, 32], strides = [1, 1]} : vector<8x96xf32> to vector<1x32xf32>
    %199 = vector.extract_strided_slice %193 {offsets = [5, 0], sizes = [1, 32], strides = [1, 1]} : vector<8x96xf32> to vector<1x32xf32>
    %200 = vector.extract_strided_slice %193 {offsets = [6, 0], sizes = [1, 64], strides = [1, 1]} : vector<8x96xf32> to vector<1x64xf32>
    %201 = vector.extract_strided_slice %193 {offsets = [7, 0], sizes = [1, 32], strides = [1, 1]} : vector<8x96xf32> to vector<1x32xf32>
    %cst_56 = arith.constant dense<0.000000e+00> : vector<2x8xf32>
    %202 = vector.multi_reduction <add>, %184, %cst_56 [2] : vector<2x8x32xf32> to vector<2x8xf32>
    %203 = vector.shape_cast %202 : vector<2x8xf32> to vector<2x8x1xf32>
    %cst_57 = arith.constant 3.200000e+01 : f32
    %204 = vector.broadcast %cst_57 : f32 to vector<2x8x1xf32>
    %205 = arith.divf %203, %204 : vector<2x8x1xf32>
    %206 = vector.broadcast %205 : vector<2x8x1xf32> to vector<2x8x32xf32>
    %207 = arith.subf %184, %206 : vector<2x8x32xf32>
    %208 = arith.mulf %207, %207 : vector<2x8x32xf32>
    %cst_58 = arith.constant dense<0.000000e+00> : vector<2x8xf32>
    %209 = vector.multi_reduction <add>, %208, %cst_58 [2] : vector<2x8x32xf32> to vector<2x8xf32>
    %210 = vector.shape_cast %209 : vector<2x8xf32> to vector<2x8x1xf32>
    %cst_59 = arith.constant 3.200000e+01 : f32
    %211 = vector.broadcast %cst_59 : f32 to vector<2x8x1xf32>
    %212 = arith.divf %210, %211 : vector<2x8x1xf32>
    %213 = vector.broadcast %205 : vector<2x8x1xf32> to vector<2x8x32xf32>
    %214 = arith.subf %184, %213 : vector<2x8x32xf32>
    %cst_60 = arith.constant 9.99999974E-6 : f32
    %215 = vector.broadcast %cst_60 : f32 to vector<2x8x1xf32>
    %216 = arith.addf %212, %215 : vector<2x8x1xf32>
    %217 = math.rsqrt %216 : vector<2x8x1xf32>
    %218 = vector.broadcast %217 : vector<2x8x1xf32> to vector<2x8x32xf32>
    %219 = arith.mulf %214, %218 : vector<2x8x32xf32>
    %220 = vector.shape_cast %196 : vector<1x32xf32> to vector<1x1x32xf32>
    %221 = vector.broadcast %220 : vector<1x1x32xf32> to vector<2x8x32xf32>
    %222 = arith.mulf %219, %221 : vector<2x8x32xf32>
    %223 = vector.shape_cast %197 : vector<1x32xf32> to vector<1x1x32xf32>
    %224 = vector.broadcast %223 : vector<1x1x32xf32> to vector<2x8x32xf32>
    %225 = arith.addf %222, %224 : vector<2x8x32xf32>
    %226 = vector.shape_cast %225 : vector<2x8x32xf32> to vector<16x32xf32>
    %cst_61 = arith.constant dense<0.000000e+00> : vector<16x96xf32>
    %227 = tpu.matmul %226, %187, %cst_61 {dimension_numbers = #tpu.dot_dimension_numbers<[1], [0], [0], [1], [0, 0, 1, 1], [], []>} : vector<16x32xf32>, vector<32x96xf32>, vector<16x96xf32> -> vector<16x96xf32>
    %228 = vector.broadcast %194 : vector<1x96xf32> to vector<16x96xf32>
    %229 = arith.addf %227, %228 : vector<16x96xf32>
    %cst_62 = arith.constant 0.000000e+00 : f32
    %230 = vector.broadcast %cst_62 : f32 to vector<16x32xf32>
    %231 = vector.extract_strided_slice %229 {offsets = [0, 0], sizes = [16, 8], strides = [1, 1]} : vector<16x96xf32> to vector<16x8xf32>
    %232 = vector.shape_cast %231 : vector<16x8xf32> to vector<2x8x8xf32>
    %233 = vector.extract_strided_slice %229 {offsets = [0, 32], sizes = [16, 8], strides = [1, 1]} : vector<16x96xf32> to vector<16x8xf32>
    %234 = vector.shape_cast %233 : vector<16x8xf32> to vector<2x8x8xf32>
    %235 = vector.extract_strided_slice %229 {offsets = [0, 64], sizes = [16, 8], strides = [1, 1]} : vector<16x96xf32> to vector<16x8xf32>
    %236 = vector.shape_cast %235 : vector<16x8xf32> to vector<2x8x8xf32>
    "tpu.trace_start"() <{level = 10 : i32, message = "bqd,bkd->bqk"}> : () -> ()
    %cst_63 = arith.constant dense<0.000000e+00> : vector<2x8x8xf32>
    %237 = tpu.matmul %232, %234, %cst_63 {dimension_numbers = #tpu.dot_dimension_numbers<[2], [2], [1], [1], [0, 0, 0, 1, 1, 1], [0], [0]>} : vector<2x8x8xf32>, vector<2x8x8xf32>, vector<2x8x8xf32> -> vector<2x8x8xf32>
    "tpu.trace_stop"() : () -> ()
    %cst_64 = arith.constant dense<0xFF800000> : vector<2x8xf32>
    %238 = vector.multi_reduction <maximumf>, %237, %cst_64 [2] : vector<2x8x8xf32> to vector<2x8xf32>
    %239 = vector.shape_cast %238 : vector<2x8xf32> to vector<2x8x1xf32>
    %240 = vector.broadcast %239 : vector<2x8x1xf32> to vector<2x8x8xf32>
    %241 = arith.subf %237, %240 : vector<2x8x8xf32>
    %242 = math.exp %241 : vector<2x8x8xf32>
    %cst_65 = arith.constant dense<0.000000e+00> : vector<2x8xf32>
    %243 = vector.multi_reduction <add>, %242, %cst_65 [2] : vector<2x8x8xf32> to vector<2x8xf32>
    %244 = vector.shape_cast %243 : vector<2x8xf32> to vector<2x8x1xf32>
    %245 = tpu.reciprocal %244 {approx = true} : vector<2x8x1xf32> -> vector<2x8x1xf32>
    %246 = vector.broadcast %245 : vector<2x8x1xf32> to vector<2x8x8xf32>
    %247 = arith.mulf %242, %246 : vector<2x8x8xf32>
    "tpu.trace_start"() <{level = 10 : i32, message = "bqk,bkd->bqd"}> : () -> ()
    %cst_66 = arith.constant dense<0.000000e+00> : vector<2x8x8xf32>
    %248 = tpu.matmul %247, %236, %cst_66 {dimension_numbers = #tpu.dot_dimension_numbers<[2], [1], [1], [2], [0, 0, 0, 1, 1, 2], [0], [0]>} : vector<2x8x8xf32>, vector<2x8x8xf32>, vector<2x8x8xf32> -> vector<2x8x8xf32>
    "tpu.trace_stop"() : () -> ()
    %249 = vector.shape_cast %248 : vector<2x8x8xf32> to vector<16x8xf32>
    %250 = vector.extract_strided_slice %188 {offsets = [0, 0], sizes = [8, 32], strides = [1, 1]} : vector<32x32xf32> to vector<8x32xf32>
    %cst_67 = arith.constant dense<0.000000e+00> : vector<16x32xf32>
    %251 = tpu.matmul %249, %250, %cst_67 {dimension_numbers = #tpu.dot_dimension_numbers<[1], [0], [0], [1], [0, 0, 1, 1], [], []>} : vector<16x8xf32>, vector<8x32xf32>, vector<16x32xf32> -> vector<16x32xf32>
    %252 = arith.addf %230, %251 : vector<16x32xf32>
    %253 = vector.extract_strided_slice %229 {offsets = [0, 8], sizes = [16, 8], strides = [1, 1]} : vector<16x96xf32> to vector<16x8xf32>
    %254 = vector.shape_cast %253 : vector<16x8xf32> to vector<2x8x8xf32>
    %255 = vector.extract_strided_slice %229 {offsets = [0, 40], sizes = [16, 8], strides = [1, 1]} : vector<16x96xf32> to vector<16x8xf32>
    %256 = vector.shape_cast %255 : vector<16x8xf32> to vector<2x8x8xf32>
    %257 = vector.extract_strided_slice %229 {offsets = [0, 72], sizes = [16, 8], strides = [1, 1]} : vector<16x96xf32> to vector<16x8xf32>
    %258 = vector.shape_cast %257 : vector<16x8xf32> to vector<2x8x8xf32>
    "tpu.trace_start"() <{level = 10 : i32, message = "bqd,bkd->bqk"}> : () -> ()
    %cst_68 = arith.constant dense<0.000000e+00> : vector<2x8x8xf32>
    %259 = tpu.matmul %254, %256, %cst_68 {dimension_numbers = #tpu.dot_dimension_numbers<[2], [2], [1], [1], [0, 0, 0, 1, 1, 1], [0], [0]>} : vector<2x8x8xf32>, vector<2x8x8xf32>, vector<2x8x8xf32> -> vector<2x8x8xf32>
    "tpu.trace_stop"() : () -> ()
    %cst_69 = arith.constant dense<0xFF800000> : vector<2x8xf32>
    %260 = vector.multi_reduction <maximumf>, %259, %cst_69 [2] : vector<2x8x8xf32> to vector<2x8xf32>
    %261 = vector.shape_cast %260 : vector<2x8xf32> to vector<2x8x1xf32>
    %262 = vector.broadcast %261 : vector<2x8x1xf32> to vector<2x8x8xf32>
    %263 = arith.subf %259, %262 : vector<2x8x8xf32>
    %264 = math.exp %263 : vector<2x8x8xf32>
    %cst_70 = arith.constant dense<0.000000e+00> : vector<2x8xf32>
    %265 = vector.multi_reduction <add>, %264, %cst_70 [2] : vector<2x8x8xf32> to vector<2x8xf32>
    %266 = vector.shape_cast %265 : vector<2x8xf32> to vector<2x8x1xf32>
    %267 = tpu.reciprocal %266 {approx = true} : vector<2x8x1xf32> -> vector<2x8x1xf32>
    %268 = vector.broadcast %267 : vector<2x8x1xf32> to vector<2x8x8xf32>
    %269 = arith.mulf %264, %268 : vector<2x8x8xf32>
    "tpu.trace_start"() <{level = 10 : i32, message = "bqk,bkd->bqd"}> : () -> ()
    %cst_71 = arith.constant dense<0.000000e+00> : vector<2x8x8xf32>
    %270 = tpu.matmul %269, %258, %cst_71 {dimension_numbers = #tpu.dot_dimension_numbers<[2], [1], [1], [2], [0, 0, 0, 1, 1, 2], [0], [0]>} : vector<2x8x8xf32>, vector<2x8x8xf32>, vector<2x8x8xf32> -> vector<2x8x8xf32>
    "tpu.trace_stop"() : () -> ()
    %271 = vector.shape_cast %270 : vector<2x8x8xf32> to vector<16x8xf32>
    %272 = vector.extract_strided_slice %188 {offsets = [8, 0], sizes = [8, 32], strides = [1, 1]} : vector<32x32xf32> to vector<8x32xf32>
    %cst_72 = arith.constant dense<0.000000e+00> : vector<16x32xf32>
    %273 = tpu.matmul %271, %272, %cst_72 {dimension_numbers = #tpu.dot_dimension_numbers<[1], [0], [0], [1], [0, 0, 1, 1], [], []>} : vector<16x8xf32>, vector<8x32xf32>, vector<16x32xf32> -> vector<16x32xf32>
    %274 = arith.addf %252, %273 : vector<16x32xf32>
    %275 = vector.extract_strided_slice %229 {offsets = [0, 16], sizes = [16, 8], strides = [1, 1]} : vector<16x96xf32> to vector<16x8xf32>
    %276 = vector.shape_cast %275 : vector<16x8xf32> to vector<2x8x8xf32>
    %277 = vector.extract_strided_slice %229 {offsets = [0, 48], sizes = [16, 8], strides = [1, 1]} : vector<16x96xf32> to vector<16x8xf32>
    %278 = vector.shape_cast %277 : vector<16x8xf32> to vector<2x8x8xf32>
    %279 = vector.extract_strided_slice %229 {offsets = [0, 80], sizes = [16, 8], strides = [1, 1]} : vector<16x96xf32> to vector<16x8xf32>
    %280 = vector.shape_cast %279 : vector<16x8xf32> to vector<2x8x8xf32>
    "tpu.trace_start"() <{level = 10 : i32, message = "bqd,bkd->bqk"}> : () -> ()
    %cst_73 = arith.constant dense<0.000000e+00> : vector<2x8x8xf32>
    %281 = tpu.matmul %276, %278, %cst_73 {dimension_numbers = #tpu.dot_dimension_numbers<[2], [2], [1], [1], [0, 0, 0, 1, 1, 1], [0], [0]>} : vector<2x8x8xf32>, vector<2x8x8xf32>, vector<2x8x8xf32> -> vector<2x8x8xf32>
    "tpu.trace_stop"() : () -> ()
    %cst_74 = arith.constant dense<0xFF800000> : vector<2x8xf32>
    %282 = vector.multi_reduction <maximumf>, %281, %cst_74 [2] : vector<2x8x8xf32> to vector<2x8xf32>
    %283 = vector.shape_cast %282 : vector<2x8xf32> to vector<2x8x1xf32>
    %284 = vector.broadcast %283 : vector<2x8x1xf32> to vector<2x8x8xf32>
    %285 = arith.subf %281, %284 : vector<2x8x8xf32>
    %286 = math.exp %285 : vector<2x8x8xf32>
    %cst_75 = arith.constant dense<0.000000e+00> : vector<2x8xf32>
    %287 = vector.multi_reduction <add>, %286, %cst_75 [2] : vector<2x8x8xf32> to vector<2x8xf32>
    %288 = vector.shape_cast %287 : vector<2x8xf32> to vector<2x8x1xf32>
    %289 = tpu.reciprocal %288 {approx = true} : vector<2x8x1xf32> -> vector<2x8x1xf32>
    %290 = vector.broadcast %289 : vector<2x8x1xf32> to vector<2x8x8xf32>
    %291 = arith.mulf %286, %290 : vector<2x8x8xf32>
    "tpu.trace_start"() <{level = 10 : i32, message = "bqk,bkd->bqd"}> : () -> ()
    %cst_76 = arith.constant dense<0.000000e+00> : vector<2x8x8xf32>
    %292 = tpu.matmul %291, %280, %cst_76 {dimension_numbers = #tpu.dot_dimension_numbers<[2], [1], [1], [2], [0, 0, 0, 1, 1, 2], [0], [0]>} : vector<2x8x8xf32>, vector<2x8x8xf32>, vector<2x8x8xf32> -> vector<2x8x8xf32>
    "tpu.trace_stop"() : () -> ()
    %293 = vector.shape_cast %292 : vector<2x8x8xf32> to vector<16x8xf32>
    %294 = vector.extract_strided_slice %188 {offsets = [16, 0], sizes = [8, 32], strides = [1, 1]} : vector<32x32xf32> to vector<8x32xf32>
    %cst_77 = arith.constant dense<0.000000e+00> : vector<16x32xf32>
    %295 = tpu.matmul %293, %294, %cst_77 {dimension_numbers = #tpu.dot_dimension_numbers<[1], [0], [0], [1], [0, 0, 1, 1], [], []>} : vector<16x8xf32>, vector<8x32xf32>, vector<16x32xf32> -> vector<16x32xf32>
    %296 = arith.addf %274, %295 : vector<16x32xf32>
    %297 = vector.extract_strided_slice %229 {offsets = [0, 24], sizes = [16, 8], strides = [1, 1]} : vector<16x96xf32> to vector<16x8xf32>
    %298 = vector.shape_cast %297 : vector<16x8xf32> to vector<2x8x8xf32>
    %299 = vector.extract_strided_slice %229 {offsets = [0, 56], sizes = [16, 8], strides = [1, 1]} : vector<16x96xf32> to vector<16x8xf32>
    %300 = vector.shape_cast %299 : vector<16x8xf32> to vector<2x8x8xf32>
    %301 = vector.extract_strided_slice %229 {offsets = [0, 88], sizes = [16, 8], strides = [1, 1]} : vector<16x96xf32> to vector<16x8xf32>
    %302 = vector.shape_cast %301 : vector<16x8xf32> to vector<2x8x8xf32>
    "tpu.trace_start"() <{level = 10 : i32, message = "bqd,bkd->bqk"}> : () -> ()
    %cst_78 = arith.constant dense<0.000000e+00> : vector<2x8x8xf32>
    %303 = tpu.matmul %298, %300, %cst_78 {dimension_numbers = #tpu.dot_dimension_numbers<[2], [2], [1], [1], [0, 0, 0, 1, 1, 1], [0], [0]>} : vector<2x8x8xf32>, vector<2x8x8xf32>, vector<2x8x8xf32> -> vector<2x8x8xf32>
    "tpu.trace_stop"() : () -> ()
    %cst_79 = arith.constant dense<0xFF800000> : vector<2x8xf32>
    %304 = vector.multi_reduction <maximumf>, %303, %cst_79 [2] : vector<2x8x8xf32> to vector<2x8xf32>
    %305 = vector.shape_cast %304 : vector<2x8xf32> to vector<2x8x1xf32>
    %306 = vector.broadcast %305 : vector<2x8x1xf32> to vector<2x8x8xf32>
    %307 = arith.subf %303, %306 : vector<2x8x8xf32>
    %308 = math.exp %307 : vector<2x8x8xf32>
    %cst_80 = arith.constant dense<0.000000e+00> : vector<2x8xf32>
    %309 = vector.multi_reduction <add>, %308, %cst_80 [2] : vector<2x8x8xf32> to vector<2x8xf32>
    %310 = vector.shape_cast %309 : vector<2x8xf32> to vector<2x8x1xf32>
    %311 = tpu.reciprocal %310 {approx = true} : vector<2x8x1xf32> -> vector<2x8x1xf32>
    %312 = vector.broadcast %311 : vector<2x8x1xf32> to vector<2x8x8xf32>
    %313 = arith.mulf %308, %312 : vector<2x8x8xf32>
    "tpu.trace_start"() <{level = 10 : i32, message = "bqk,bkd->bqd"}> : () -> ()
    %cst_81 = arith.constant dense<0.000000e+00> : vector<2x8x8xf32>
    %314 = tpu.matmul %313, %302, %cst_81 {dimension_numbers = #tpu.dot_dimension_numbers<[2], [1], [1], [2], [0, 0, 0, 1, 1, 2], [0], [0]>} : vector<2x8x8xf32>, vector<2x8x8xf32>, vector<2x8x8xf32> -> vector<2x8x8xf32>
    "tpu.trace_stop"() : () -> ()
    %315 = vector.shape_cast %314 : vector<2x8x8xf32> to vector<16x8xf32>
    %316 = vector.extract_strided_slice %188 {offsets = [24, 0], sizes = [8, 32], strides = [1, 1]} : vector<32x32xf32> to vector<8x32xf32>
    %cst_82 = arith.constant dense<0.000000e+00> : vector<16x32xf32>
    %317 = tpu.matmul %315, %316, %cst_82 {dimension_numbers = #tpu.dot_dimension_numbers<[1], [0], [0], [1], [0, 0, 1, 1], [], []>} : vector<16x8xf32>, vector<8x32xf32>, vector<16x32xf32> -> vector<16x32xf32>
    %318 = arith.addf %296, %317 : vector<16x32xf32>
    %319 = vector.broadcast %195 : vector<1x32xf32> to vector<16x32xf32>
    %320 = arith.addf %318, %319 : vector<16x32xf32>
    %321 = vector.shape_cast %320 : vector<16x32xf32> to vector<2x8x32xf32>
    %322 = arith.addf %184, %321 : vector<2x8x32xf32>
    %cst_83 = arith.constant dense<0.000000e+00> : vector<2x8xf32>
    %323 = vector.multi_reduction <add>, %322, %cst_83 [2] : vector<2x8x32xf32> to vector<2x8xf32>
    %324 = vector.shape_cast %323 : vector<2x8xf32> to vector<2x8x1xf32>
    %cst_84 = arith.constant 3.200000e+01 : f32
    %325 = vector.broadcast %cst_84 : f32 to vector<2x8x1xf32>
    %326 = arith.divf %324, %325 : vector<2x8x1xf32>
    %327 = vector.broadcast %326 : vector<2x8x1xf32> to vector<2x8x32xf32>
    %328 = arith.subf %322, %327 : vector<2x8x32xf32>
    %329 = arith.mulf %328, %328 : vector<2x8x32xf32>
    %cst_85 = arith.constant dense<0.000000e+00> : vector<2x8xf32>
    %330 = vector.multi_reduction <add>, %329, %cst_85 [2] : vector<2x8x32xf32> to vector<2x8xf32>
    %331 = vector.shape_cast %330 : vector<2x8xf32> to vector<2x8x1xf32>
    %cst_86 = arith.constant 3.200000e+01 : f32
    %332 = vector.broadcast %cst_86 : f32 to vector<2x8x1xf32>
    %333 = arith.divf %331, %332 : vector<2x8x1xf32>
    %334 = vector.broadcast %326 : vector<2x8x1xf32> to vector<2x8x32xf32>
    %335 = arith.subf %322, %334 : vector<2x8x32xf32>
    %cst_87 = arith.constant 9.99999974E-6 : f32
    %336 = vector.broadcast %cst_87 : f32 to vector<2x8x1xf32>
    %337 = arith.addf %333, %336 : vector<2x8x1xf32>
    %338 = math.rsqrt %337 : vector<2x8x1xf32>
    %339 = vector.broadcast %338 : vector<2x8x1xf32> to vector<2x8x32xf32>
    %340 = arith.mulf %335, %339 : vector<2x8x32xf32>
    %341 = vector.shape_cast %198 : vector<1x32xf32> to vector<1x1x32xf32>
    %342 = vector.broadcast %341 : vector<1x1x32xf32> to vector<2x8x32xf32>
    %343 = arith.mulf %340, %342 : vector<2x8x32xf32>
    %344 = vector.shape_cast %199 : vector<1x32xf32> to vector<1x1x32xf32>
    %345 = vector.broadcast %344 : vector<1x1x32xf32> to vector<2x8x32xf32>
    %346 = arith.addf %343, %345 : vector<2x8x32xf32>
    %347 = vector.shape_cast %346 : vector<2x8x32xf32> to vector<16x32xf32>
    %cst_88 = arith.constant dense<0.000000e+00> : vector<16x64xf32>
    %348 = tpu.matmul %347, %189, %cst_88 {dimension_numbers = #tpu.dot_dimension_numbers<[1], [0], [0], [1], [0, 0, 1, 1], [], []>} : vector<16x32xf32>, vector<32x64xf32>, vector<16x64xf32> -> vector<16x64xf32>
    %349 = vector.broadcast %200 : vector<1x64xf32> to vector<16x64xf32>
    %350 = arith.addf %348, %349 : vector<16x64xf32>
    %351 = arith.mulf %350, %350 : vector<16x64xf32>
    %352 = arith.mulf %350, %351 : vector<16x64xf32>
    %cst_89 = arith.constant 4.471500e-02 : f32
    %353 = vector.broadcast %cst_89 : f32 to vector<16x64xf32>
    %354 = arith.mulf %353, %352 : vector<16x64xf32>
    %355 = arith.addf %350, %354 : vector<16x64xf32>
    %cst_90 = arith.constant 0.797884583 : f32
    %356 = vector.broadcast %cst_90 : f32 to vector<16x64xf32>
    %357 = arith.mulf %356, %355 : vector<16x64xf32>
    %358 = math.tanh %357 : vector<16x64xf32>
    %cst_91 = arith.constant 1.000000e+00 : f32
    %359 = vector.broadcast %cst_91 : f32 to vector<16x64xf32>
    %360 = arith.addf %359, %358 : vector<16x64xf32>
    %cst_92 = arith.constant 5.000000e-01 : f32
    %361 = vector.broadcast %cst_92 : f32 to vector<16x64xf32>
    %362 = arith.mulf %361, %360 : vector<16x64xf32>
    %363 = arith.mulf %350, %362 : vector<16x64xf32>
    %cst_93 = arith.constant dense<0.000000e+00> : vector<16x32xf32>
    %364 = tpu.matmul %363, %191, %cst_93 {dimension_numbers = #tpu.dot_dimension_numbers<[1], [0], [0], [1], [0, 0, 1, 1], [], []>} : vector<16x64xf32>, vector<64x32xf32>, vector<16x32xf32> -> vector<16x32xf32>
    %365 = vector.broadcast %201 : vector<1x32xf32> to vector<16x32xf32>
    %366 = arith.addf %364, %365 : vector<16x32xf32>
    %367 = vector.shape_cast %366 : vector<16x32xf32> to vector<2x8x32xf32>
    %368 = arith.addf %322, %367 : vector<2x8x32xf32>
    %c0_94 = arith.constant 0 : index
    %c0_95 = arith.constant 0 : index
    %c0_96 = arith.constant 0 : index
    %369 = vector.load %arg5[%c0_94, %c0_95, %c0_96] : memref<2x8x32xf32, #tpu.memory_space<vmem>>, vector<2x8x32xf32>
    tpu.vector_store %arg5[%c0_94, %c0_95, %c0_96], %368 {strides = array<i32>} : memref<2x8x32xf32, #tpu.memory_space<vmem>>, vector<2x8x32xf32>,
    return
  }
  func.func @transform_0(%arg0: i32) -> (i32, i32, i32) {
    %c0_i32 = arith.constant 0 : i32
    %c0_i32_0 = arith.constant 0 : i32
    %c0_i32_1 = arith.constant 0 : i32
    return %arg0, %c0_i32, %c0_i32_0 : i32, i32, i32
  }
  func.func @transform_1(%arg0: i32) -> (i32, i32, i32) {
    %c0_i32 = arith.constant 0 : i32
    %c0_i32_0 = arith.constant 0 : i32
    %c0_i32_1 = arith.constant 0 : i32
    %c0_i32_2 = arith.constant 0 : i32
    return %c0_i32, %c0_i32_0, %c0_i32_1 : i32, i32, i32
  }
  func.func @transform_2(%arg0: i32) -> (i32, i32, i32) {
    %c0_i32 = arith.constant 0 : i32
    %c0_i32_0 = arith.constant 0 : i32
    %c0_i32_1 = arith.constant 0 : i32
    %c0_i32_2 = arith.constant 0 : i32
    return %c0_i32, %c0_i32_0, %c0_i32_1 : i32, i32, i32
  }
  func.func @transform_3(%arg0: i32) -> (i32, i32, i32) {
    %c0_i32 = arith.constant 0 : i32
    %c0_i32_0 = arith.constant 0 : i32
    %c0_i32_1 = arith.constant 0 : i32
    %c0_i32_2 = arith.constant 0 : i32
    return %c0_i32, %c0_i32_0, %c0_i32_1 : i32, i32, i32
  }
  func.func @transform_4(%arg0: i32) -> (i32, i32, i32) {
    %c0_i32 = arith.constant 0 : i32
    %c0_i32_0 = arith.constant 0 : i32
    %c0_i32_1 = arith.constant 0 : i32
    return %arg0, %c0_i32, %c0_i32_0 : i32, i32, i32
  }
}

</mosaic_0001>

<llo_original>
// kernel: encoder_forward.1
$region0: #{encoder_forward.1}
  #allocation0 [shape = 'u32[]', space=smem, size = 0x4, offset = 0x4, fixed_abs, tag = 'smem constant byte address 0x4 - core index']
  #allocation1 [shape = 'u32[144,128]{1,0:T(1,128)}', space=vmem, size = 0x12000, scoped, tag = 'internal scratch']
  %s0 = inlined_call_operand.vmem [shape: f32[2,8,32], index: 0, kind: input, shape index: {}]
  %s1 = inlined_call_operand.vmem [shape: f32[2,32,192], index: 1, kind: input, shape index: {}]
  %s2 = inlined_call_operand.vmem [shape: f32[2,64,32], index: 2, kind: input, shape index: {}]
  %s3 = inlined_call_operand.vmem [shape: f32[2,8,96], index: 3, kind: input, shape index: {}]
  %s4 = inlined_call_operand.hbm [shape: f32[2,8,32], index: 4, kind: output, shape index: {}]
  %s5 = sld [smem:[#allocation0]]
  $region26: #{encoder_forward.1} parent=0
    _
  %s7 = ssub.s32 1, %s5
  %s8 = scalar_select 0, %s7, %s5
  $region1: #{encoder_forward.1} parent=0
    #allocation2 [shape = 'u8[8192]{0}', space=vmem, size = 0x2000, scoped, tag = 'output window, operand 0, single buffered']
    #allocation3 [shape = 's32[1]{0}', space=sflag, size = 0x4, scoped, tag = 'scoped memory for encoder_forward.1']
    %9 = vsyncpa [#allocation3], 0
    // Predicated region
    $region2: #{encoder_forward.1} parent=1 // pred_check
      _
    $region3: #{encoder_forward.1} parent=1 // pred_check_branch
      %11 = sbr.rel (0) target = $region5
    $region4: #{encoder_forward.1} parent=1 // pred_region
      _
    $region5: #{encoder_forward.1} parent=1 // pred_fallthru
      _
    // Predicated region
    $region6: #{encoder_forward.1} parent=1 // pred_check
      _
    $region7: #{encoder_forward.1} parent=1 // pred_check_branch
      %13 = sbr.rel (0) target = $region9
    $region8: #{encoder_forward.1} parent=1 // pred_region
      _
    $region9: #{encoder_forward.1} parent=1 // pred_fallthru
      _
    // Predicated region
    $region10: #{encoder_forward.1} parent=1 // pred_check
      _
    $region11: #{encoder_forward.1} parent=1 // pred_check_branch
      %15 = sbr.rel (0) target = $region13
    $region12: #{encoder_forward.1} parent=1 // pred_region
      _
    $region13: #{encoder_forward.1} parent=1 // pred_fallthru
      _
    // Predicated region
    $region14: #{encoder_forward.1} parent=1 // pred_check
      _
    $region15: #{encoder_forward.1} parent=1 // pred_check_branch
      %17 = sbr.rel (0) target = $region17
    $region16: #{encoder_forward.1} parent=1 // pred_region
      _
    $region17: #{encoder_forward.1} parent=1 // pred_fallthru
      _
    %v18 = vld [vmem:[%s0] sm:$0xff]
    %v19 = vld [vmem:[%s0 + $0x8] sm:$0xff]
    %v20 = vld [vmem:[%s1] sm:$0xff]
    %v21 = vld [vmem:[%s1 + $0x8] sm:$0xff]
    %v22 = vld [vmem:[%s1 + $0x10] sm:$0xff]
    %v23 = vld [vmem:[%s1 + $0x18] sm:$0xff]
    %v24 = vld [vmem:[%s1 + $0x20] sm:$0xff]
    %v25 = vld [vmem:[%s1 + $0x28] sm:$0xff]
    %v26 = vld [vmem:[%s1 + $0x30] sm:$0xff]
    %v27 = vld [vmem:[%s1 + $0x38] sm:$0xff]
    %v28 = vld [vmem:[%s2] sm:$0xff]
    %v29 = vld [vmem:[%s2 + $0x8] sm:$0xff]
    %v30 = vld [vmem:[%s2 + $0x10] sm:$0xff]
    %v31 = vld [vmem:[%s2 + $0x18] sm:$0xff]
    %v32 = vld [vmem:[%s2 + $0x20] sm:$0xff]
    %v33 = vld [vmem:[%s2 + $0x28] sm:$0xff]
    %v34 = vld [vmem:[%s2 + $0x30] sm:$0xff]
    %v35 = vld [vmem:[%s2 + $0x38] sm:$0xff]
    %v36 = vld [vmem:[%s3] sm:$0xff]
    %vm37 = vcmask 261120
    %v38 = vsel %vm37, %v18, 0.0
    %39 = vadd.xlane.f32.xlu0 %v38
    %v40 = vpop.xlane.xlu0 %39
    %v41 = vsel %vm37, %v19, 0.0
    %42 = vadd.xlane.f32.xlu0 %v41
    %v43 = vpop.xlane.xlu0 %42
    %v44 = vrcp.pop 32.0
    %v45 = vmul.f32 %v40, %v44
    %v46 = vmul.f32 %v43, %v44
    %v47 = vsub.f32 %v18, %v45
    %v48 = vsub.f32 %v19, %v46
    %v49 = vmul.f32 %v47, %v47
    %v50 = vmul.f32 %v48, %v48
    %v51 = vsel %vm37, %v49, 0.0
    %52 = vadd.xlane.f32.xlu0 %v51
    %v53 = vpop.xlane.xlu0 %52
    %v54 = vsel %vm37, %v50, 0.0
    %55 = vadd.xlane.f32.xlu0 %v54
    %v56 = vpop.xlane.xlu0 %55
    %v57 = vmul.f32 %v53, %v44
    %v58 = vmul.f32 %v56, %v44
    %v59 = vadd.f32 %v57, 1e-05
    %v60 = vadd.f32 %v58, 1e-05
    %v61 = vrsqrt.pop %v59
    %v62 = vrsqrt.pop %v60
    %v63 = vmul.f32 %v47, %v61
    %v64 = vmul.f32 %v48, %v62
    %v65 = vlaneseq
    %v66 = vshrl.u32 %v65, 7
    %v67 = vsub.s32 2, %v66
    %v68 = vrot.slane %v36, %v67
    %v69 = vmul.f32 %v63, %v68
    %v70 = vmul.f32 %v64, %v68
    %v71 = vlaneseq
    %v72 = vshrl.u32 %v71, 7
    %v73 = vsub.s32 3, %v72
    %v74 = vrot.slane %v36, %v73
    %v75 = vadd.f32 %v69, %v74
    %v76 = vadd.f32 %v70, %v74
    %v77 = vlaneseq
    %v78 = vshrl.u32 %v77, 7
    %v79 = vsub.s32 0, %v78
    %v80 = vrot.slane %v36, %v79
    %v82 = vsel %vm37, %v75, 0
    %v85 = vsel %vm37, %v76, 0
    %87 = vmatprep.subr.mxu0 0.0
    %88 = vmatpush1.msra.mxu0 %v20
    %89 = vmatprep.subr.mxu0 0.0
    %90 = vmatpush1.msra.mxu0 %v22
    %91 = vmatprep.subr.mxu0 0.0
    %92 = vmatpush1.msra.mxu0 %v24
    %93 = vmatprep.subr.mxu0 0.0
    %94 = vmatpush1.msra.mxu0 %v26
    %95 = vmatprep.subr.mxu0 0.0
    %96 = vmatpush1.msra.mxu0 0.0
    %97 = vmatprep.subr.mxu0 0.0
    %98 = vmatpush1.msra.mxu0 0.0
    %99 = vmatprep.subr.mxu0 0.0
    %100 = vmatpush1.msra.mxu0 0.0
    %101 = vmatprep.subr.mxu0 0.0
    %102 = vmatpush1.msra.mxu0 0.0
    %103 = vmatprep.subr.mxu0 0.0
    %104 = vmatpush1.msra.mxu0 0.0
    %105 = vmatprep.subr.mxu0 0.0
    %106 = vmatpush1.msra.mxu0 0.0
    %107 = vmatprep.subr.mxu0 0.0
    %108 = vmatpush1.msra.mxu0 0.0
    %109 = vmatprep.subr.mxu0 0.0
    %110 = vmatpush1.msra.mxu0 0.0
    %111 = vmatprep.subr.mxu0 0.0
    %112 = vmatpush1.msra.mxu0 0.0
    %113 = vmatprep.subr.mxu0 0.0
    %114 = vmatpush1.msra.mxu0 0.0
    %115 = vmatprep.subr.mxu0 0.0
    %116 = vmatpush1.msra.mxu0 0.0
    %117 = vmatprep.subr.mxu0 0.0
    %118 = vmatpush1.msra.mxu0 0.0
    %119 = vmatprep.subr.mxu0 0.0
    %120 = vmatpush1.msra.mxu0 0.0
    %121 = vmatprep.subr.mxu0 0.0
    %122 = vmatpush1.msra.mxu0 0.0
    %123 = vmatprep.subr.mxu0 0.0
    %124 = vmatpush1.msra.mxu0 0.0
    %125 = vmatprep.subr.mxu0 0.0
    %126 = vmatpush1.msra.mxu0 0.0
    %127 = vmatprep.subr.mxu0 0.0
    %128 = vmatpush1.msra.mxu0 0.0
    %129 = vmatprep.subr.mxu0 0.0
    %130 = vmatpush1.msra.mxu0 0.0
    %131 = vmatprep.subr.mxu0 0.0
    %132 = vmatpush1.msra.mxu0 0.0
    %133 = vmatprep.subr.mxu0 0.0
    %134 = vmatpush1.msra.mxu0 0.0
    %135 = vmatprep.subr.mxu0 0.0
    %136 = vmatpush1.msra.mxu0 0.0
    %137 = vmatprep.subr.mxu0 0.0
    %138 = vmatpush1.msra.mxu0 0.0
    %139 = vmatprep.subr.mxu0 0.0
    %140 = vmatpush1.msra.mxu0 0.0
    %141 = vmatprep.subr.mxu0 0.0
    %142 = vmatpush1.msra.mxu0 0.0
    %143 = vmatprep.subr.mxu0 0.0
    %144 = vmatpush1.msra.mxu0 0.0
    %145 = vmatprep.subr.mxu0 0.0
    %146 = vmatpush1.msra.mxu0 0.0
    %147 = vmatprep.subr.mxu0 0.0
    %148 = vmatpush1.msra.mxu0 0.0
    %149 = vmatprep.subr.mxu0 0.0
    %150 = vmatpush1.msra.mxu0 0.0
    %151 = vmatprep.mubr.f32.mxu0 0.0
    %152 = vmatmul.mubr.f32.gmra.mrb[0].mxu0 %v82
    %v153 = vpop.f32.mrb[0].mxu0
    %v154 = vadd.f32 %v80, %v153
    %v155 = vpop.f32.mrb[0].mxu0
    %156 = vmatprep.mubr.f32.mxu0 0.0
    %157 = vmatmul.mubr.f32.gmra.mrb[0].mxu0 %v85
    %v158 = vpop.f32.mrb[0].mxu0
    %v159 = vadd.f32 %v80, %v158
    %v160 = vpop.f32.mrb[0].mxu0
    %161 = vdwg.mxu0
    %163 = vrot.lane.b32.xlu0 %v154, 96
    %v164 = vpop.permute.xlu0 %163
    %vm165 = vcmask 64512
    %v166 = vsel %vm165, %v154, 0
    %v168 = vsel %vm165, %v164, 0
    %170 = vmatprep.subr.mxu0 0.0
    %171 = vmatpush1.xpose.msra.mxu0 %v168
    %172 = vmatprep.subr.mxu0 0.0
    %173 = vmatpush1.xpose.msra.mxu0 0.0
    %174 = vmatprep.subr.mxu0 0.0
    %175 = vmatpush1.xpose.msra.mxu0 0.0
    %176 = vmatprep.subr.mxu0 0.0
    %177 = vmatpush1.xpose.msra.mxu0 0.0
    %178 = vmatprep.subr.mxu0 0.0
    %179 = vmatpush1.xpose.msra.mxu0 0.0
    %180 = vmatprep.subr.mxu0 0.0
    %181 = vmatpush1.xpose.msra.mxu0 0.0
    %182 = vmatprep.subr.mxu0 0.0
    %183 = vmatpush1.xpose.msra.mxu0 0.0
    %184 = vmatprep.subr.mxu0 0.0
    %185 = vmatpush1.xpose.msra.mxu0 0.0
    %186 = vmatprep.subr.mxu0 0.0
    %187 = vmatpush1.xpose.msra.mxu0 0.0
    %188 = vmatprep.subr.mxu0 0.0
    %189 = vmatpush1.xpose.msra.mxu0 0.0
    %190 = vmatprep.subr.mxu0 0.0
    %191 = vmatpush1.xpose.msra.mxu0 0.0
    %192 = vmatprep.subr.mxu0 0.0
    %193 = vmatpush1.xpose.msra.mxu0 0.0
    %194 = vmatprep.subr.mxu0 0.0
    %195 = vmatpush1.xpose.msra.mxu0 0.0
    %196 = vmatprep.subr.mxu0 0.0
    %197 = vmatpush1.xpose.msra.mxu0 0.0
    %198 = vmatprep.subr.mxu0 0.0
    %199 = vmatpush1.xpose.msra.mxu0 0.0
    %200 = vmatprep.subr.mxu0 0.0
    %201 = vmatpush1.xpose.msra.mxu0 0.0
    %202 = vmatprep.subr.mxu0 0.0
    %203 = vmatpush1.xpose.msra.mxu0 0.0
    %204 = vmatprep.subr.mxu0 0.0
    %205 = vmatpush1.xpose.msra.mxu0 0.0
    %206 = vmatprep.subr.mxu0 0.0
    %207 = vmatpush1.xpose.msra.mxu0 0.0
    %208 = vmatprep.subr.mxu0 0.0
    %209 = vmatpush1.xpose.msra.mxu0 0.0
    %210 = vmatprep.subr.mxu0 0.0
    %211 = vmatpush1.xpose.msra.mxu0 0.0
    %212 = vmatprep.subr.mxu0 0.0
    %213 = vmatpush1.xpose.msra.mxu0 0.0
    %214 = vmatprep.subr.mxu0 0.0
    %215 = vmatpush1.xpose.msra.mxu0 0.0
    %216 = vmatprep.subr.mxu0 0.0
    %217 = vmatpush1.xpose.msra.mxu0 0.0
    %218 = vmatprep.subr.mxu0 0.0
    %219 = vmatpush1.xpose.msra.mxu0 0.0
    %220 = vmatprep.subr.mxu0 0.0
    %221 = vmatpush1.xpose.msra.mxu0 0.0
    %222 = vmatprep.subr.mxu0 0.0
    %223 = vmatpush1.xpose.msra.mxu0 0.0
    %224 = vmatprep.subr.mxu0 0.0
    %225 = vmatpush1.xpose.msra.mxu0 0.0
    %226 = vmatprep.subr.mxu0 0.0
    %227 = vmatpush1.xpose.msra.mxu0 0.0
    %228 = vmatprep.subr.mxu0 0.0
    %229 = vmatpush1.xpose.msra.mxu0 0.0
    %230 = vmatprep.subr.mxu0 0.0
    %231 = vmatpush1.xpose.msra.mxu0 0.0
    %232 = vmatprep.subr.mxu0 0.0
    %233 = vmatpush1.xpose.msra.mxu0 0.0
    %234 = vmatprep.mubr.f32.mxu0 0.0
    %235 = vmatmul.mubr.f32.gmra.mrb[0].mxu0 %v166
    %v236 = vpop.f32.mrb[0].mxu0
    %v237 = vadd.f32 0.0, %v236
    %v238 = vpop.f32.mrb[0].mxu0
    %239 = vdwg.mxu0
    %241 = vrot.lane.b32.xlu0 %v159, 96
    %v242 = vpop.permute.xlu0 %241
    %v243 = vsel %vm165, %v159, 0
    %v245 = vsel %vm165, %v242, 0
    %247 = vmatprep.subr.mxu0 0.0
    %248 = vmatpush1.xpose.msra.mxu0 %v245
    %249 = vmatprep.subr.mxu0 0.0
    %250 = vmatpush1.xpose.msra.mxu0 0.0
    %251 = vmatprep.subr.mxu0 0.0
    %252 = vmatpush1.xpose.msra.mxu0 0.0
    %253 = vmatprep.subr.mxu0 0.0
    %254 = vmatpush1.xpose.msra.mxu0 0.0
    %255 = vmatprep.subr.mxu0 0.0
    %256 = vmatpush1.xpose.msra.mxu0 0.0
    %257 = vmatprep.subr.mxu0 0.0
    %258 = vmatpush1.xpose.msra.mxu0 0.0
    %259 = vmatprep.subr.mxu0 0.0
    %260 = vmatpush1.xpose.msra.mxu0 0.0
    %261 = vmatprep.subr.mxu0 0.0
    %262 = vmatpush1.xpose.msra.mxu0 0.0
    %263 = vmatprep.subr.mxu0 0.0
    %264 = vmatpush1.xpose.msra.mxu0 0.0
    %265 = vmatprep.subr.mxu0 0.0
    %266 = vmatpush1.xpose.msra.mxu0 0.0
    %267 = vmatprep.subr.mxu0 0.0
    %268 = vmatpush1.xpose.msra.mxu0 0.0
    %269 = vmatprep.subr.mxu0 0.0
    %270 = vmatpush1.xpose.msra.mxu0 0.0
    %271 = vmatprep.subr.mxu0 0.0
    %272 = vmatpush1.xpose.msra.mxu0 0.0
    %273 = vmatprep.subr.mxu0 0.0
    %274 = vmatpush1.xpose.msra.mxu0 0.0
    %275 = vmatprep.subr.mxu0 0.0
    %276 = vmatpush1.xpose.msra.mxu0 0.0
    %277 = vmatprep.subr.mxu0 0.0
    %278 = vmatpush1.xpose.msra.mxu0 0.0
    %279 = vmatprep.subr.mxu0 0.0
    %280 = vmatpush1.xpose.msra.mxu0 0.0
    %281 = vmatprep.subr.mxu0 0.0
    %282 = vmatpush1.xpose.msra.mxu0 0.0
    %283 = vmatprep.subr.mxu0 0.0
    %284 = vmatpush1.xpose.msra.mxu0 0.0
    %285 = vmatprep.subr.mxu0 0.0
    %286 = vmatpush1.xpose.msra.mxu0 0.0
    %287 = vmatprep.subr.mxu0 0.0
    %288 = vmatpush1.xpose.msra.mxu0 0.0
    %289 = vmatprep.subr.mxu0 0.0
    %290 = vmatpush1.xpose.msra.mxu0 0.0
    %291 = vmatprep.subr.mxu0 0.0
    %292 = vmatpush1.xpose.msra.mxu0 0.0
    %293 = vmatprep.subr.mxu0 0.0
    %294 = vmatpush1.xpose.msra.mxu0 0.0
    %295 = vmatprep.subr.mxu0 0.0
    %296 = vmatpush1.xpose.msra.mxu0 0.0
    %297 = vmatprep.subr.mxu0 0.0
    %298 = vmatpush1.xpose.msra.mxu0 0.0
    %299 = vmatprep.subr.mxu0 0.0
    %300 = vmatpush1.xpose.msra.mxu0 0.0
    %301 = vmatprep.subr.mxu0 0.0
    %302 = vmatpush1.xpose.msra.mxu0 0.0
    %303 = vmatprep.subr.mxu0 0.0
    %304 = vmatpush1.xpose.msra.mxu0 0.0
    %305 = vmatprep.subr.mxu0 0.0
    %306 = vmatpush1.xpose.msra.mxu0 0.0
    %307 = vmatprep.subr.mxu0 0.0
    %308 = vmatpush1.xpose.msra.mxu0 0.0
    %309 = vmatprep.subr.mxu0 0.0
    %310 = vmatpush1.xpose.msra.mxu0 0.0
    %311 = vmatprep.mubr.f32.mxu0 0.0
    %312 = vmatmul.mubr.f32.gmra.mrb[0].mxu0 %v243
    %v313 = vpop.f32.mrb[0].mxu0
    %v314 = vadd.f32 0.0, %v313
    %v315 = vpop.f32.mrb[0].mxu0
    %316 = vdwg.mxu0
    %v317 = vsel %vm165, %v237, -inf
    %318 = vmax.xlane.f32.xlu0 %v317
    %v319 = vpop.xlane.xlu0 %318
    %v320 = vsel %vm165, %v314, -inf
    %321 = vmax.xlane.f32.xlu0 %v320
    %v322 = vpop.xlane.xlu0 %321
    %v323 = vsub.f32 %v237, %v319
    %v324 = vsub.f32 %v314, %v322
    %v325 = vmul.f32 %v323, 1.442695
    %v326 = vpow.pop %v325
    %v327 = vmul.f32 %v324, 1.442695
    %v328 = vpow.pop %v327
    %v329 = vsel %vm165, %v326, 0.0
    %330 = vadd.xlane.f32.xlu0 %v329
    %v331 = vpop.xlane.xlu0 %330
    %v332 = vsel %vm165, %v328, 0.0
    %333 = vadd.xlane.f32.xlu0 %v332
    %v334 = vpop.xlane.xlu0 %333
    %v335 = vrcp.pop %v331
    %v336 = vrcp.pop %v334
    %v337 = vmul.f32 %v326, %v335
    %v338 = vmul.f32 %v328, %v336
    %339 = vrot.lane.b32.xlu0 %v154, 64
    %v340 = vpop.permute.xlu0 %339
    %v343 = vsel %vm165, %v337, 0
    %345 = vmatprep.subr.mxu0 0.0
    %346 = vmatpush1.msra.mxu0 %v340
    %347 = vmatprep.subr.mxu0 0.0
    %348 = vmatpush1.msra.mxu0 0.0
    %349 = vmatprep.subr.mxu0 0.0
    %350 = vmatpush1.msra.mxu0 0.0
    %351 = vmatprep.subr.mxu0 0.0
    %352 = vmatpush1.msra.mxu0 0.0
    %353 = vmatprep.subr.mxu0 0.0
    %354 = vmatpush1.msra.mxu0 0.0
    %355 = vmatprep.subr.mxu0 0.0
    %356 = vmatpush1.msra.mxu0 0.0
    %357 = vmatprep.subr.mxu0 0.0
    %358 = vmatpush1.msra.mxu0 0.0
    %359 = vmatprep.subr.mxu0 0.0
    %360 = vmatpush1.msra.mxu0 0.0
    %361 = vmatprep.subr.mxu0 0.0
    %362 = vmatpush1.msra.mxu0 0.0
    %363 = vmatprep.subr.mxu0 0.0
    %364 = vmatpush1.msra.mxu0 0.0
    %365 = vmatprep.subr.mxu0 0.0
    %366 = vmatpush1.msra.mxu0 0.0
    %367 = vmatprep.subr.mxu0 0.0
    %368 = vmatpush1.msra.mxu0 0.0
    %369 = vmatprep.subr.mxu0 0.0
    %370 = vmatpush1.msra.mxu0 0.0
    %371 = vmatprep.subr.mxu0 0.0
    %372 = vmatpush1.msra.mxu0 0.0
    %373 = vmatprep.subr.mxu0 0.0
    %374 = vmatpush1.msra.mxu0 0.0
    %375 = vmatprep.subr.mxu0 0.0
    %376 = vmatpush1.msra.mxu0 0.0
    %377 = vmatprep.subr.mxu0 0.0
    %378 = vmatpush1.msra.mxu0 0.0
    %379 = vmatprep.subr.mxu0 0.0
    %380 = vmatpush1.msra.mxu0 0.0
    %381 = vmatprep.subr.mxu0 0.0
    %382 = vmatpush1.msra.mxu0 0.0
    %383 = vmatprep.subr.mxu0 0.0
    %384 = vmatpush1.msra.mxu0 0.0
    %385 = vmatprep.subr.mxu0 0.0
    %386 = vmatpush1.msra.mxu0 0.0
    %387 = vmatprep.subr.mxu0 0.0
    %388 = vmatpush1.msra.mxu0 0.0
    %389 = vmatprep.subr.mxu0 0.0
    %390 = vmatpush1.msra.mxu0 0.0
    %391 = vmatprep.subr.mxu0 0.0
    %392 = vmatpush1.msra.mxu0 0.0
    %393 = vmatprep.subr.mxu0 0.0
    %394 = vmatpush1.msra.mxu0 0.0
    %395 = vmatprep.subr.mxu0 0.0
    %396 = vmatpush1.msra.mxu0 0.0
    %397 = vmatprep.subr.mxu0 0.0
    %398 = vmatpush1.msra.mxu0 0.0
    %399 = vmatprep.subr.mxu0 0.0
    %400 = vmatpush1.msra.mxu0 0.0
    %401 = vmatprep.subr.mxu0 0.0
    %402 = vmatpush1.msra.mxu0 0.0
    %403 = vmatprep.subr.mxu0 0.0
    %404 = vmatpush1.msra.mxu0 0.0
    %405 = vmatprep.subr.mxu0 0.0
    %406 = vmatpush1.msra.mxu0 0.0
    %407 = vmatprep.subr.mxu0 0.0
    %408 = vmatpush1.msra.mxu0 0.0
    %409 = vmatprep.mubr.f32.mxu0 0.0
    %410 = vmatmul.mubr.f32.gmra.mrb[0].mxu0 %v343
    %v411 = vpop.f32.mrb[0].mxu0
    %v412 = vadd.f32 0.0, %v411
    %v413 = vpop.f32.mrb[0].mxu0
    %414 = vdwg.mxu0
    %415 = vrot.lane.b32.xlu0 %v159, 64
    %v416 = vpop.permute.xlu0 %415
    %v419 = vsel %vm165, %v338, 0
    %421 = vmatprep.subr.mxu0 0.0
    %422 = vmatpush1.msra.mxu0 %v416
    %423 = vmatprep.subr.mxu0 0.0
    %424 = vmatpush1.msra.mxu0 0.0
    %425 = vmatprep.subr.mxu0 0.0
    %426 = vmatpush1.msra.mxu0 0.0
    %427 = vmatprep.subr.mxu0 0.0
    %428 = vmatpush1.msra.mxu0 0.0
    %429 = vmatprep.subr.mxu0 0.0
    %430 = vmatpush1.msra.mxu0 0.0
    %431 = vmatprep.subr.mxu0 0.0
    %432 = vmatpush1.msra.mxu0 0.0
    %433 = vmatprep.subr.mxu0 0.0
    %434 = vmatpush1.msra.mxu0 0.0
    %435 = vmatprep.subr.mxu0 0.0
    %436 = vmatpush1.msra.mxu0 0.0
    %437 = vmatprep.subr.mxu0 0.0
    %438 = vmatpush1.msra.mxu0 0.0
    %439 = vmatprep.subr.mxu0 0.0
    %440 = vmatpush1.msra.mxu0 0.0
    %441 = vmatprep.subr.mxu0 0.0
    %442 = vmatpush1.msra.mxu0 0.0
    %443 = vmatprep.subr.mxu0 0.0
    %444 = vmatpush1.msra.mxu0 0.0
    %445 = vmatprep.subr.mxu0 0.0
    %446 = vmatpush1.msra.mxu0 0.0
    %447 = vmatprep.subr.mxu0 0.0
    %448 = vmatpush1.msra.mxu0 0.0
    %449 = vmatprep.subr.mxu0 0.0
    %450 = vmatpush1.msra.mxu0 0.0
    %451 = vmatprep.subr.mxu0 0.0
    %452 = vmatpush1.msra.mxu0 0.0
    %453 = vmatprep.subr.mxu0 0.0
    %454 = vmatpush1.msra.mxu0 0.0
    %455 = vmatprep.subr.mxu0 0.0
    %456 = vmatpush1.msra.mxu0 0.0
    %457 = vmatprep.subr.mxu0 0.0
    %458 = vmatpush1.msra.mxu0 0.0
    %459 = vmatprep.subr.mxu0 0.0
    %460 = vmatpush1.msra.mxu0 0.0
    %461 = vmatprep.subr.mxu0 0.0
    %462 = vmatpush1.msra.mxu0 0.0
    %463 = vmatprep.subr.mxu0 0.0
    %464 = vmatpush1.msra.mxu0 0.0
    %465 = vmatprep.subr.mxu0 0.0
    %466 = vmatpush1.msra.mxu0 0.0
    %467 = vmatprep.subr.mxu0 0.0
    %468 = vmatpush1.msra.mxu0 0.0
    %469 = vmatprep.subr.mxu0 0.0
    %470 = vmatpush1.msra.mxu0 0.0
    %471 = vmatprep.subr.mxu0 0.0
    %472 = vmatpush1.msra.mxu0 0.0
    %473 = vmatprep.subr.mxu0 0.0
    %474 = vmatpush1.msra.mxu0 0.0
    %475 = vmatprep.subr.mxu0 0.0
    %476 = vmatpush1.msra.mxu0 0.0
    %477 = vmatprep.subr.mxu0 0.0
    %478 = vmatpush1.msra.mxu0 0.0
    %479 = vmatprep.subr.mxu0 0.0
    %480 = vmatpush1.msra.mxu0 0.0
    %481 = vmatprep.subr.mxu0 0.0
    %482 = vmatpush1.msra.mxu0 0.0
    %483 = vmatprep.subr.mxu0 0.0
    %484 = vmatpush1.msra.mxu0 0.0
    %485 = vmatprep.mubr.f32.mxu0 0.0
    %486 = vmatmul.mubr.f32.gmra.mrb[0].mxu0 %v419
    %v487 = vpop.f32.mrb[0].mxu0
    %v488 = vadd.f32 0.0, %v487
    %v489 = vpop.f32.mrb[0].mxu0
    %490 = vdwg.mxu0
    %491 = vrot.lane.b32.xlu0 %v154, 120
    %v492 = vpop.permute.xlu0 %491
    %493 = vrot.lane.b32.xlu0 %v154, 88
    %v494 = vpop.permute.xlu0 %493
    %v495 = vsel %vm165, %v492, 0
    %v497 = vsel %vm165, %v494, 0
    %499 = vmatprep.subr.mxu0 0.0
    %500 = vmatpush1.xpose.msra.mxu0 %v497
    %501 = vmatprep.subr.mxu0 0.0
    %502 = vmatpush1.xpose.msra.mxu0 0.0
    %503 = vmatprep.subr.mxu0 0.0
    %504 = vmatpush1.xpose.msra.mxu0 0.0
    %505 = vmatprep.subr.mxu0 0.0
    %506 = vmatpush1.xpose.msra.mxu0 0.0
    %507 = vmatprep.subr.mxu0 0.0
    %508 = vmatpush1.xpose.msra.mxu0 0.0
    %509 = vmatprep.subr.mxu0 0.0
    %510 = vmatpush1.xpose.msra.mxu0 0.0
    %511 = vmatprep.subr.mxu0 0.0
    %512 = vmatpush1.xpose.msra.mxu0 0.0
    %513 = vmatprep.subr.mxu0 0.0
    %514 = vmatpush1.xpose.msra.mxu0 0.0
    %515 = vmatprep.subr.mxu0 0.0
    %516 = vmatpush1.xpose.msra.mxu0 0.0
    %517 = vmatprep.subr.mxu0 0.0
    %518 = vmatpush1.xpose.msra.mxu0 0.0
    %519 = vmatprep.subr.mxu0 0.0
    %520 = vmatpush1.xpose.msra.mxu0 0.0
    %521 = vmatprep.subr.mxu0 0.0
    %522 = vmatpush1.xpose.msra.mxu0 0.0
    %523 = vmatprep.subr.mxu0 0.0
    %524 = vmatpush1.xpose.msra.mxu0 0.0
    %525 = vmatprep.subr.mxu0 0.0
    %526 = vmatpush1.xpose.msra.mxu0 0.0
    %527 = vmatprep.subr.mxu0 0.0
    %528 = vmatpush1.xpose.msra.mxu0 0.0
    %529 = vmatprep.subr.mxu0 0.0
    %530 = vmatpush1.xpose.msra.mxu0 0.0
    %531 = vmatprep.subr.mxu0 0.0
    %532 = vmatpush1.xpose.msra.mxu0 0.0
    %533 = vmatprep.subr.mxu0 0.0
    %534 = vmatpush1.xpose.msra.mxu0 0.0
    %535 = vmatprep.subr.mxu0 0.0
    %536 = vmatpush1.xpose.msra.mxu0 0.0
    %537 = vmatprep.subr.mxu0 0.0
    %538 = vmatpush1.xpose.msra.mxu0 0.0
    %539 = vmatprep.subr.mxu0 0.0
    %540 = vmatpush1.xpose.msra.mxu0 0.0
    %541 = vmatprep.subr.mxu0 0.0
    %542 = vmatpush1.xpose.msra.mxu0 0.0
    %543 = vmatprep.subr.mxu0 0.0
    %544 = vmatpush1.xpose.msra.mxu0 0.0
    %545 = vmatprep.subr.mxu0 0.0
    %546 = vmatpush1.xpose.msra.mxu0 0.0
    %547 = vmatprep.subr.mxu0 0.0
    %548 = vmatpush1.xpose.msra.mxu0 0.0
    %549 = vmatprep.subr.mxu0 0.0
    %550 = vmatpush1.xpose.msra.mxu0 0.0
    %551 = vmatprep.subr.mxu0 0.0
    %552 = vmatpush1.xpose.msra.mxu0 0.0
    %553 = vmatprep.subr.mxu0 0.0
    %554 = vmatpush1.xpose.msra.mxu0 0.0
    %555 = vmatprep.subr.mxu0 0.0
    %556 = vmatpush1.xpose.msra.mxu0 0.0
    %557 = vmatprep.subr.mxu0 0.0
    %558 = vmatpush1.xpose.msra.mxu0 0.0
    %559 = vmatprep.subr.mxu0 0.0
    %560 = vmatpush1.xpose.msra.mxu0 0.0
    %561 = vmatprep.subr.mxu0 0.0
    %562 = vmatpush1.xpose.msra.mxu0 0.0
    %563 = vmatprep.mubr.f32.mxu0 0.0
    %564 = vmatmul.mubr.f32.gmra.mrb[0].mxu0 %v495
    %v565 = vpop.f32.mrb[0].mxu0
    %v566 = vadd.f32 0.0, %v565
    %v567 = vpop.f32.mrb[0].mxu0
    %568 = vdwg.mxu0
    %569 = vrot.lane.b32.xlu0 %v159, 120
    %v570 = vpop.permute.xlu0 %569
    %571 = vrot.lane.b32.xlu0 %v159, 88
    %v572 = vpop.permute.xlu0 %571
    %v573 = vsel %vm165, %v570, 0
    %v575 = vsel %vm165, %v572, 0
    %577 = vmatprep.subr.mxu0 0.0
    %578 = vmatpush1.xpose.msra.mxu0 %v575
    %579 = vmatprep.subr.mxu0 0.0
    %580 = vmatpush1.xpose.msra.mxu0 0.0
    %581 = vmatprep.subr.mxu0 0.0
    %582 = vmatpush1.xpose.msra.mxu0 0.0
    %583 = vmatprep.subr.mxu0 0.0
    %584 = vmatpush1.xpose.msra.mxu0 0.0
    %585 = vmatprep.subr.mxu0 0.0
    %586 = vmatpush1.xpose.msra.mxu0 0.0
    %587 = vmatprep.subr.mxu0 0.0
    %588 = vmatpush1.xpose.msra.mxu0 0.0
    %589 = vmatprep.subr.mxu0 0.0
    %590 = vmatpush1.xpose.msra.mxu0 0.0
    %591 = vmatprep.subr.mxu0 0.0
    %592 = vmatpush1.xpose.msra.mxu0 0.0
    %593 = vmatprep.subr.mxu0 0.0
    %594 = vmatpush1.xpose.msra.mxu0 0.0
    %595 = vmatprep.subr.mxu0 0.0
    %596 = vmatpush1.xpose.msra.mxu0 0.0
    %597 = vmatprep.subr.mxu0 0.0
    %598 = vmatpush1.xpose.msra.mxu0 0.0
    %599 = vmatprep.subr.mxu0 0.0
    %600 = vmatpush1.xpose.msra.mxu0 0.0
    %601 = vmatprep.subr.mxu0 0.0
    %602 = vmatpush1.xpose.msra.mxu0 0.0
    %603 = vmatprep.subr.mxu0 0.0
    %604 = vmatpush1.xpose.msra.mxu0 0.0
    %605 = vmatprep.subr.mxu0 0.0
    %606 = vmatpush1.xpose.msra.mxu0 0.0
    %607 = vmatprep.subr.mxu0 0.0
    %608 = vmatpush1.xpose.msra.mxu0 0.0
    %609 = vmatprep.subr.mxu0 0.0
    %610 = vmatpush1.xpose.msra.mxu0 0.0
    %611 = vmatprep.subr.mxu0 0.0
    %612 = vmatpush1.xpose.msra.mxu0 0.0
    %613 = vmatprep.subr.mxu0 0.0
    %614 = vmatpush1.xpose.msra.mxu0 0.0
    %615 = vmatprep.subr.mxu0 0.0
    %616 = vmatpush1.xpose.msra.mxu0 0.0
    %617 = vmatprep.subr.mxu0 0.0
    %618 = vmatpush1.xpose.msra.mxu0 0.0
    %619 = vmatprep.subr.mxu0 0.0
    %620 = vmatpush1.xpose.msra.mxu0 0.0
    %621 = vmatprep.subr.mxu0 0.0
    %622 = vmatpush1.xpose.msra.mxu0 0.0
    %623 = vmatprep.subr.mxu0 0.0
    %624 = vmatpush1.xpose.msra.mxu0 0.0
    %625 = vmatprep.subr.mxu0 0.0
    %626 = vmatpush1.xpose.msra.mxu0 0.0
    %627 = vmatprep.subr.mxu0 0.0
    %628 = vmatpush1.xpose.msra.mxu0 0.0
    %629 = vmatprep.subr.mxu0 0.0
    %630 = vmatpush1.xpose.msra.mxu0 0.0
    %631 = vmatprep.subr.mxu0 0.0
    %632 = vmatpush1.xpose.msra.mxu0 0.0
    %633 = vmatprep.subr.mxu0 0.0
    %634 = vmatpush1.xpose.msra.mxu0 0.0
    %635 = vmatprep.subr.mxu0 0.0
    %636 = vmatpush1.xpose.msra.mxu0 0.0
    %637 = vmatprep.subr.mxu0 0.0
    %638 = vmatpush1.xpose.msra.mxu0 0.0
    %639 = vmatprep.subr.mxu0 0.0
    %640 = vmatpush1.xpose.msra.mxu0 0.0
    %641 = vmatprep.mubr.f32.mxu0 0.0
    %642 = vmatmul.mubr.f32.gmra.mrb[0].mxu0 %v573
    %v643 = vpop.f32.mrb[0].mxu0
    %v644 = vadd.f32 0.0, %v643
    %v645 = vpop.f32.mrb[0].mxu0
    %646 = vdwg.mxu0
    %v647 = vsel %vm165, %v566, -inf
    %648 = vmax.xlane.f32.xlu0 %v647
    %v649 = vpop.xlane.xlu0 %648
    %v650 = vsel %vm165, %v644, -inf
    %651 = vmax.xlane.f32.xlu0 %v650
    %v652 = vpop.xlane.xlu0 %651
    %v653 = vsub.f32 %v566, %v649
    %v654 = vsub.f32 %v644, %v652
    %v655 = vmul.f32 %v653, 1.442695
    %v656 = vpow.pop %v655
    %v657 = vmul.f32 %v654, 1.442695
    %v658 = vpow.pop %v657
    %v659 = vsel %vm165, %v656, 0.0
    %660 = vadd.xlane.f32.xlu0 %v659
    %v661 = vpop.xlane.xlu0 %660
    %v662 = vsel %vm165, %v658, 0.0
    %663 = vadd.xlane.f32.xlu0 %v662
    %v664 = vpop.xlane.xlu0 %663
    %v665 = vrcp.pop %v661
    %v666 = vrcp.pop %v664
    %v667 = vmul.f32 %v656, %v665
    %v668 = vmul.f32 %v658, %v666
    %669 = vrot.lane.b32.xlu0 %v154, 56
    %v670 = vpop.permute.xlu0 %669
    %v673 = vsel %vm165, %v667, 0
    %675 = vmatprep.subr.mxu0 0.0
    %676 = vmatpush1.msra.mxu0 %v670
    %677 = vmatprep.subr.mxu0 0.0
    %678 = vmatpush1.msra.mxu0 0.0
    %679 = vmatprep.subr.mxu0 0.0
    %680 = vmatpush1.msra.mxu0 0.0
    %681 = vmatprep.subr.mxu0 0.0
    %682 = vmatpush1.msra.mxu0 0.0
    %683 = vmatprep.subr.mxu0 0.0
    %684 = vmatpush1.msra.mxu0 0.0
    %685 = vmatprep.subr.mxu0 0.0
    %686 = vmatpush1.msra.mxu0 0.0
    %687 = vmatprep.subr.mxu0 0.0
    %688 = vmatpush1.msra.mxu0 0.0
    %689 = vmatprep.subr.mxu0 0.0
    %690 = vmatpush1.msra.mxu0 0.0
    %691 = vmatprep.subr.mxu0 0.0
    %692 = vmatpush1.msra.mxu0 0.0
    %693 = vmatprep.subr.mxu0 0.0
    %694 = vmatpush1.msra.mxu0 0.0
    %695 = vmatprep.subr.mxu0 0.0
    %696 = vmatpush1.msra.mxu0 0.0
    %697 = vmatprep.subr.mxu0 0.0
    %698 = vmatpush1.msra.mxu0 0.0
    %699 = vmatprep.subr.mxu0 0.0
    %700 = vmatpush1.msra.mxu0 0.0
    %701 = vmatprep.subr.mxu0 0.0
    %702 = vmatpush1.msra.mxu0 0.0
    %703 = vmatprep.subr.mxu0 0.0
    %704 = vmatpush1.msra.mxu0 0.0
    %705 = vmatprep.subr.mxu0 0.0
    %706 = vmatpush1.msra.mxu0 0.0
    %707 = vmatprep.subr.mxu0 0.0
    %708 = vmatpush1.msra.mxu0 0.0
    %709 = vmatprep.subr.mxu0 0.0
    %710 = vmatpush1.msra.mxu0 0.0
    %711 = vmatprep.subr.mxu0 0.0
    %712 = vmatpush1.msra.mxu0 0.0
    %713 = vmatprep.subr.mxu0 0.0
    %714 = vmatpush1.msra.mxu0 0.0
    %715 = vmatprep.subr.mxu0 0.0
    %716 = vmatpush1.msra.mxu0 0.0
    %717 = vmatprep.subr.mxu0 0.0
    %718 = vmatpush1.msra.mxu0 0.0
    %719 = vmatprep.subr.mxu0 0.0
    %720 = vmatpush1.msra.mxu0 0.0
    %721 = vmatprep.subr.mxu0 0.0
    %722 = vmatpush1.msra.mxu0 0.0
    %723 = vmatprep.subr.mxu0 0.0
    %724 = vmatpush1.msra.mxu0 0.0
    %725 = vmatprep.subr.mxu0 0.0
    %726 = vmatpush1.msra.mxu0 0.0
    %727 = vmatprep.subr.mxu0 0.0
    %728 = vmatpush1.msra.mxu0 0.0
    %729 = vmatprep.subr.mxu0 0.0
    %730 = vmatpush1.msra.mxu0 0.0
    %731 = vmatprep.subr.mxu0 0.0
    %732 = vmatpush1.msra.mxu0 0.0
    %733 = vmatprep.subr.mxu0 0.0
    %734 = vmatpush1.msra.mxu0 0.0
    %735 = vmatprep.subr.mxu0 0.0
    %736 = vmatpush1.msra.mxu0 0.0
    %737 = vmatprep.subr.mxu0 0.0
    %738 = vmatpush1.msra.mxu0 0.0
    %739 = vmatprep.mubr.f32.mxu0 0.0
    %740 = vmatmul.mubr.f32.gmra.mrb[0].mxu0 %v673
    %v741 = vpop.f32.mrb[0].mxu0
    %v742 = vadd.f32 0.0, %v741
    %v743 = vpop.f32.mrb[0].mxu0
    %744 = vdwg.mxu0
    %745 = vrot.lane.b32.xlu0 %v159, 56
    %v746 = vpop.permute.xlu0 %745
    %v749 = vsel %vm165, %v668, 0
    %751 = vmatprep.subr.mxu0 0.0
    %752 = vmatpush1.msra.mxu0 %v746
    %753 = vmatprep.subr.mxu0 0.0
    %754 = vmatpush1.msra.mxu0 0.0
    %755 = vmatprep.subr.mxu0 0.0
    %756 = vmatpush1.msra.mxu0 0.0
    %757 = vmatprep.subr.mxu0 0.0
    %758 = vmatpush1.msra.mxu0 0.0
    %759 = vmatprep.subr.mxu0 0.0
    %760 = vmatpush1.msra.mxu0 0.0
    %761 = vmatprep.subr.mxu0 0.0
    %762 = vmatpush1.msra.mxu0 0.0
    %763 = vmatprep.subr.mxu0 0.0
    %764 = vmatpush1.msra.mxu0 0.0
    %765 = vmatprep.subr.mxu0 0.0
    %766 = vmatpush1.msra.mxu0 0.0
    %767 = vmatprep.subr.mxu0 0.0
    %768 = vmatpush1.msra.mxu0 0.0
    %769 = vmatprep.subr.mxu0 0.0
    %770 = vmatpush1.msra.mxu0 0.0
    %771 = vmatprep.subr.mxu0 0.0
    %772 = vmatpush1.msra.mxu0 0.0
    %773 = vmatprep.subr.mxu0 0.0
    %774 = vmatpush1.msra.mxu0 0.0
    %775 = vmatprep.subr.mxu0 0.0
    %776 = vmatpush1.msra.mxu0 0.0
    %777 = vmatprep.subr.mxu0 0.0
    %778 = vmatpush1.msra.mxu0 0.0
    %779 = vmatprep.subr.mxu0 0.0
    %780 = vmatpush1.msra.mxu0 0.0
    %781 = vmatprep.subr.mxu0 0.0
    %782 = vmatpush1.msra.mxu0 0.0
    %783 = vmatprep.subr.mxu0 0.0
    %784 = vmatpush1.msra.mxu0 0.0
    %785 = vmatprep.subr.mxu0 0.0
    %786 = vmatpush1.msra.mxu0 0.0
    %787 = vmatprep.subr.mxu0 0.0
    %788 = vmatpush1.msra.mxu0 0.0
    %789 = vmatprep.subr.mxu0 0.0
    %790 = vmatpush1.msra.mxu0 0.0
    %791 = vmatprep.subr.mxu0 0.0
    %792 = vmatpush1.msra.mxu0 0.0
    %793 = vmatprep.subr.mxu0 0.0
    %794 = vmatpush1.msra.mxu0 0.0
    %795 = vmatprep.subr.mxu0 0.0
    %796 = vmatpush1.msra.mxu0 0.0
    %797 = vmatprep.subr.mxu0 0.0
    %798 = vmatpush1.msra.mxu0 0.0
    %799 = vmatprep.subr.mxu0 0.0
    %800 = vmatpush1.msra.mxu0 0.0
    %801 = vmatprep.subr.mxu0 0.0
    %802 = vmatpush1.msra.mxu0 0.0
    %803 = vmatprep.subr.mxu0 0.0
    %804 = vmatpush1.msra.mxu0 0.0
    %805 = vmatprep.subr.mxu0 0.0
    %806 = vmatpush1.msra.mxu0 0.0
    %807 = vmatprep.subr.mxu0 0.0
    %808 = vmatpush1.msra.mxu0 0.0
    %809 = vmatprep.subr.mxu0 0.0
    %810 = vmatpush1.msra.mxu0 0.0
    %811 = vmatprep.subr.mxu0 0.0
    %812 = vmatpush1.msra.mxu0 0.0
    %813 = vmatprep.subr.mxu0 0.0
    %814 = vmatpush1.msra.mxu0 0.0
    %815 = vmatprep.mubr.f32.mxu0 0.0
    %816 = vmatmul.mubr.f32.gmra.mrb[0].mxu0 %v749
    %v817 = vpop.f32.mrb[0].mxu0
    %v818 = vadd.f32 0.0, %v817
    %v819 = vpop.f32.mrb[0].mxu0
    %820 = vdwg.mxu0
    %822 = vrot.lane.b32.xlu0 %v22, 32
    %v823 = vpop.permute.xlu0 %822
    %v826 = vsel %vm165, %v742, 0
    %v829 = vsel %vm165, %v818, 0
    %831 = vmatprep.subr.mxu0 0.0
    %832 = vmatpush1.msra.mxu0 %v823
    %833 = vmatprep.subr.mxu0 0.0
    %834 = vmatpush1.msra.mxu0 0.0
    %835 = vmatprep.subr.mxu0 0.0
    %836 = vmatpush1.msra.mxu0 0.0
    %837 = vmatprep.subr.mxu0 0.0
    %838 = vmatpush1.msra.mxu0 0.0
    %839 = vmatprep.subr.mxu0 0.0
    %840 = vmatpush1.msra.mxu0 0.0
    %841 = vmatprep.subr.mxu0 0.0
    %842 = vmatpush1.msra.mxu0 0.0
    %843 = vmatprep.subr.mxu0 0.0
    %844 = vmatpush1.msra.mxu0 0.0
    %845 = vmatprep.subr.mxu0 0.0
    %846 = vmatpush1.msra.mxu0 0.0
    %847 = vmatprep.subr.mxu0 0.0
    %848 = vmatpush1.msra.mxu0 0.0
    %849 = vmatprep.subr.mxu0 0.0
    %850 = vmatpush1.msra.mxu0 0.0
    %851 = vmatprep.subr.mxu0 0.0
    %852 = vmatpush1.msra.mxu0 0.0
    %853 = vmatprep.subr.mxu0 0.0
    %854 = vmatpush1.msra.mxu0 0.0
    %855 = vmatprep.subr.mxu0 0.0
    %856 = vmatpush1.msra.mxu0 0.0
    %857 = vmatprep.subr.mxu0 0.0
    %858 = vmatpush1.msra.mxu0 0.0
    %859 = vmatprep.subr.mxu0 0.0
    %860 = vmatpush1.msra.mxu0 0.0
    %861 = vmatprep.subr.mxu0 0.0
    %862 = vmatpush1.msra.mxu0 0.0
    %863 = vmatprep.subr.mxu0 0.0
    %864 = vmatpush1.msra.mxu0 0.0
    %865 = vmatprep.subr.mxu0 0.0
    %866 = vmatpush1.msra.mxu0 0.0
    %867 = vmatprep.subr.mxu0 0.0
    %868 = vmatpush1.msra.mxu0 0.0
    %869 = vmatprep.subr.mxu0 0.0
    %870 = vmatpush1.msra.mxu0 0.0
    %871 = vmatprep.subr.mxu0 0.0
    %872 = vmatpush1.msra.mxu0 0.0
    %873 = vmatprep.subr.mxu0 0.0
    %874 = vmatpush1.msra.mxu0 0.0
    %875 = vmatprep.subr.mxu0 0.0
    %876 = vmatpush1.msra.mxu0 0.0
    %877 = vmatprep.subr.mxu0 0.0
    %878 = vmatpush1.msra.mxu0 0.0
    %879 = vmatprep.subr.mxu0 0.0
    %880 = vmatpush1.msra.mxu0 0.0
    %881 = vmatprep.subr.mxu0 0.0
    %882 = vmatpush1.msra.mxu0 0.0
    %883 = vmatprep.subr.mxu0 0.0
    %884 = vmatpush1.msra.mxu0 0.0
    %885 = vmatprep.subr.mxu0 0.0
    %886 = vmatpush1.msra.mxu0 0.0
    %887 = vmatprep.subr.mxu0 0.0
    %888 = vmatpush1.msra.mxu0 0.0
    %889 = vmatprep.subr.mxu0 0.0
    %890 = vmatpush1.msra.mxu0 0.0
    %891 = vmatprep.subr.mxu0 0.0
    %892 = vmatpush1.msra.mxu0 0.0
    %893 = vmatprep.subr.mxu0 0.0
    %894 = vmatpush1.msra.mxu0 0.0
    %895 = vmatprep.mubr.f32.mxu0 0.0
    %896 = vmatmul.mubr.f32.gmra.mrb[0].mxu0 %v826
    %v897 = vpop.f32.mrb[0].mxu0
    %v898 = vadd.f32 0.0, %v897
    %v899 = vpop.f32.mrb[0].mxu0
    %900 = vmatprep.mubr.f32.mxu0 0.0
    %901 = vmatmul.mubr.f32.gmra.mrb[0].mxu0 %v829
    %v902 = vpop.f32.mrb[0].mxu0
    %v903 = vadd.f32 0.0, %v902
    %v904 = vpop.f32.mrb[0].mxu0
    %905 = vdwg.mxu0
    %907 = vrot.lane.b32.xlu0 %v20, 32
    %v908 = vpop.permute.xlu0 %907
    %v911 = vsel %vm165, %v412, 0
    %v914 = vsel %vm165, %v488, 0
    %916 = vmatprep.subr.mxu0 0.0
    %917 = vmatpush1.msra.mxu0 %v908
    %918 = vmatprep.subr.mxu0 0.0
    %919 = vmatpush1.msra.mxu0 0.0
    %920 = vmatprep.subr.mxu0 0.0
    %921 = vmatpush1.msra.mxu0 0.0
    %922 = vmatprep.subr.mxu0 0.0
    %923 = vmatpush1.msra.mxu0 0.0
    %924 = vmatprep.subr.mxu0 0.0
    %925 = vmatpush1.msra.mxu0 0.0
    %926 = vmatprep.subr.mxu0 0.0
    %927 = vmatpush1.msra.mxu0 0.0
    %928 = vmatprep.subr.mxu0 0.0
    %929 = vmatpush1.msra.mxu0 0.0
    %930 = vmatprep.subr.mxu0 0.0
    %931 = vmatpush1.msra.mxu0 0.0
    %932 = vmatprep.subr.mxu0 0.0
    %933 = vmatpush1.msra.mxu0 0.0
    %934 = vmatprep.subr.mxu0 0.0
    %935 = vmatpush1.msra.mxu0 0.0
    %936 = vmatprep.subr.mxu0 0.0
    %937 = vmatpush1.msra.mxu0 0.0
    %938 = vmatprep.subr.mxu0 0.0
    %939 = vmatpush1.msra.mxu0 0.0
    %940 = vmatprep.subr.mxu0 0.0
    %941 = vmatpush1.msra.mxu0 0.0
    %942 = vmatprep.subr.mxu0 0.0
    %943 = vmatpush1.msra.mxu0 0.0
    %944 = vmatprep.subr.mxu0 0.0
    %945 = vmatpush1.msra.mxu0 0.0
    %946 = vmatprep.subr.mxu0 0.0
    %947 = vmatpush1.msra.mxu0 0.0
    %948 = vmatprep.subr.mxu0 0.0
    %949 = vmatpush1.msra.mxu0 0.0
    %950 = vmatprep.subr.mxu0 0.0
    %951 = vmatpush1.msra.mxu0 0.0
    %952 = vmatprep.subr.mxu0 0.0
    %953 = vmatpush1.msra.mxu0 0.0
    %954 = vmatprep.subr.mxu0 0.0
    %955 = vmatpush1.msra.mxu0 0.0
    %956 = vmatprep.subr.mxu0 0.0
    %957 = vmatpush1.msra.mxu0 0.0
    %958 = vmatprep.subr.mxu0 0.0
    %959 = vmatpush1.msra.mxu0 0.0
    %960 = vmatprep.subr.mxu0 0.0
    %961 = vmatpush1.msra.mxu0 0.0
    %962 = vmatprep.subr.mxu0 0.0
    %963 = vmatpush1.msra.mxu0 0.0
    %964 = vmatprep.subr.mxu0 0.0
    %965 = vmatpush1.msra.mxu0 0.0
    %966 = vmatprep.subr.mxu0 0.0
    %967 = vmatpush1.msra.mxu0 0.0
    %968 = vmatprep.subr.mxu0 0.0
    %969 = vmatpush1.msra.mxu0 0.0
    %970 = vmatprep.subr.mxu0 0.0
    %971 = vmatpush1.msra.mxu0 0.0
    %972 = vmatprep.subr.mxu0 0.0
    %973 = vmatpush1.msra.mxu0 0.0
    %974 = vmatprep.subr.mxu0 0.0
    %975 = vmatpush1.msra.mxu0 0.0
    %976 = vmatprep.subr.mxu0 0.0
    %977 = vmatpush1.msra.mxu0 0.0
    %978 = vmatprep.subr.mxu0 0.0
    %979 = vmatpush1.msra.mxu0 0.0
    %980 = vmatprep.mubr.f32.mxu0 0.0
    %981 = vmatmul.mubr.f32.gmra.mrb[0].mxu0 %v911
    %v982 = vpop.f32.mrb[0].mxu0
    %v983 = vadd.f32 %v898, %v982
    %v984 = vpop.f32.mrb[0].mxu0
    %985 = vmatprep.mubr.f32.mxu0 0.0
    %986 = vmatmul.mubr.f32.gmra.mrb[0].mxu0 %v914
    %v987 = vpop.f32.mrb[0].mxu0
    %v988 = vadd.f32 %v903, %v987
    %v989 = vpop.f32.mrb[0].mxu0
    %990 = vdwg.mxu0
    %991 = vrot.lane.b32.xlu0 %v154, 112
    %v992 = vpop.permute.xlu0 %991
    %993 = vrot.lane.b32.xlu0 %v154, 80
    %v994 = vpop.permute.xlu0 %993
    %v995 = vsel %vm165, %v992, 0
    %v997 = vsel %vm165, %v994, 0
    %999 = vmatprep.subr.mxu0 0.0
    %1000 = vmatpush1.xpose.msra.mxu0 %v997
    %1001 = vmatprep.subr.mxu0 0.0
    %1002 = vmatpush1.xpose.msra.mxu0 0.0
    %1003 = vmatprep.subr.mxu0 0.0
    %1004 = vmatpush1.xpose.msra.mxu0 0.0
    %1005 = vmatprep.subr.mxu0 0.0
    %1006 = vmatpush1.xpose.msra.mxu0 0.0
    %1007 = vmatprep.subr.mxu0 0.0
    %1008 = vmatpush1.xpose.msra.mxu0 0.0
    %1009 = vmatprep.subr.mxu0 0.0
    %1010 = vmatpush1.xpose.msra.mxu0 0.0
    %1011 = vmatprep.subr.mxu0 0.0
    %1012 = vmatpush1.xpose.msra.mxu0 0.0
    %1013 = vmatprep.subr.mxu0 0.0
    %1014 = vmatpush1.xpose.msra.mxu0 0.0
    %1015 = vmatprep.subr.mxu0 0.0
    %1016 = vmatpush1.xpose.msra.mxu0 0.0
    %1017 = vmatprep.subr.mxu0 0.0
    %1018 = vmatpush1.xpose.msra.mxu0 0.0
    %1019 = vmatprep.subr.mxu0 0.0
    %1020 = vmatpush1.xpose.msra.mxu0 0.0
    %1021 = vmatprep.subr.mxu0 0.0
    %1022 = vmatpush1.xpose.msra.mxu0 0.0
    %1023 = vmatprep.subr.mxu0 0.0
    %1024 = vmatpush1.xpose.msra.mxu0 0.0
    %1025 = vmatprep.subr.mxu0 0.0
    %1026 = vmatpush1.xpose.msra.mxu0 0.0
    %1027 = vmatprep.subr.mxu0 0.0
    %1028 = vmatpush1.xpose.msra.mxu0 0.0
    %1029 = vmatprep.subr.mxu0 0.0
    %1030 = vmatpush1.xpose.msra.mxu0 0.0
    %1031 = vmatprep.subr.mxu0 0.0
    %1032 = vmatpush1.xpose.msra.mxu0 0.0
    %1033 = vmatprep.subr.mxu0 0.0
    %1034 = vmatpush1.xpose.msra.mxu0 0.0
    %1035 = vmatprep.subr.mxu0 0.0
    %1036 = vmatpush1.xpose.msra.mxu0 0.0
    %1037 = vmatprep.subr.mxu0 0.0
    %1038 = vmatpush1.xpose.msra.mxu0 0.0
    %1039 = vmatprep.subr.mxu0 0.0
    %1040 = vmatpush1.xpose.msra.mxu0 0.0
    %1041 = vmatprep.subr.mxu0 0.0
    %1042 = vmatpush1.xpose.msra.mxu0 0.0
    %1043 = vmatprep.subr.mxu0 0.0
    %1044 = vmatpush1.xpose.msra.mxu0 0.0
    %1045 = vmatprep.subr.mxu0 0.0
    %1046 = vmatpush1.xpose.msra.mxu0 0.0
    %1047 = vmatprep.subr.mxu0 0.0
    %1048 = vmatpush1.xpose.msra.mxu0 0.0
    %1049 = vmatprep.subr.mxu0 0.0
    %1050 = vmatpush1.xpose.msra.mxu0 0.0
    %1051 = vmatprep.subr.mxu0 0.0
    %1052 = vmatpush1.xpose.msra.mxu0 0.0
    %1053 = vmatprep.subr.mxu0 0.0
    %1054 = vmatpush1.xpose.msra.mxu0 0.0
    %1055 = vmatprep.subr.mxu0 0.0
    %1056 = vmatpush1.xpose.msra.mxu0 0.0
    %1057 = vmatprep.subr.mxu0 0.0
    %1058 = vmatpush1.xpose.msra.mxu0 0.0
    %1059 = vmatprep.subr.mxu0 0.0
    %1060 = vmatpush1.xpose.msra.mxu0 0.0
    %1061 = vmatprep.subr.mxu0 0.0
    %1062 = vmatpush1.xpose.msra.mxu0 0.0
    %1063 = vmatprep.mubr.f32.mxu0 0.0
    %1064 = vmatmul.mubr.f32.gmra.mrb[0].mxu0 %v995
    %v1065 = vpop.f32.mrb[0].mxu0
    %v1066 = vadd.f32 0.0, %v1065
    %v1067 = vpop.f32.mrb[0].mxu0
    %1068 = vdwg.mxu0
    %1069 = vrot.lane.b32.xlu0 %v159, 112
    %v1070 = vpop.permute.xlu0 %1069
    %1071 = vrot.lane.b32.xlu0 %v159, 80
    %v1072 = vpop.permute.xlu0 %1071
    %v1073 = vsel %vm165, %v1070, 0
    %v1075 = vsel %vm165, %v1072, 0
    %1077 = vmatprep.subr.mxu0 0.0
    %1078 = vmatpush1.xpose.msra.mxu0 %v1075
    %1079 = vmatprep.subr.mxu0 0.0
    %1080 = vmatpush1.xpose.msra.mxu0 0.0
    %1081 = vmatprep.subr.mxu0 0.0
    %1082 = vmatpush1.xpose.msra.mxu0 0.0
    %1083 = vmatprep.subr.mxu0 0.0
    %1084 = vmatpush1.xpose.msra.mxu0 0.0
    %1085 = vmatprep.subr.mxu0 0.0
    %1086 = vmatpush1.xpose.msra.mxu0 0.0
    %1087 = vmatprep.subr.mxu0 0.0
    %1088 = vmatpush1.xpose.msra.mxu0 0.0
    %1089 = vmatprep.subr.mxu0 0.0
    %1090 = vmatpush1.xpose.msra.mxu0 0.0
    %1091 = vmatprep.subr.mxu0 0.0
    %1092 = vmatpush1.xpose.msra.mxu0 0.0
    %1093 = vmatprep.subr.mxu0 0.0
    %1094 = vmatpush1.xpose.msra.mxu0 0.0
    %1095 = vmatprep.subr.mxu0 0.0
    %1096 = vmatpush1.xpose.msra.mxu0 0.0
    %1097 = vmatprep.subr.mxu0 0.0
    %1098 = vmatpush1.xpose.msra.mxu0 0.0
    %1099 = vmatprep.subr.mxu0 0.0
    %1100 = vmatpush1.xpose.msra.mxu0 0.0
    %1101 = vmatprep.subr.mxu0 0.0
    %1102 = vmatpush1.xpose.msra.mxu0 0.0
    %1103 = vmatprep.subr.mxu0 0.0
    %1104 = vmatpush1.xpose.msra.mxu0 0.0
    %1105 = vmatprep.subr.mxu0 0.0
    %1106 = vmatpush1.xpose.msra.mxu0 0.0
    %1107 = vmatprep.subr.mxu0 0.0
    %1108 = vmatpush1.xpose.msra.mxu0 0.0
    %1109 = vmatprep.subr.mxu0 0.0
    %1110 = vmatpush1.xpose.msra.mxu0 0.0
    %1111 = vmatprep.subr.mxu0 0.0
    %1112 = vmatpush1.xpose.msra.mxu0 0.0
    %1113 = vmatprep.subr.mxu0 0.0
    %1114 = vmatpush1.xpose.msra.mxu0 0.0
    %1115 = vmatprep.subr.mxu0 0.0
    %1116 = vmatpush1.xpose.msra.mxu0 0.0
    %1117 = vmatprep.subr.mxu0 0.0
    %1118 = vmatpush1.xpose.msra.mxu0 0.0
    %1119 = vmatprep.subr.mxu0 0.0
    %1120 = vmatpush1.xpose.msra.mxu0 0.0
    %1121 = vmatprep.subr.mxu0 0.0
    %1122 = vmatpush1.xpose.msra.mxu0 0.0
    %1123 = vmatprep.subr.mxu0 0.0
    %1124 = vmatpush1.xpose.msra.mxu0 0.0
    %1125 = vmatprep.subr.mxu0 0.0
    %1126 = vmatpush1.xpose.msra.mxu0 0.0
    %1127 = vmatprep.subr.mxu0 0.0
    %1128 = vmatpush1.xpose.msra.mxu0 0.0
    %1129 = vmatprep.subr.mxu0 0.0
    %1130 = vmatpush1.xpose.msra.mxu0 0.0
    %1131 = vmatprep.subr.mxu0 0.0
    %1132 = vmatpush1.xpose.msra.mxu0 0.0
    %1133 = vmatprep.subr.mxu0 0.0
    %1134 = vmatpush1.xpose.msra.mxu0 0.0
    %1135 = vmatprep.subr.mxu0 0.0
    %1136 = vmatpush1.xpose.msra.mxu0 0.0
    %1137 = vmatprep.subr.mxu0 0.0
    %1138 = vmatpush1.xpose.msra.mxu0 0.0
    %1139 = vmatprep.subr.mxu0 0.0
    %1140 = vmatpush1.xpose.msra.mxu0 0.0
    %1141 = vmatprep.mubr.f32.mxu0 0.0
    %1142 = vmatmul.mubr.f32.gmra.mrb[0].mxu0 %v1073
    %v1143 = vpop.f32.mrb[0].mxu0
    %v1144 = vadd.f32 0.0, %v1143
    %v1145 = vpop.f32.mrb[0].mxu0
    %1146 = vdwg.mxu0
    %v1147 = vsel %vm165, %v1066, -inf
    %1148 = vmax.xlane.f32.xlu0 %v1147
    %v1149 = vpop.xlane.xlu0 %1148
    %v1150 = vsel %vm165, %v1144, -inf
    %1151 = vmax.xlane.f32.xlu0 %v1150
    %v1152 = vpop.xlane.xlu0 %1151
    %v1153 = vsub.f32 %v1066, %v1149
    %v1154 = vsub.f32 %v1144, %v1152
    %v1155 = vmul.f32 %v1153, 1.442695
    %v1156 = vpow.pop %v1155
    %v1157 = vmul.f32 %v1154, 1.442695
    %v1158 = vpow.pop %v1157
    %v1159 = vsel %vm165, %v1156, 0.0
    %1160 = vadd.xlane.f32.xlu0 %v1159
    %v1161 = vpop.xlane.xlu0 %1160
    %v1162 = vsel %vm165, %v1158, 0.0
    %1163 = vadd.xlane.f32.xlu0 %v1162
    %v1164 = vpop.xlane.xlu0 %1163
    %v1165 = vrcp.pop %v1161
    %v1166 = vrcp.pop %v1164
    %v1167 = vmul.f32 %v1156, %v1165
    %v1168 = vmul.f32 %v1158, %v1166
    %1169 = vrot.lane.b32.xlu0 %v154, 48
    %v1170 = vpop.permute.xlu0 %1169
    %v1173 = vsel %vm165, %v1167, 0
    %1175 = vmatprep.subr.mxu0 0.0
    %1176 = vmatpush1.msra.mxu0 %v1170
    %1177 = vmatprep.subr.mxu0 0.0
    %1178 = vmatpush1.msra.mxu0 0.0
    %1179 = vmatprep.subr.mxu0 0.0
    %1180 = vmatpush1.msra.mxu0 0.0
    %1181 = vmatprep.subr.mxu0 0.0
    %1182 = vmatpush1.msra.mxu0 0.0
    %1183 = vmatprep.subr.mxu0 0.0
    %1184 = vmatpush1.msra.mxu0 0.0
    %1185 = vmatprep.subr.mxu0 0.0
    %1186 = vmatpush1.msra.mxu0 0.0
    %1187 = vmatprep.subr.mxu0 0.0
    %1188 = vmatpush1.msra.mxu0 0.0
    %1189 = vmatprep.subr.mxu0 0.0
    %1190 = vmatpush1.msra.mxu0 0.0
    %1191 = vmatprep.subr.mxu0 0.0
    %1192 = vmatpush1.msra.mxu0 0.0
    %1193 = vmatprep.subr.mxu0 0.0
    %1194 = vmatpush1.msra.mxu0 0.0
    %1195 = vmatprep.subr.mxu0 0.0
    %1196 = vmatpush1.msra.mxu0 0.0
    %1197 = vmatprep.subr.mxu0 0.0
    %1198 = vmatpush1.msra.mxu0 0.0
    %1199 = vmatprep.subr.mxu0 0.0
    %1200 = vmatpush1.msra.mxu0 0.0
    %1201 = vmatprep.subr.mxu0 0.0
    %1202 = vmatpush1.msra.mxu0 0.0
    %1203 = vmatprep.subr.mxu0 0.0
    %1204 = vmatpush1.msra.mxu0 0.0
    %1205 = vmatprep.subr.mxu0 0.0
    %1206 = vmatpush1.msra.mxu0 0.0
    %1207 = vmatprep.subr.mxu0 0.0
    %1208 = vmatpush1.msra.mxu0 0.0
    %1209 = vmatprep.subr.mxu0 0.0
    %1210 = vmatpush1.msra.mxu0 0.0
    %1211 = vmatprep.subr.mxu0 0.0
    %1212 = vmatpush1.msra.mxu0 0.0
    %1213 = vmatprep.subr.mxu0 0.0
    %1214 = vmatpush1.msra.mxu0 0.0
    %1215 = vmatprep.subr.mxu0 0.0
    %1216 = vmatpush1.msra.mxu0 0.0
    %1217 = vmatprep.subr.mxu0 0.0
    %1218 = vmatpush1.msra.mxu0 0.0
    %1219 = vmatprep.subr.mxu0 0.0
    %1220 = vmatpush1.msra.mxu0 0.0
    %1221 = vmatprep.subr.mxu0 0.0
    %1222 = vmatpush1.msra.mxu0 0.0
    %1223 = vmatprep.subr.mxu0 0.0
    %1224 = vmatpush1.msra.mxu0 0.0
    %1225 = vmatprep.subr.mxu0 0.0
    %1226 = vmatpush1.msra.mxu0 0.0
    %1227 = vmatprep.subr.mxu0 0.0
    %1228 = vmatpush1.msra.mxu0 0.0
    %1229 = vmatprep.subr.mxu0 0.0
    %1230 = vmatpush1.msra.mxu0 0.0
    %1231 = vmatprep.subr.mxu0 0.0
    %1232 = vmatpush1.msra.mxu0 0.0
    %1233 = vmatprep.subr.mxu0 0.0
    %1234 = vmatpush1.msra.mxu0 0.0
    %1235 = vmatprep.subr.mxu0 0.0
    %1236 = vmatpush1.msra.mxu0 0.0
    %1237 = vmatprep.subr.mxu0 0.0
    %1238 = vmatpush1.msra.mxu0 0.0
    %1239 = vmatprep.mubr.f32.mxu0 0.0
    %1240 = vmatmul.mubr.f32.gmra.mrb[0].mxu0 %v1173
    %v1241 = vpop.f32.mrb[0].mxu0
    %v1242 = vadd.f32 0.0, %v1241
    %v1243 = vpop.f32.mrb[0].mxu0
    %1244 = vdwg.mxu0
    %1245 = vrot.lane.b32.xlu0 %v159, 48
    %v1246 = vpop.permute.xlu0 %1245
    %v1249 = vsel %vm165, %v1168, 0
    %1251 = vmatprep.subr.mxu0 0.0
    %1252 = vmatpush1.msra.mxu0 %v1246
    %1253 = vmatprep.subr.mxu0 0.0
    %1254 = vmatpush1.msra.mxu0 0.0
    %1255 = vmatprep.subr.mxu0 0.0
    %1256 = vmatpush1.msra.mxu0 0.0
    %1257 = vmatprep.subr.mxu0 0.0
    %1258 = vmatpush1.msra.mxu0 0.0
    %1259 = vmatprep.subr.mxu0 0.0
    %1260 = vmatpush1.msra.mxu0 0.0
    %1261 = vmatprep.subr.mxu0 0.0
    %1262 = vmatpush1.msra.mxu0 0.0
    %1263 = vmatprep.subr.mxu0 0.0
    %1264 = vmatpush1.msra.mxu0 0.0
    %1265 = vmatprep.subr.mxu0 0.0
    %1266 = vmatpush1.msra.mxu0 0.0
    %1267 = vmatprep.subr.mxu0 0.0
    %1268 = vmatpush1.msra.mxu0 0.0
    %1269 = vmatprep.subr.mxu0 0.0
    %1270 = vmatpush1.msra.mxu0 0.0
    %1271 = vmatprep.subr.mxu0 0.0
    %1272 = vmatpush1.msra.mxu0 0.0
    %1273 = vmatprep.subr.mxu0 0.0
    %1274 = vmatpush1.msra.mxu0 0.0
    %1275 = vmatprep.subr.mxu0 0.0
    %1276 = vmatpush1.msra.mxu0 0.0
    %1277 = vmatprep.subr.mxu0 0.0
    %1278 = vmatpush1.msra.mxu0 0.0
    %1279 = vmatprep.subr.mxu0 0.0
    %1280 = vmatpush1.msra.mxu0 0.0
    %1281 = vmatprep.subr.mxu0 0.0
    %1282 = vmatpush1.msra.mxu0 0.0
    %1283 = vmatprep.subr.mxu0 0.0
    %1284 = vmatpush1.msra.mxu0 0.0
    %1285 = vmatprep.subr.mxu0 0.0
    %1286 = vmatpush1.msra.mxu0 0.0
    %1287 = vmatprep.subr.mxu0 0.0
    %1288 = vmatpush1.msra.mxu0 0.0
    %1289 = vmatprep.subr.mxu0 0.0
    %1290 = vmatpush1.msra.mxu0 0.0
    %1291 = vmatprep.subr.mxu0 0.0
    %1292 = vmatpush1.msra.mxu0 0.0
    %1293 = vmatprep.subr.mxu0 0.0
    %1294 = vmatpush1.msra.mxu0 0.0
    %1295 = vmatprep.subr.mxu0 0.0
    %1296 = vmatpush1.msra.mxu0 0.0
    %1297 = vmatprep.subr.mxu0 0.0
    %1298 = vmatpush1.msra.mxu0 0.0
    %1299 = vmatprep.subr.mxu0 0.0
    %1300 = vmatpush1.msra.mxu0 0.0
    %1301 = vmatprep.subr.mxu0 0.0
    %1302 = vmatpush1.msra.mxu0 0.0
    %1303 = vmatprep.subr.mxu0 0.0
    %1304 = vmatpush1.msra.mxu0 0.0
    %1305 = vmatprep.subr.mxu0 0.0
    %1306 = vmatpush1.msra.mxu0 0.0
    %1307 = vmatprep.subr.mxu0 0.0
    %1308 = vmatpush1.msra.mxu0 0.0
    %1309 = vmatprep.subr.mxu0 0.0
    %1310 = vmatpush1.msra.mxu0 0.0
    %1311 = vmatprep.subr.mxu0 0.0
    %1312 = vmatpush1.msra.mxu0 0.0
    %1313 = vmatprep.subr.mxu0 0.0
    %1314 = vmatpush1.msra.mxu0 0.0
    %1315 = vmatprep.mubr.f32.mxu0 0.0
    %1316 = vmatmul.mubr.f32.gmra.mrb[0].mxu0 %v1249
    %v1317 = vpop.f32.mrb[0].mxu0
    %v1318 = vadd.f32 0.0, %v1317
    %v1319 = vpop.f32.mrb[0].mxu0
    %1320 = vdwg.mxu0
    %1322 = vrot.lane.b32.xlu0 %v24, 32
    %v1323 = vpop.permute.xlu0 %1322
    %v1326 = vsel %vm165, %v1242, 0
    %v1329 = vsel %vm165, %v1318, 0
    %1331 = vmatprep.subr.mxu0 0.0
    %1332 = vmatpush1.msra.mxu0 %v1323
    %1333 = vmatprep.subr.mxu0 0.0
    %1334 = vmatpush1.msra.mxu0 0.0
    %1335 = vmatprep.subr.mxu0 0.0
    %1336 = vmatpush1.msra.mxu0 0.0
    %1337 = vmatprep.subr.mxu0 0.0
    %1338 = vmatpush1.msra.mxu0 0.0
    %1339 = vmatprep.subr.mxu0 0.0
    %1340 = vmatpush1.msra.mxu0 0.0
    %1341 = vmatprep.subr.mxu0 0.0
    %1342 = vmatpush1.msra.mxu0 0.0
    %1343 = vmatprep.subr.mxu0 0.0
    %1344 = vmatpush1.msra.mxu0 0.0
    %1345 = vmatprep.subr.mxu0 0.0
    %1346 = vmatpush1.msra.mxu0 0.0
    %1347 = vmatprep.subr.mxu0 0.0
    %1348 = vmatpush1.msra.mxu0 0.0
    %1349 = vmatprep.subr.mxu0 0.0
    %1350 = vmatpush1.msra.mxu0 0.0
    %1351 = vmatprep.subr.mxu0 0.0
    %1352 = vmatpush1.msra.mxu0 0.0
    %1353 = vmatprep.subr.mxu0 0.0
    %1354 = vmatpush1.msra.mxu0 0.0
    %1355 = vmatprep.subr.mxu0 0.0
    %1356 = vmatpush1.msra.mxu0 0.0
    %1357 = vmatprep.subr.mxu0 0.0
    %1358 = vmatpush1.msra.mxu0 0.0
    %1359 = vmatprep.subr.mxu0 0.0
    %1360 = vmatpush1.msra.mxu0 0.0
    %1361 = vmatprep.subr.mxu0 0.0
    %1362 = vmatpush1.msra.mxu0 0.0
    %1363 = vmatprep.subr.mxu0 0.0
    %1364 = vmatpush1.msra.mxu0 0.0
    %1365 = vmatprep.subr.mxu0 0.0
    %1366 = vmatpush1.msra.mxu0 0.0
    %1367 = vmatprep.subr.mxu0 0.0
    %1368 = vmatpush1.msra.mxu0 0.0
    %1369 = vmatprep.subr.mxu0 0.0
    %1370 = vmatpush1.msra.mxu0 0.0
    %1371 = vmatprep.subr.mxu0 0.0
    %1372 = vmatpush1.msra.mxu0 0.0
    %1373 = vmatprep.subr.mxu0 0.0
    %1374 = vmatpush1.msra.mxu0 0.0
    %1375 = vmatprep.subr.mxu0 0.0
    %1376 = vmatpush1.msra.mxu0 0.0
    %1377 = vmatprep.subr.mxu0 0.0
    %1378 = vmatpush1.msra.mxu0 0.0
    %1379 = vmatprep.subr.mxu0 0.0
    %1380 = vmatpush1.msra.mxu0 0.0
    %1381 = vmatprep.subr.mxu0 0.0
    %1382 = vmatpush1.msra.mxu0 0.0
    %1383 = vmatprep.subr.mxu0 0.0
    %1384 = vmatpush1.msra.mxu0 0.0
    %1385 = vmatprep.subr.mxu0 0.0
    %1386 = vmatpush1.msra.mxu0 0.0
    %1387 = vmatprep.subr.mxu0 0.0
    %1388 = vmatpush1.msra.mxu0 0.0
    %1389 = vmatprep.subr.mxu0 0.0
    %1390 = vmatpush1.msra.mxu0 0.0
    %1391 = vmatprep.subr.mxu0 0.0
    %1392 = vmatpush1.msra.mxu0 0.0
    %1393 = vmatprep.subr.mxu0 0.0
    %1394 = vmatpush1.msra.mxu0 0.0
    %1395 = vmatprep.mubr.f32.mxu0 0.0
    %1396 = vmatmul.mubr.f32.gmra.mrb[0].mxu0 %v1326
    %v1397 = vpop.f32.mrb[0].mxu0
    %v1398 = vadd.f32 0.0, %v1397
    %v1399 = vpop.f32.mrb[0].mxu0
    %1400 = vmatprep.mubr.f32.mxu0 0.0
    %1401 = vmatmul.mubr.f32.gmra.mrb[0].mxu0 %v1329
    %v1402 = vpop.f32.mrb[0].mxu0
    %v1403 = vadd.f32 0.0, %v1402
    %v1404 = vpop.f32.mrb[0].mxu0
    %1405 = vdwg.mxu0
    %v1406 = vadd.f32 %v983, %v1398
    %v1407 = vadd.f32 %v988, %v1403
    %1408 = vrot.lane.b32.xlu0 %v154, 104
    %v1409 = vpop.permute.xlu0 %1408
    %1410 = vrot.lane.b32.xlu0 %v154, 72
    %v1411 = vpop.permute.xlu0 %1410
    %v1412 = vsel %vm165, %v1409, 0
    %v1414 = vsel %vm165, %v1411, 0
    %1416 = vmatprep.subr.mxu0 0.0
    %1417 = vmatpush1.xpose.msra.mxu0 %v1414
    %1418 = vmatprep.subr.mxu0 0.0
    %1419 = vmatpush1.xpose.msra.mxu0 0.0
    %1420 = vmatprep.subr.mxu0 0.0
    %1421 = vmatpush1.xpose.msra.mxu0 0.0
    %1422 = vmatprep.subr.mxu0 0.0
    %1423 = vmatpush1.xpose.msra.mxu0 0.0
    %1424 = vmatprep.subr.mxu0 0.0
    %1425 = vmatpush1.xpose.msra.mxu0 0.0
    %1426 = vmatprep.subr.mxu0 0.0
    %1427 = vmatpush1.xpose.msra.mxu0 0.0
    %1428 = vmatprep.subr.mxu0 0.0
    %1429 = vmatpush1.xpose.msra.mxu0 0.0
    %1430 = vmatprep.subr.mxu0 0.0
    %1431 = vmatpush1.xpose.msra.mxu0 0.0
    %1432 = vmatprep.subr.mxu0 0.0
    %1433 = vmatpush1.xpose.msra.mxu0 0.0
    %1434 = vmatprep.subr.mxu0 0.0
    %1435 = vmatpush1.xpose.msra.mxu0 0.0
    %1436 = vmatprep.subr.mxu0 0.0
    %1437 = vmatpush1.xpose.msra.mxu0 0.0
    %1438 = vmatprep.subr.mxu0 0.0
    %1439 = vmatpush1.xpose.msra.mxu0 0.0
    %1440 = vmatprep.subr.mxu0 0.0
    %1441 = vmatpush1.xpose.msra.mxu0 0.0
    %1442 = vmatprep.subr.mxu0 0.0
    %1443 = vmatpush1.xpose.msra.mxu0 0.0
    %1444 = vmatprep.subr.mxu0 0.0
    %1445 = vmatpush1.xpose.msra.mxu0 0.0
    %1446 = vmatprep.subr.mxu0 0.0
    %1447 = vmatpush1.xpose.msra.mxu0 0.0
    %1448 = vmatprep.subr.mxu0 0.0
    %1449 = vmatpush1.xpose.msra.mxu0 0.0
    %1450 = vmatprep.subr.mxu0 0.0
    %1451 = vmatpush1.xpose.msra.mxu0 0.0
    %1452 = vmatprep.subr.mxu0 0.0
    %1453 = vmatpush1.xpose.msra.mxu0 0.0
    %1454 = vmatprep.subr.mxu0 0.0
    %1455 = vmatpush1.xpose.msra.mxu0 0.0
    %1456 = vmatprep.subr.mxu0 0.0
    %1457 = vmatpush1.xpose.msra.mxu0 0.0
    %1458 = vmatprep.subr.mxu0 0.0
    %1459 = vmatpush1.xpose.msra.mxu0 0.0
    %1460 = vmatprep.subr.mxu0 0.0
    %1461 = vmatpush1.xpose.msra.mxu0 0.0
    %1462 = vmatprep.subr.mxu0 0.0
    %1463 = vmatpush1.xpose.msra.mxu0 0.0
    %1464 = vmatprep.subr.mxu0 0.0
    %1465 = vmatpush1.xpose.msra.mxu0 0.0
    %1466 = vmatprep.subr.mxu0 0.0
    %1467 = vmatpush1.xpose.msra.mxu0 0.0
    %1468 = vmatprep.subr.mxu0 0.0
    %1469 = vmatpush1.xpose.msra.mxu0 0.0
    %1470 = vmatprep.subr.mxu0 0.0
    %1471 = vmatpush1.xpose.msra.mxu0 0.0
    %1472 = vmatprep.subr.mxu0 0.0
    %1473 = vmatpush1.xpose.msra.mxu0 0.0
    %1474 = vmatprep.subr.mxu0 0.0
    %1475 = vmatpush1.xpose.msra.mxu0 0.0
    %1476 = vmatprep.subr.mxu0 0.0
    %1477 = vmatpush1.xpose.msra.mxu0 0.0
    %1478 = vmatprep.subr.mxu0 0.0
    %1479 = vmatpush1.xpose.msra.mxu0 0.0
    %1480 = vmatprep.mubr.f32.mxu0 0.0
    %1481 = vmatmul.mubr.f32.gmra.mrb[0].mxu0 %v1412
    %v1482 = vpop.f32.mrb[0].mxu0
    %v1483 = vadd.f32 0.0, %v1482
    %v1484 = vpop.f32.mrb[0].mxu0
    %1485 = vdwg.mxu0
    %1486 = vrot.lane.b32.xlu0 %v159, 104
    %v1487 = vpop.permute.xlu0 %1486
    %1488 = vrot.lane.b32.xlu0 %v159, 72
    %v1489 = vpop.permute.xlu0 %1488
    %v1490 = vsel %vm165, %v1487, 0
    %v1492 = vsel %vm165, %v1489, 0
    %1494 = vmatprep.subr.mxu0 0.0
    %1495 = vmatpush1.xpose.msra.mxu0 %v1492
    %1496 = vmatprep.subr.mxu0 0.0
    %1497 = vmatpush1.xpose.msra.mxu0 0.0
    %1498 = vmatprep.subr.mxu0 0.0
    %1499 = vmatpush1.xpose.msra.mxu0 0.0
    %1500 = vmatprep.subr.mxu0 0.0
    %1501 = vmatpush1.xpose.msra.mxu0 0.0
    %1502 = vmatprep.subr.mxu0 0.0
    %1503 = vmatpush1.xpose.msra.mxu0 0.0
    %1504 = vmatprep.subr.mxu0 0.0
    %1505 = vmatpush1.xpose.msra.mxu0 0.0
    %1506 = vmatprep.subr.mxu0 0.0
    %1507 = vmatpush1.xpose.msra.mxu0 0.0
    %1508 = vmatprep.subr.mxu0 0.0
    %1509 = vmatpush1.xpose.msra.mxu0 0.0
    %1510 = vmatprep.subr.mxu0 0.0
    %1511 = vmatpush1.xpose.msra.mxu0 0.0
    %1512 = vmatprep.subr.mxu0 0.0
    %1513 = vmatpush1.xpose.msra.mxu0 0.0
    %1514 = vmatprep.subr.mxu0 0.0
    %1515 = vmatpush1.xpose.msra.mxu0 0.0
    %1516 = vmatprep.subr.mxu0 0.0
    %1517 = vmatpush1.xpose.msra.mxu0 0.0
    %1518 = vmatprep.subr.mxu0 0.0
    %1519 = vmatpush1.xpose.msra.mxu0 0.0
    %1520 = vmatprep.subr.mxu0 0.0
    %1521 = vmatpush1.xpose.msra.mxu0 0.0
    %1522 = vmatprep.subr.mxu0 0.0
    %1523 = vmatpush1.xpose.msra.mxu0 0.0
    %1524 = vmatprep.subr.mxu0 0.0
    %1525 = vmatpush1.xpose.msra.mxu0 0.0
    %1526 = vmatprep.subr.mxu0 0.0
    %1527 = vmatpush1.xpose.msra.mxu0 0.0
    %1528 = vmatprep.subr.mxu0 0.0
    %1529 = vmatpush1.xpose.msra.mxu0 0.0
    %1530 = vmatprep.subr.mxu0 0.0
    %1531 = vmatpush1.xpose.msra.mxu0 0.0
    %1532 = vmatprep.subr.mxu0 0.0
    %1533 = vmatpush1.xpose.msra.mxu0 0.0
    %1534 = vmatprep.subr.mxu0 0.0
    %1535 = vmatpush1.xpose.msra.mxu0 0.0
    %1536 = vmatprep.subr.mxu0 0.0
    %1537 = vmatpush1.xpose.msra.mxu0 0.0
    %1538 = vmatprep.subr.mxu0 0.0
    %1539 = vmatpush1.xpose.msra.mxu0 0.0
    %1540 = vmatprep.subr.mxu0 0.0
    %1541 = vmatpush1.xpose.msra.mxu0 0.0
    %1542 = vmatprep.subr.mxu0 0.0
    %1543 = vmatpush1.xpose.msra.mxu0 0.0
    %1544 = vmatprep.subr.mxu0 0.0
    %1545 = vmatpush1.xpose.msra.mxu0 0.0
    %1546 = vmatprep.subr.mxu0 0.0
    %1547 = vmatpush1.xpose.msra.mxu0 0.0
    %1548 = vmatprep.subr.mxu0 0.0
    %1549 = vmatpush1.xpose.msra.mxu0 0.0
    %1550 = vmatprep.subr.mxu0 0.0
    %1551 = vmatpush1.xpose.msra.mxu0 0.0
    %1552 = vmatprep.subr.mxu0 0.0
    %1553 = vmatpush1.xpose.msra.mxu0 0.0
    %1554 = vmatprep.subr.mxu0 0.0
    %1555 = vmatpush1.xpose.msra.mxu0 0.0
    %1556 = vmatprep.subr.mxu0 0.0
    %1557 = vmatpush1.xpose.msra.mxu0 0.0
    %1558 = vmatprep.mubr.f32.mxu0 0.0
    %1559 = vmatmul.mubr.f32.gmra.mrb[0].mxu0 %v1490
    %v1560 = vpop.f32.mrb[0].mxu0
    %v1561 = vadd.f32 0.0, %v1560
    %v1562 = vpop.f32.mrb[0].mxu0
    %1563 = vdwg.mxu0
    %v1564 = vsel %vm165, %v1483, -inf
    %1565 = vmax.xlane.f32.xlu0 %v1564
    %v1566 = vpop.xlane.xlu0 %1565
    %v1567 = vsel %vm165, %v1561, -inf
    %1568 = vmax.xlane.f32.xlu0 %v1567
    %v1569 = vpop.xlane.xlu0 %1568
    %v1570 = vsub.f32 %v1483, %v1566
    %v1571 = vsub.f32 %v1561, %v1569
    %v1572 = vmul.f32 %v1570, 1.442695
    %v1573 = vpow.pop %v1572
    %v1574 = vmul.f32 %v1571, 1.442695
    %v1575 = vpow.pop %v1574
    %v1576 = vsel %vm165, %v1573, 0.0
    %1577 = vadd.xlane.f32.xlu0 %v1576
    %v1578 = vpop.xlane.xlu0 %1577
    %v1579 = vsel %vm165, %v1575, 0.0
    %1580 = vadd.xlane.f32.xlu0 %v1579
    %v1581 = vpop.xlane.xlu0 %1580
    %v1582 = vrcp.pop %v1578
    %v1583 = vrcp.pop %v1581
    %v1584 = vmul.f32 %v1573, %v1582
    %v1585 = vmul.f32 %v1575, %v1583
    %1586 = vrot.lane.b32.xlu0 %v154, 40
    %v1587 = vpop.permute.xlu0 %1586
    %v1590 = vsel %vm165, %v1584, 0
    %1592 = vmatprep.subr.mxu0 0.0
    %1593 = vmatpush1.msra.mxu0 %v1587
    %1594 = vmatprep.subr.mxu0 0.0
    %1595 = vmatpush1.msra.mxu0 0.0
    %1596 = vmatprep.subr.mxu0 0.0
    %1597 = vmatpush1.msra.mxu0 0.0
    %1598 = vmatprep.subr.mxu0 0.0
    %1599 = vmatpush1.msra.mxu0 0.0
    %1600 = vmatprep.subr.mxu0 0.0
    %1601 = vmatpush1.msra.mxu0 0.0
    %1602 = vmatprep.subr.mxu0 0.0
    %1603 = vmatpush1.msra.mxu0 0.0
    %1604 = vmatprep.subr.mxu0 0.0
    %1605 = vmatpush1.msra.mxu0 0.0
    %1606 = vmatprep.subr.mxu0 0.0
    %1607 = vmatpush1.msra.mxu0 0.0
    %1608 = vmatprep.subr.mxu0 0.0
    %1609 = vmatpush1.msra.mxu0 0.0
    %1610 = vmatprep.subr.mxu0 0.0
    %1611 = vmatpush1.msra.mxu0 0.0
    %1612 = vmatprep.subr.mxu0 0.0
    %1613 = vmatpush1.msra.mxu0 0.0
    %1614 = vmatprep.subr.mxu0 0.0
    %1615 = vmatpush1.msra.mxu0 0.0
    %1616 = vmatprep.subr.mxu0 0.0
    %1617 = vmatpush1.msra.mxu0 0.0
    %1618 = vmatprep.subr.mxu0 0.0
    %1619 = vmatpush1.msra.mxu0 0.0
    %1620 = vmatprep.subr.mxu0 0.0
    %1621 = vmatpush1.msra.mxu0 0.0
    %1622 = vmatprep.subr.mxu0 0.0
    %1623 = vmatpush1.msra.mxu0 0.0
    %1624 = vmatprep.subr.mxu0 0.0
    %1625 = vmatpush1.msra.mxu0 0.0
    %1626 = vmatprep.subr.mxu0 0.0
    %1627 = vmatpush1.msra.mxu0 0.0
    %1628 = vmatprep.subr.mxu0 0.0
    %1629 = vmatpush1.msra.mxu0 0.0
    %1630 = vmatprep.subr.mxu0 0.0
    %1631 = vmatpush1.msra.mxu0 0.0
    %1632 = vmatprep.subr.mxu0 0.0
    %1633 = vmatpush1.msra.mxu0 0.0
    %1634 = vmatprep.subr.mxu0 0.0
    %1635 = vmatpush1.msra.mxu0 0.0
    %1636 = vmatprep.subr.mxu0 0.0
    %1637 = vmatpush1.msra.mxu0 0.0
    %1638 = vmatprep.subr.mxu0 0.0
    %1639 = vmatpush1.msra.mxu0 0.0
    %1640 = vmatprep.subr.mxu0 0.0
    %1641 = vmatpush1.msra.mxu0 0.0
    %1642 = vmatprep.subr.mxu0 0.0
    %1643 = vmatpush1.msra.mxu0 0.0
    %1644 = vmatprep.subr.mxu0 0.0
    %1645 = vmatpush1.msra.mxu0 0.0
    %1646 = vmatprep.subr.mxu0 0.0
    %1647 = vmatpush1.msra.mxu0 0.0
    %1648 = vmatprep.subr.mxu0 0.0
    %1649 = vmatpush1.msra.mxu0 0.0
    %1650 = vmatprep.subr.mxu0 0.0
    %1651 = vmatpush1.msra.mxu0 0.0
    %1652 = vmatprep.subr.mxu0 0.0
    %1653 = vmatpush1.msra.mxu0 0.0
    %1654 = vmatprep.subr.mxu0 0.0
    %1655 = vmatpush1.msra.mxu0 0.0
    %1656 = vmatprep.mubr.f32.mxu0 0.0
    %1657 = vmatmul.mubr.f32.gmra.mrb[0].mxu0 %v1590
    %v1658 = vpop.f32.mrb[0].mxu0
    %v1659 = vadd.f32 0.0, %v1658
    %v1660 = vpop.f32.mrb[0].mxu0
    %1661 = vdwg.mxu0
    %1662 = vrot.lane.b32.xlu0 %v159, 40
    %v1663 = vpop.permute.xlu0 %1662
    %v1666 = vsel %vm165, %v1585, 0
    %1668 = vmatprep.subr.mxu0 0.0
    %1669 = vmatpush1.msra.mxu0 %v1663
    %1670 = vmatprep.subr.mxu0 0.0
    %1671 = vmatpush1.msra.mxu0 0.0
    %1672 = vmatprep.subr.mxu0 0.0
    %1673 = vmatpush1.msra.mxu0 0.0
    %1674 = vmatprep.subr.mxu0 0.0
    %1675 = vmatpush1.msra.mxu0 0.0
    %1676 = vmatprep.subr.mxu0 0.0
    %1677 = vmatpush1.msra.mxu0 0.0
    %1678 = vmatprep.subr.mxu0 0.0
    %1679 = vmatpush1.msra.mxu0 0.0
    %1680 = vmatprep.subr.mxu0 0.0
    %1681 = vmatpush1.msra.mxu0 0.0
    %1682 = vmatprep.subr.mxu0 0.0
    %1683 = vmatpush1.msra.mxu0 0.0
    %1684 = vmatprep.subr.mxu0 0.0
    %1685 = vmatpush1.msra.mxu0 0.0
    %1686 = vmatprep.subr.mxu0 0.0
    %1687 = vmatpush1.msra.mxu0 0.0
    %1688 = vmatprep.subr.mxu0 0.0
    %1689 = vmatpush1.msra.mxu0 0.0
    %1690 = vmatprep.subr.mxu0 0.0
    %1691 = vmatpush1.msra.mxu0 0.0
    %1692 = vmatprep.subr.mxu0 0.0
    %1693 = vmatpush1.msra.mxu0 0.0
    %1694 = vmatprep.subr.mxu0 0.0
    %1695 = vmatpush1.msra.mxu0 0.0
    %1696 = vmatprep.subr.mxu0 0.0
    %1697 = vmatpush1.msra.mxu0 0.0
    %1698 = vmatprep.subr.mxu0 0.0
    %1699 = vmatpush1.msra.mxu0 0.0
    %1700 = vmatprep.subr.mxu0 0.0
    %1701 = vmatpush1.msra.mxu0 0.0
    %1702 = vmatprep.subr.mxu0 0.0
    %1703 = vmatpush1.msra.mxu0 0.0
    %1704 = vmatprep.subr.mxu0 0.0
    %1705 = vmatpush1.msra.mxu0 0.0
    %1706 = vmatprep.subr.mxu0 0.0
    %1707 = vmatpush1.msra.mxu0 0.0
    %1708 = vmatprep.subr.mxu0 0.0
    %1709 = vmatpush1.msra.mxu0 0.0
    %1710 = vmatprep.subr.mxu0 0.0
    %1711 = vmatpush1.msra.mxu0 0.0
    %1712 = vmatprep.subr.mxu0 0.0
    %1713 = vmatpush1.msra.mxu0 0.0
    %1714 = vmatprep.subr.mxu0 0.0
    %1715 = vmatpush1.msra.mxu0 0.0
    %1716 = vmatprep.subr.mxu0 0.0
    %1717 = vmatpush1.msra.mxu0 0.0
    %1718 = vmatprep.subr.mxu0 0.0
    %1719 = vmatpush1.msra.mxu0 0.0
    %1720 = vmatprep.subr.mxu0 0.0
    %1721 = vmatpush1.msra.mxu0 0.0
    %1722 = vmatprep.subr.mxu0 0.0
    %1723 = vmatpush1.msra.mxu0 0.0
    %1724 = vmatprep.subr.mxu0 0.0
    %1725 = vmatpush1.msra.mxu0 0.0
    %1726 = vmatprep.subr.mxu0 0.0
    %1727 = vmatpush1.msra.mxu0 0.0
    %1728 = vmatprep.subr.mxu0 0.0
    %1729 = vmatpush1.msra.mxu0 0.0
    %1730 = vmatprep.subr.mxu0 0.0
    %1731 = vmatpush1.msra.mxu0 0.0
    %1732 = vmatprep.mubr.f32.mxu0 0.0
    %1733 = vmatmul.mubr.f32.gmra.mrb[0].mxu0 %v1666
    %v1734 = vpop.f32.mrb[0].mxu0
    %v1735 = vadd.f32 0.0, %v1734
    %v1736 = vpop.f32.mrb[0].mxu0
    %1737 = vdwg.mxu0
    %1739 = vrot.lane.b32.xlu0 %v26, 32
    %v1740 = vpop.permute.xlu0 %1739
    %v1743 = vsel %vm165, %v1659, 0
    %v1746 = vsel %vm165, %v1735, 0
    %1748 = vmatprep.subr.mxu0 0.0
    %1749 = vmatpush1.msra.mxu0 %v1740
    %1750 = vmatprep.subr.mxu0 0.0
    %1751 = vmatpush1.msra.mxu0 0.0
    %1752 = vmatprep.subr.mxu0 0.0
    %1753 = vmatpush1.msra.mxu0 0.0
    %1754 = vmatprep.subr.mxu0 0.0
    %1755 = vmatpush1.msra.mxu0 0.0
    %1756 = vmatprep.subr.mxu0 0.0
    %1757 = vmatpush1.msra.mxu0 0.0
    %1758 = vmatprep.subr.mxu0 0.0
    %1759 = vmatpush1.msra.mxu0 0.0
    %1760 = vmatprep.subr.mxu0 0.0
    %1761 = vmatpush1.msra.mxu0 0.0
    %1762 = vmatprep.subr.mxu0 0.0
    %1763 = vmatpush1.msra.mxu0 0.0
    %1764 = vmatprep.subr.mxu0 0.0
    %1765 = vmatpush1.msra.mxu0 0.0
    %1766 = vmatprep.subr.mxu0 0.0
    %1767 = vmatpush1.msra.mxu0 0.0
    %1768 = vmatprep.subr.mxu0 0.0
    %1769 = vmatpush1.msra.mxu0 0.0
    %1770 = vmatprep.subr.mxu0 0.0
    %1771 = vmatpush1.msra.mxu0 0.0
    %1772 = vmatprep.subr.mxu0 0.0
    %1773 = vmatpush1.msra.mxu0 0.0
    %1774 = vmatprep.subr.mxu0 0.0
    %1775 = vmatpush1.msra.mxu0 0.0
    %1776 = vmatprep.subr.mxu0 0.0
    %1777 = vmatpush1.msra.mxu0 0.0
    %1778 = vmatprep.subr.mxu0 0.0
    %1779 = vmatpush1.msra.mxu0 0.0
    %1780 = vmatprep.subr.mxu0 0.0
    %1781 = vmatpush1.msra.mxu0 0.0
    %1782 = vmatprep.subr.mxu0 0.0
    %1783 = vmatpush1.msra.mxu0 0.0
    %1784 = vmatprep.subr.mxu0 0.0
    %1785 = vmatpush1.msra.mxu0 0.0
    %1786 = vmatprep.subr.mxu0 0.0
    %1787 = vmatpush1.msra.mxu0 0.0
    %1788 = vmatprep.subr.mxu0 0.0
    %1789 = vmatpush1.msra.mxu0 0.0
    %1790 = vmatprep.subr.mxu0 0.0
    %1791 = vmatpush1.msra.mxu0 0.0
    %1792 = vmatprep.subr.mxu0 0.0
    %1793 = vmatpush1.msra.mxu0 0.0
    %1794 = vmatprep.subr.mxu0 0.0
    %1795 = vmatpush1.msra.mxu0 0.0
    %1796 = vmatprep.subr.mxu0 0.0
    %1797 = vmatpush1.msra.mxu0 0.0
    %1798 = vmatprep.subr.mxu0 0.0
    %1799 = vmatpush1.msra.mxu0 0.0
    %1800 = vmatprep.subr.mxu0 0.0
    %1801 = vmatpush1.msra.mxu0 0.0
    %1802 = vmatprep.subr.mxu0 0.0
    %1803 = vmatpush1.msra.mxu0 0.0
    %1804 = vmatprep.subr.mxu0 0.0
    %1805 = vmatpush1.msra.mxu0 0.0
    %1806 = vmatprep.subr.mxu0 0.0
    %1807 = vmatpush1.msra.mxu0 0.0
    %1808 = vmatprep.subr.mxu0 0.0
    %1809 = vmatpush1.msra.mxu0 0.0
    %1810 = vmatprep.subr.mxu0 0.0
    %1811 = vmatpush1.msra.mxu0 0.0
    %1812 = vmatprep.mubr.f32.mxu0 0.0
    %1813 = vmatmul.mubr.f32.gmra.mrb[0].mxu0 %v1743
    %v1814 = vpop.f32.mrb[0].mxu0
    %v1815 = vadd.f32 0.0, %v1814
    %v1816 = vpop.f32.mrb[0].mxu0
    %1817 = vmatprep.mubr.f32.mxu0 0.0
    %1818 = vmatmul.mubr.f32.gmra.mrb[0].mxu0 %v1746
    %v1819 = vpop.f32.mrb[0].mxu0
    %v1820 = vadd.f32 0.0, %v1819
    %v1821 = vpop.f32.mrb[0].mxu0
    %1822 = vdwg.mxu0
    %v1823 = vadd.f32 %v1406, %v1815
    %v1824 = vadd.f32 %v1407, %v1820
    %v1825 = vlaneseq
    %v1826 = vshrl.u32 %v1825, 7
    %v1827 = vsub.s32 1, %v1826
    %v1828 = vrot.slane %v36, %v1827
    %v1829 = vadd.f32 %v1823, %v1828
    %v1830 = vadd.f32 %v1824, %v1828
    %v1831 = vadd.f32 %v18, %v1829
    %v1832 = vadd.f32 %v19, %v1830
    %v1833 = vsel %vm37, %v1831, 0.0
    %1834 = vadd.xlane.f32.xlu0 %v1833
    %v1835 = vpop.xlane.xlu0 %1834
    %v1836 = vsel %vm37, %v1832, 0.0
    %1837 = vadd.xlane.f32.xlu0 %v1836
    %v1838 = vpop.xlane.xlu0 %1837
    %v1839 = vmul.f32 %v1835, %v44
    %v1840 = vmul.f32 %v1838, %v44
    %v1841 = vsub.f32 %v1831, %v1839
    %v1842 = vsub.f32 %v1832, %v1840
    %v1843 = vmul.f32 %v1841, %v1841
    %v1844 = vmul.f32 %v1842, %v1842
    %v1845 = vsel %vm37, %v1843, 0.0
    %1846 = vadd.xlane.f32.xlu0 %v1845
    %v1847 = vpop.xlane.xlu0 %1846
    %v1848 = vsel %vm37, %v1844, 0.0
    %1849 = vadd.xlane.f32.xlu0 %v1848
    %v1850 = vpop.xlane.xlu0 %1849
    %v1851 = vmul.f32 %v1847, %v44
    %v1852 = vmul.f32 %v1850, %v44
    %v1853 = vadd.f32 %v1851, 1e-05
    %v1854 = vadd.f32 %v1852, 1e-05
    %v1855 = vrsqrt.pop %v1853
    %v1856 = vrsqrt.pop %v1854
    %v1857 = vmul.f32 %v1841, %v1855
    %v1858 = vmul.f32 %v1842, %v1856
    %v1859 = vlaneseq
    %v1860 = vshrl.u32 %v1859, 7
    %v1861 = vsub.s32 4, %v1860
    %v1862 = vrot.slane %v36, %v1861
    %v1863 = vmul.f32 %v1857, %v1862
    %v1864 = vmul.f32 %v1858, %v1862
    %v1865 = vlaneseq
    %v1866 = vshrl.u32 %v1865, 7
    %v1867 = vsub.s32 5, %v1866
    %v1868 = vrot.slane %v36, %v1867
    %v1869 = vadd.f32 %v1863, %v1868
    %v1870 = vadd.f32 %v1864, %v1868
    %v1871 = vlaneseq
    %v1872 = vshrl.u32 %v1871, 7
    %v1873 = vsub.s32 6, %v1872
    %v1874 = vrot.slane %v36, %v1873
    %v1876 = vsel %vm37, %v1869, 0
    %v1879 = vsel %vm37, %v1870, 0
    %1881 = vmatprep.subr.mxu0 0.0
    %1882 = vmatpush1.msra.mxu0 %v21
    %1883 = vmatprep.subr.mxu0 0.0
    %1884 = vmatpush1.msra.mxu0 %v23
    %1885 = vmatprep.subr.mxu0 0.0
    %1886 = vmatpush1.msra.mxu0 %v25
    %1887 = vmatprep.subr.mxu0 0.0
    %1888 = vmatpush1.msra.mxu0 %v27
    %1889 = vmatprep.subr.mxu0 0.0
    %1890 = vmatpush1.msra.mxu0 0.0
    %1891 = vmatprep.subr.mxu0 0.0
    %1892 = vmatpush1.msra.mxu0 0.0
    %1893 = vmatprep.subr.mxu0 0.0
    %1894 = vmatpush1.msra.mxu0 0.0
    %1895 = vmatprep.subr.mxu0 0.0
    %1896 = vmatpush1.msra.mxu0 0.0
    %1897 = vmatprep.subr.mxu0 0.0
    %1898 = vmatpush1.msra.mxu0 0.0
    %1899 = vmatprep.subr.mxu0 0.0
    %1900 = vmatpush1.msra.mxu0 0.0
    %1901 = vmatprep.subr.mxu0 0.0
    %1902 = vmatpush1.msra.mxu0 0.0
    %1903 = vmatprep.subr.mxu0 0.0
    %1904 = vmatpush1.msra.mxu0 0.0
    %1905 = vmatprep.subr.mxu0 0.0
    %1906 = vmatpush1.msra.mxu0 0.0
    %1907 = vmatprep.subr.mxu0 0.0
    %1908 = vmatpush1.msra.mxu0 0.0
    %1909 = vmatprep.subr.mxu0 0.0
    %1910 = vmatpush1.msra.mxu0 0.0
    %1911 = vmatprep.subr.mxu0 0.0
    %1912 = vmatpush1.msra.mxu0 0.0
    %1913 = vmatprep.subr.mxu0 0.0
    %1914 = vmatpush1.msra.mxu0 0.0
    %1915 = vmatprep.subr.mxu0 0.0
    %1916 = vmatpush1.msra.mxu0 0.0
    %1917 = vmatprep.subr.mxu0 0.0
    %1918 = vmatpush1.msra.mxu0 0.0
    %1919 = vmatprep.subr.mxu0 0.0
    %1920 = vmatpush1.msra.mxu0 0.0
    %1921 = vmatprep.subr.mxu0 0.0
    %1922 = vmatpush1.msra.mxu0 0.0
    %1923 = vmatprep.subr.mxu0 0.0
    %1924 = vmatpush1.msra.mxu0 0.0
    %1925 = vmatprep.subr.mxu0 0.0
    %1926 = vmatpush1.msra.mxu0 0.0
    %1927 = vmatprep.subr.mxu0 0.0
    %1928 = vmatpush1.msra.mxu0 0.0
    %1929 = vmatprep.subr.mxu0 0.0
    %1930 = vmatpush1.msra.mxu0 0.0
    %1931 = vmatprep.subr.mxu0 0.0
    %1932 = vmatpush1.msra.mxu0 0.0
    %1933 = vmatprep.subr.mxu0 0.0
    %1934 = vmatpush1.msra.mxu0 0.0
    %1935 = vmatprep.subr.mxu0 0.0
    %1936 = vmatpush1.msra.mxu0 0.0
    %1937 = vmatprep.subr.mxu0 0.0
    %1938 = vmatpush1.msra.mxu0 0.0
    %1939 = vmatprep.subr.mxu0 0.0
    %1940 = vmatpush1.msra.mxu0 0.0
    %1941 = vmatprep.subr.mxu0 0.0
    %1942 = vmatpush1.msra.mxu0 0.0
    %1943 = vmatprep.subr.mxu0 0.0
    %1944 = vmatpush1.msra.mxu0 0.0
    %1945 = vmatprep.mubr.f32.mxu0 0.0
    %1946 = vmatmul.mubr.f32.gmra.mrb[0].mxu0 %v1876
    %v1947 = vpop.f32.mrb[0].mxu0
    %v1948 = vadd.f32 %v1874, %v1947
    %v1949 = vpop.f32.mrb[0].mxu0
    %1950 = vmatprep.mubr.f32.mxu0 0.0
    %1951 = vmatmul.mubr.f32.gmra.mrb[0].mxu0 %v1879
    %v1952 = vpop.f32.mrb[0].mxu0
    %v1953 = vadd.f32 %v1874, %v1952
    %v1954 = vpop.f32.mrb[0].mxu0
    %1955 = vdwg.mxu0
    %v1956 = vmul.f32 %v1948, %v1948
    %v1957 = vmul.f32 %v1953, %v1953
    %v1958 = vmul.f32 %v1948, %v1956
    %v1959 = vmul.f32 %v1953, %v1957
    %v1960 = vmul.f32 %v1958, 0.044715
    %v1961 = vmul.f32 %v1959, 0.044715
    %v1962 = vadd.f32 %v1948, %v1960
    %v1963 = vadd.f32 %v1953, %v1961
    %v1964 = vmul.f32 %v1962, 0.7978846
    %v1965 = vmul.f32 %v1963, 0.7978846
    %v1966 = vtanh.pop %v1964
    %v1967 = vtanh.pop %v1965
    %v1968 = vadd.f32 %v1966, 1.0
    %v1969 = vadd.f32 %v1967, 1.0
    %v1970 = vmul.f32 %v1968, 0.5
    %v1971 = vmul.f32 %v1969, 0.5
    %v1972 = vmul.f32 %v1948, %v1970
    %v1973 = vmul.f32 %v1953, %v1971
    %v1974 = vlaneseq
    %v1975 = vshrl.u32 %v1974, 7
    %v1976 = vsub.s32 7, %v1975
    %v1977 = vrot.slane %v36, %v1976
    %vm1978 = vcmask 523264
    %v1980 = vsel %vm1978, %v1972, 0
    %v1983 = vsel %vm1978, %v1973, 0
    %1985 = vmatprep.subr.mxu0 0.0
    %1986 = vmatpush1.msra.mxu0 %v28
    %1987 = vmatprep.subr.mxu0 0.0
    %1988 = vmatpush1.msra.mxu0 %v29
    %1989 = vmatprep.subr.mxu0 0.0
    %1990 = vmatpush1.msra.mxu0 %v30
    %1991 = vmatprep.subr.mxu0 0.0
    %1992 = vmatpush1.msra.mxu0 %v31
    %1993 = vmatprep.subr.mxu0 0.0
    %1994 = vmatpush1.msra.mxu0 %v32
    %1995 = vmatprep.subr.mxu0 0.0
    %1996 = vmatpush1.msra.mxu0 %v33
    %1997 = vmatprep.subr.mxu0 0.0
    %1998 = vmatpush1.msra.mxu0 %v34
    %1999 = vmatprep.subr.mxu0 0.0
    %2000 = vmatpush1.msra.mxu0 %v35
    %2001 = vmatprep.subr.mxu0 0.0
    %2002 = vmatpush1.msra.mxu0 0.0
    %2003 = vmatprep.subr.mxu0 0.0
    %2004 = vmatpush1.msra.mxu0 0.0
    %2005 = vmatprep.subr.mxu0 0.0
    %2006 = vmatpush1.msra.mxu0 0.0
    %2007 = vmatprep.subr.mxu0 0.0
    %2008 = vmatpush1.msra.mxu0 0.0
    %2009 = vmatprep.subr.mxu0 0.0
    %2010 = vmatpush1.msra.mxu0 0.0
    %2011 = vmatprep.subr.mxu0 0.0
    %2012 = vmatpush1.msra.mxu0 0.0
    %2013 = vmatprep.subr.mxu0 0.0
    %2014 = vmatpush1.msra.mxu0 0.0
    %2015 = vmatprep.subr.mxu0 0.0
    %2016 = vmatpush1.msra.mxu0 0.0
    %2017 = vmatprep.subr.mxu0 0.0
    %2018 = vmatpush1.msra.mxu0 0.0
    %2019 = vmatprep.subr.mxu0 0.0
    %2020 = vmatpush1.msra.mxu0 0.0
    %2021 = vmatprep.subr.mxu0 0.0
    %2022 = vmatpush1.msra.mxu0 0.0
    %2023 = vmatprep.subr.mxu0 0.0
    %2024 = vmatpush1.msra.mxu0 0.0
    %2025 = vmatprep.subr.mxu0 0.0
    %2026 = vmatpush1.msra.mxu0 0.0
    %2027 = vmatprep.subr.mxu0 0.0
    %2028 = vmatpush1.msra.mxu0 0.0
    %2029 = vmatprep.subr.mxu0 0.0
    %2030 = vmatpush1.msra.mxu0 0.0
    %2031 = vmatprep.subr.mxu0 0.0
    %2032 = vmatpush1.msra.mxu0 0.0
    %2033 = vmatprep.subr.mxu0 0.0
    %2034 = vmatpush1.msra.mxu0 0.0
    %2035 = vmatprep.subr.mxu0 0.0
    %2036 = vmatpush1.msra.mxu0 0.0
    %2037 = vmatprep.subr.mxu0 0.0
    %2038 = vmatpush1.msra.mxu0 0.0
    %2039 = vmatprep.subr.mxu0 0.0
    %2040 = vmatpush1.msra.mxu0 0.0
    %2041 = vmatprep.subr.mxu0 0.0
    %2042 = vmatpush1.msra.mxu0 0.0
    %2043 = vmatprep.subr.mxu0 0.0
    %2044 = vmatpush1.msra.mxu0 0.0
    %2045 = vmatprep.subr.mxu0 0.0
    %2046 = vmatpush1.msra.mxu0 0.0
    %2047 = vmatprep.subr.mxu0 0.0
    %2048 = vmatpush1.msra.mxu0 0.0
    %2049 = vmatprep.mubr.f32.mxu0 0.0
    %2050 = vmatmul.mubr.f32.gmra.mrb[0].mxu0 %v1980
    %v2051 = vpop.f32.mrb[0].mxu0
    %v2052 = vadd.f32 %v1977, %v2051
    %v2053 = vpop.f32.mrb[0].mxu0
    %2054 = vmatprep.mubr.f32.mxu0 0.0
    %2055 = vmatmul.mubr.f32.gmra.mrb[0].mxu0 %v1983
    %v2056 = vpop.f32.mrb[0].mxu0
    %v2057 = vadd.f32 %v1977, %v2056
    %v2058 = vpop.f32.mrb[0].mxu0
    %2059 = vdwg.mxu0
    %v2060 = vadd.f32 %v1831, %v2052
    %v2061 = vadd.f32 %v1832, %v2057
    %s2062 = scalar_lea.vmem %s1, 64
    %v2063 = vld [vmem:[%s2062] sm:$0xff]
    %v2064 = vld [vmem:[%s2062 + $0x8] sm:$0xff]
    %v2065 = vld [vmem:[%s2062 + $0x10] sm:$0xff]
    %v2066 = vld [vmem:[%s2062 + $0x18] sm:$0xff]
    %v2067 = vld [vmem:[%s2062 + $0x20] sm:$0xff]
    %v2068 = vld [vmem:[%s2062 + $0x28] sm:$0xff]
    %v2069 = vld [vmem:[%s2062 + $0x30] sm:$0xff]
    %v2070 = vld [vmem:[%s2062 + $0x38] sm:$0xff]
    %s2071 = scalar_lea.vmem %s2, 64
    %v2072 = vld [vmem:[%s2071] sm:$0xff]
    %v2073 = vld [vmem:[%s2071 + $0x8] sm:$0xff]
    %v2074 = vld [vmem:[%s2071 + $0x10] sm:$0xff]
    %v2075 = vld [vmem:[%s2071 + $0x18] sm:$0xff]
    %v2076 = vld [vmem:[%s2071 + $0x20] sm:$0xff]
    %v2077 = vld [vmem:[%s2071 + $0x28] sm:$0xff]
    %v2078 = vld [vmem:[%s2071 + $0x30] sm:$0xff]
    %v2079 = vld [vmem:[%s2071 + $0x38] sm:$0xff]
    %s2080 = scalar_lea.vmem %s3, 8
    %v2081 = vld [vmem:[%s2080] sm:$0xff]
    %v2082 = vsel %vm37, %v2060, 0.0
    %2083 = vadd.xlane.f32.xlu0 %v2082
    %v2084 = vpop.xlane.xlu0 %2083
    %v2085 = vsel %vm37, %v2061, 0.0
    %2086 = vadd.xlane.f32.xlu0 %v2085
    %v2087 = vpop.xlane.xlu0 %2086
    %v2088 = vmul.f32 %v2084, %v44
    %v2089 = vmul.f32 %v2087, %v44
    %v2090 = vsub.f32 %v2060, %v2088
    %v2091 = vsub.f32 %v2061, %v2089
    %v2092 = vmul.f32 %v2090, %v2090
    %v2093 = vmul.f32 %v2091, %v2091
    %v2094 = vsel %vm37, %v2092, 0.0
    %2095 = vadd.xlane.f32.xlu0 %v2094
    %v2096 = vpop.xlane.xlu0 %2095
    %v2097 = vsel %vm37, %v2093, 0.0
    %2098 = vadd.xlane.f32.xlu0 %v2097
    %v2099 = vpop.xlane.xlu0 %2098
    %v2100 = vmul.f32 %v2096, %v44
    %v2101 = vmul.f32 %v2099, %v44
    %v2102 = vadd.f32 %v2100, 1e-05
    %v2103 = vadd.f32 %v2101, 1e-05
    %v2104 = vrsqrt.pop %v2102
    %v2105 = vrsqrt.pop %v2103
    %v2106 = vmul.f32 %v2090, %v2104
    %v2107 = vmul.f32 %v2091, %v2105
    %v2108 = vlaneseq
    %v2109 = vshrl.u32 %v2108, 7
    %v2110 = vsub.s32 2, %v2109
    %v2111 = vrot.slane %v2081, %v2110
    %v2112 = vmul.f32 %v2106, %v2111
    %v2113 = vmul.f32 %v2107, %v2111
    %v2114 = vlaneseq
    %v2115 = vshrl.u32 %v2114, 7
    %v2116 = vsub.s32 3, %v2115
    %v2117 = vrot.slane %v2081, %v2116
    %v2118 = vadd.f32 %v2112, %v2117
    %v2119 = vadd.f32 %v2113, %v2117
    %v2120 = vlaneseq
    %v2121 = vshrl.u32 %v2120, 7
    %v2122 = vsub.s32 0, %v2121
    %v2123 = vrot.slane %v2081, %v2122
    %v2125 = vsel %vm37, %v2118, 0
    %v2128 = vsel %vm37, %v2119, 0
    %2130 = vmatprep.subr.mxu0 0.0
    %2131 = vmatpush1.msra.mxu0 %v2063
    %2132 = vmatprep.subr.mxu0 0.0
    %2133 = vmatpush1.msra.mxu0 %v2065
    %2134 = vmatprep.subr.mxu0 0.0
    %2135 = vmatpush1.msra.mxu0 %v2067
    %2136 = vmatprep.subr.mxu0 0.0
    %2137 = vmatpush1.msra.mxu0 %v2069
    %2138 = vmatprep.subr.mxu0 0.0
    %2139 = vmatpush1.msra.mxu0 0.0
    %2140 = vmatprep.subr.mxu0 0.0
    %2141 = vmatpush1.msra.mxu0 0.0
    %2142 = vmatprep.subr.mxu0 0.0
    %2143 = vmatpush1.msra.mxu0 0.0
    %2144 = vmatprep.subr.mxu0 0.0
    %2145 = vmatpush1.msra.mxu0 0.0
    %2146 = vmatprep.subr.mxu0 0.0
    %2147 = vmatpush1.msra.mxu0 0.0
    %2148 = vmatprep.subr.mxu0 0.0
    %2149 = vmatpush1.msra.mxu0 0.0
    %2150 = vmatprep.subr.mxu0 0.0
    %2151 = vmatpush1.msra.mxu0 0.0
    %2152 = vmatprep.subr.mxu0 0.0
    %2153 = vmatpush1.msra.mxu0 0.0
    %2154 = vmatprep.subr.mxu0 0.0
    %2155 = vmatpush1.msra.mxu0 0.0
    %2156 = vmatprep.subr.mxu0 0.0
    %2157 = vmatpush1.msra.mxu0 0.0
    %2158 = vmatprep.subr.mxu0 0.0
    %2159 = vmatpush1.msra.mxu0 0.0
    %2160 = vmatprep.subr.mxu0 0.0
    %2161 = vmatpush1.msra.mxu0 0.0
    %2162 = vmatprep.subr.mxu0 0.0
    %2163 = vmatpush1.msra.mxu0 0.0
    %2164 = vmatprep.subr.mxu0 0.0
    %2165 = vmatpush1.msra.mxu0 0.0
    %2166 = vmatprep.subr.mxu0 0.0
    %2167 = vmatpush1.msra.mxu0 0.0
    %2168 = vmatprep.subr.mxu0 0.0
    %2169 = vmatpush1.msra.mxu0 0.0
    %2170 = vmatprep.subr.mxu0 0.0
    %2171 = vmatpush1.msra.mxu0 0.0
    %2172 = vmatprep.subr.mxu0 0.0
    %2173 = vmatpush1.msra.mxu0 0.0
    %2174 = vmatprep.subr.mxu0 0.0
    %2175 = vmatpush1.msra.mxu0 0.0
    %2176 = vmatprep.subr.mxu0 0.0
    %2177 = vmatpush1.msra.mxu0 0.0
    %2178 = vmatprep.subr.mxu0 0.0
    %2179 = vmatpush1.msra.mxu0 0.0
    %2180 = vmatprep.subr.mxu0 0.0
    %2181 = vmatpush1.msra.mxu0 0.0
    %2182 = vmatprep.subr.mxu0 0.0
    %2183 = vmatpush1.msra.mxu0 0.0
    %2184 = vmatprep.subr.mxu0 0.0
    %2185 = vmatpush1.msra.mxu0 0.0
    %2186 = vmatprep.subr.mxu0 0.0
    %2187 = vmatpush1.msra.mxu0 0.0
    %2188 = vmatprep.subr.mxu0 0.0
    %2189 = vmatpush1.msra.mxu0 0.0
    %2190 = vmatprep.subr.mxu0 0.0
    %2191 = vmatpush1.msra.mxu0 0.0
    %2192 = vmatprep.subr.mxu0 0.0
    %2193 = vmatpush1.msra.mxu0 0.0
    %2194 = vmatprep.mubr.f32.mxu0 0.0
    %2195 = vmatmul.mubr.f32.gmra.mrb[0].mxu0 %v2125
    %v2196 = vpop.f32.mrb[0].mxu0
    %v2197 = vadd.f32 %v2123, %v2196
    %v2198 = vpop.f32.mrb[0].mxu0
    %2199 = vmatprep.mubr.f32.mxu0 0.0
    %2200 = vmatmul.mubr.f32.gmra.mrb[0].mxu0 %v2128
    %v2201 = vpop.f32.mrb[0].mxu0
    %v2202 = vadd.f32 %v2123, %v2201
    %v2203 = vpop.f32.mrb[0].mxu0
    %2204 = vdwg.mxu0
    %2206 = vrot.lane.b32.xlu0 %v2197, 96
    %v2207 = vpop.permute.xlu0 %2206
    %v2208 = vsel %vm165, %v2197, 0
    %v2210 = vsel %vm165, %v2207, 0
    %2212 = vmatprep.subr.mxu0 0.0
    %2213 = vmatpush1.xpose.msra.mxu0 %v2210
    %2214 = vmatprep.subr.mxu0 0.0
    %2215 = vmatpush1.xpose.msra.mxu0 0.0
    %2216 = vmatprep.subr.mxu0 0.0
    %2217 = vmatpush1.xpose.msra.mxu0 0.0
    %2218 = vmatprep.subr.mxu0 0.0
    %2219 = vmatpush1.xpose.msra.mxu0 0.0
    %2220 = vmatprep.subr.mxu0 0.0
    %2221 = vmatpush1.xpose.msra.mxu0 0.0
    %2222 = vmatprep.subr.mxu0 0.0
    %2223 = vmatpush1.xpose.msra.mxu0 0.0
    %2224 = vmatprep.subr.mxu0 0.0
    %2225 = vmatpush1.xpose.msra.mxu0 0.0
    %2226 = vmatprep.subr.mxu0 0.0
    %2227 = vmatpush1.xpose.msra.mxu0 0.0
    %2228 = vmatprep.subr.mxu0 0.0
    %2229 = vmatpush1.xpose.msra.mxu0 0.0
    %2230 = vmatprep.subr.mxu0 0.0
    %2231 = vmatpush1.xpose.msra.mxu0 0.0
    %2232 = vmatprep.subr.mxu0 0.0
    %2233 = vmatpush1.xpose.msra.mxu0 0.0
    %2234 = vmatprep.subr.mxu0 0.0
    %2235 = vmatpush1.xpose.msra.mxu0 0.0
    %2236 = vmatprep.subr.mxu0 0.0
    %2237 = vmatpush1.xpose.msra.mxu0 0.0
    %2238 = vmatprep.subr.mxu0 0.0
    %2239 = vmatpush1.xpose.msra.mxu0 0.0
    %2240 = vmatprep.subr.mxu0 0.0
    %2241 = vmatpush1.xpose.msra.mxu0 0.0
    %2242 = vmatprep.subr.mxu0 0.0
    %2243 = vmatpush1.xpose.msra.mxu0 0.0
    %2244 = vmatprep.subr.mxu0 0.0
    %2245 = vmatpush1.xpose.msra.mxu0 0.0
    %2246 = vmatprep.subr.mxu0 0.0
    %2247 = vmatpush1.xpose.msra.mxu0 0.0
    %2248 = vmatprep.subr.mxu0 0.0
    %2249 = vmatpush1.xpose.msra.mxu0 0.0
    %2250 = vmatprep.subr.mxu0 0.0
    %2251 = vmatpush1.xpose.msra.mxu0 0.0
    %2252 = vmatprep.subr.mxu0 0.0
    %2253 = vmatpush1.xpose.msra.mxu0 0.0
    %2254 = vmatprep.subr.mxu0 0.0
    %2255 = vmatpush1.xpose.msra.mxu0 0.0
    %2256 = vmatprep.subr.mxu0 0.0
    %2257 = vmatpush1.xpose.msra.mxu0 0.0
    %2258 = vmatprep.subr.mxu0 0.0
    %2259 = vmatpush1.xpose.msra.mxu0 0.0
    %2260 = vmatprep.subr.mxu0 0.0
    %2261 = vmatpush1.xpose.msra.mxu0 0.0
    %2262 = vmatprep.subr.mxu0 0.0
    %2263 = vmatpush1.xpose.msra.mxu0 0.0
    %2264 = vmatprep.subr.mxu0 0.0
    %2265 = vmatpush1.xpose.msra.mxu0 0.0
    %2266 = vmatprep.subr.mxu0 0.0
    %2267 = vmatpush1.xpose.msra.mxu0 0.0
    %2268 = vmatprep.subr.mxu0 0.0
    %2269 = vmatpush1.xpose.msra.mxu0 0.0
    %2270 = vmatprep.subr.mxu0 0.0
    %2271 = vmatpush1.xpose.msra.mxu0 0.0
    %2272 = vmatprep.subr.mxu0 0.0
    %2273 = vmatpush1.xpose.msra.mxu0 0.0
    %2274 = vmatprep.subr.mxu0 0.0
    %2275 = vmatpush1.xpose.msra.mxu0 0.0
    %2276 = vmatprep.mubr.f32.mxu0 0.0
    %2277 = vmatmul.mubr.f32.gmra.mrb[0].mxu0 %v2208
    %v2278 = vpop.f32.mrb[0].mxu0
    %v2279 = vadd.f32 0.0, %v2278
    %v2280 = vpop.f32.mrb[0].mxu0
    %2281 = vdwg.mxu0
    %2283 = vrot.lane.b32.xlu0 %v2202, 96
    %v2284 = vpop.permute.xlu0 %2283
    %v2285 = vsel %vm165, %v2202, 0
    %v2287 = vsel %vm165, %v2284, 0
    %2289 = vmatprep.subr.mxu0 0.0
    %2290 = vmatpush1.xpose.msra.mxu0 %v2287
    %2291 = vmatprep.subr.mxu0 0.0
    %2292 = vmatpush1.xpose.msra.mxu0 0.0
    %2293 = vmatprep.subr.mxu0 0.0
    %2294 = vmatpush1.xpose.msra.mxu0 0.0
    %2295 = vmatprep.subr.mxu0 0.0
    %2296 = vmatpush1.xpose.msra.mxu0 0.0
    %2297 = vmatprep.subr.mxu0 0.0
    %2298 = vmatpush1.xpose.msra.mxu0 0.0
    %2299 = vmatprep.subr.mxu0 0.0
    %2300 = vmatpush1.xpose.msra.mxu0 0.0
    %2301 = vmatprep.subr.mxu0 0.0
    %2302 = vmatpush1.xpose.msra.mxu0 0.0
    %2303 = vmatprep.subr.mxu0 0.0
    %2304 = vmatpush1.xpose.msra.mxu0 0.0
    %2305 = vmatprep.subr.mxu0 0.0
    %2306 = vmatpush1.xpose.msra.mxu0 0.0
    %2307 = vmatprep.subr.mxu0 0.0
    %2308 = vmatpush1.xpose.msra.mxu0 0.0
    %2309 = vmatprep.subr.mxu0 0.0
    %2310 = vmatpush1.xpose.msra.mxu0 0.0
    %2311 = vmatprep.subr.mxu0 0.0
    %2312 = vmatpush1.xpose.msra.mxu0 0.0
    %2313 = vmatprep.subr.mxu0 0.0
    %2314 = vmatpush1.xpose.msra.mxu0 0.0
    %2315 = vmatprep.subr.mxu0 0.0
    %2316 = vmatpush1.xpose.msra.mxu0 0.0
    %2317 = vmatprep.subr.mxu0 0.0
    %2318 = vmatpush1.xpose.msra.mxu0 0.0
    %2319 = vmatprep.subr.mxu0 0.0
    %2320 = vmatpush1.xpose.msra.mxu0 0.0
    %2321 = vmatprep.subr.mxu0 0.0
    %2322 = vmatpush1.xpose.msra.mxu0 0.0
    %2323 = vmatprep.subr.mxu0 0.0
    %2324 = vmatpush1.xpose.msra.mxu0 0.0
    %2325 = vmatprep.subr.mxu0 0.0
    %2326 = vmatpush1.xpose.msra.mxu0 0.0
    %2327 = vmatprep.subr.mxu0 0.0
    %2328 = vmatpush1.xpose.msra.mxu0 0.0
    %2329 = vmatprep.subr.mxu0 0.0
    %2330 = vmatpush1.xpose.msra.mxu0 0.0
    %2331 = vmatprep.subr.mxu0 0.0
    %2332 = vmatpush1.xpose.msra.mxu0 0.0
    %2333 = vmatprep.subr.mxu0 0.0
    %2334 = vmatpush1.xpose.msra.mxu0 0.0
    %2335 = vmatprep.subr.mxu0 0.0
    %2336 = vmatpush1.xpose.msra.mxu0 0.0
    %2337 = vmatprep.subr.mxu0 0.0
    %2338 = vmatpush1.xpose.msra.mxu0 0.0
    %2339 = vmatprep.subr.mxu0 0.0
    %2340 = vmatpush1.xpose.msra.mxu0 0.0
    %2341 = vmatprep.subr.mxu0 0.0
    %2342 = vmatpush1.xpose.msra.mxu0 0.0
    %2343 = vmatprep.subr.mxu0 0.0
    %2344 = vmatpush1.xpose.msra.mxu0 0.0
    %2345 = vmatprep.subr.mxu0 0.0
    %2346 = vmatpush1.xpose.msra.mxu0 0.0
    %2347 = vmatprep.subr.mxu0 0.0
    %2348 = vmatpush1.xpose.msra.mxu0 0.0
    %2349 = vmatprep.subr.mxu0 0.0
    %2350 = vmatpush1.xpose.msra.mxu0 0.0
    %2351 = vmatprep.subr.mxu0 0.0
    %2352 = vmatpush1.xpose.msra.mxu0 0.0
    %2353 = vmatprep.mubr.f32.mxu0 0.0
    %2354 = vmatmul.mubr.f32.gmra.mrb[0].mxu0 %v2285
    %v2355 = vpop.f32.mrb[0].mxu0
    %v2356 = vadd.f32 0.0, %v2355
    %v2357 = vpop.f32.mrb[0].mxu0
    %2358 = vdwg.mxu0
    %v2359 = vsel %vm165, %v2279, -inf
    %2360 = vmax.xlane.f32.xlu0 %v2359
    %v2361 = vpop.xlane.xlu0 %2360
    %v2362 = vsel %vm165, %v2356, -inf
    %2363 = vmax.xlane.f32.xlu0 %v2362
    %v2364 = vpop.xlane.xlu0 %2363
    %v2365 = vsub.f32 %v2279, %v2361
    %v2366 = vsub.f32 %v2356, %v2364
    %v2367 = vmul.f32 %v2365, 1.442695
    %v2368 = vpow.pop %v2367
    %v2369 = vmul.f32 %v2366, 1.442695
    %v2370 = vpow.pop %v2369
    %v2371 = vsel %vm165, %v2368, 0.0
    %2372 = vadd.xlane.f32.xlu0 %v2371
    %v2373 = vpop.xlane.xlu0 %2372
    %v2374 = vsel %vm165, %v2370, 0.0
    %2375 = vadd.xlane.f32.xlu0 %v2374
    %v2376 = vpop.xlane.xlu0 %2375
    %v2377 = vrcp.pop %v2373
    %v2378 = vrcp.pop %v2376
    %v2379 = vmul.f32 %v2368, %v2377
    %v2380 = vmul.f32 %v2370, %v2378
    %2381 = vrot.lane.b32.xlu0 %v2197, 64
    %v2382 = vpop.permute.xlu0 %2381
    %v2385 = vsel %vm165, %v2379, 0
    %2387 = vmatprep.subr.mxu0 0.0
    %2388 = vmatpush1.msra.mxu0 %v2382
    %2389 = vmatprep.subr.mxu0 0.0
    %2390 = vmatpush1.msra.mxu0 0.0
    %2391 = vmatprep.subr.mxu0 0.0
    %2392 = vmatpush1.msra.mxu0 0.0
    %2393 = vmatprep.subr.mxu0 0.0
    %2394 = vmatpush1.msra.mxu0 0.0
    %2395 = vmatprep.subr.mxu0 0.0
    %2396 = vmatpush1.msra.mxu0 0.0
    %2397 = vmatprep.subr.mxu0 0.0
    %2398 = vmatpush1.msra.mxu0 0.0
    %2399 = vmatprep.subr.mxu0 0.0
    %2400 = vmatpush1.msra.mxu0 0.0
    %2401 = vmatprep.subr.mxu0 0.0
    %2402 = vmatpush1.msra.mxu0 0.0
    %2403 = vmatprep.subr.mxu0 0.0
    %2404 = vmatpush1.msra.mxu0 0.0
    %2405 = vmatprep.subr.mxu0 0.0
    %2406 = vmatpush1.msra.mxu0 0.0
    %2407 = vmatprep.subr.mxu0 0.0
    %2408 = vmatpush1.msra.mxu0 0.0
    %2409 = vmatprep.subr.mxu0 0.0
    %2410 = vmatpush1.msra.mxu0 0.0
    %2411 = vmatprep.subr.mxu0 0.0
    %2412 = vmatpush1.msra.mxu0 0.0
    %2413 = vmatprep.subr.mxu0 0.0
    %2414 = vmatpush1.msra.mxu0 0.0
    %2415 = vmatprep.subr.mxu0 0.0
    %2416 = vmatpush1.msra.mxu0 0.0
    %2417 = vmatprep.subr.mxu0 0.0
    %2418 = vmatpush1.msra.mxu0 0.0
    %2419 = vmatprep.subr.mxu0 0.0
    %2420 = vmatpush1.msra.mxu0 0.0
    %2421 = vmatprep.subr.mxu0 0.0
    %2422 = vmatpush1.msra.mxu0 0.0
    %2423 = vmatprep.subr.mxu0 0.0
    %2424 = vmatpush1.msra.mxu0 0.0
    %2425 = vmatprep.subr.mxu0 0.0
    %2426 = vmatpush1.msra.mxu0 0.0
    %2427 = vmatprep.subr.mxu0 0.0
    %2428 = vmatpush1.msra.mxu0 0.0
    %2429 = vmatprep.subr.mxu0 0.0
    %2430 = vmatpush1.msra.mxu0 0.0
    %2431 = vmatprep.subr.mxu0 0.0
    %2432 = vmatpush1.msra.mxu0 0.0
    %2433 = vmatprep.subr.mxu0 0.0
    %2434 = vmatpush1.msra.mxu0 0.0
    %2435 = vmatprep.subr.mxu0 0.0
    %2436 = vmatpush1.msra.mxu0 0.0
    %2437 = vmatprep.subr.mxu0 0.0
    %2438 = vmatpush1.msra.mxu0 0.0
    %2439 = vmatprep.subr.mxu0 0.0
    %2440 = vmatpush1.msra.mxu0 0.0
    %2441 = vmatprep.subr.mxu0 0.0
    %2442 = vmatpush1.msra.mxu0 0.0
    %2443 = vmatprep.subr.mxu0 0.0
    %2444 = vmatpush1.msra.mxu0 0.0
    %2445 = vmatprep.subr.mxu0 0.0
    %2446 = vmatpush1.msra.mxu0 0.0
    %2447 = vmatprep.subr.mxu0 0.0
    %2448 = vmatpush1.msra.mxu0 0.0
    %2449 = vmatprep.subr.mxu0 0.0
    %2450 = vmatpush1.msra.mxu0 0.0
    %2451 = vmatprep.mubr.f32.mxu0 0.0
    %2452 = vmatmul.mubr.f32.gmra.mrb[0].mxu0 %v2385
    %v2453 = vpop.f32.mrb[0].mxu0
    %v2454 = vadd.f32 0.0, %v2453
    %v2455 = vpop.f32.mrb[0].mxu0
    %2456 = vdwg.mxu0
    %2457 = vrot.lane.b32.xlu0 %v2202, 64
    %v2458 = vpop.permute.xlu0 %2457
    %v2461 = vsel %vm165, %v2380, 0
    %2463 = vmatprep.subr.mxu0 0.0
    %2464 = vmatpush1.msra.mxu0 %v2458
    %2465 = vmatprep.subr.mxu0 0.0
    %2466 = vmatpush1.msra.mxu0 0.0
    %2467 = vmatprep.subr.mxu0 0.0
    %2468 = vmatpush1.msra.mxu0 0.0
    %2469 = vmatprep.subr.mxu0 0.0
    %2470 = vmatpush1.msra.mxu0 0.0
    %2471 = vmatprep.subr.mxu0 0.0
    %2472 = vmatpush1.msra.mxu0 0.0
    %2473 = vmatprep.subr.mxu0 0.0
    %2474 = vmatpush1.msra.mxu0 0.0
    %2475 = vmatprep.subr.mxu0 0.0
    %2476 = vmatpush1.msra.mxu0 0.0
    %2477 = vmatprep.subr.mxu0 0.0
    %2478 = vmatpush1.msra.mxu0 0.0
    %2479 = vmatprep.subr.mxu0 0.0
    %2480 = vmatpush1.msra.mxu0 0.0
    %2481 = vmatprep.subr.mxu0 0.0
    %2482 = vmatpush1.msra.mxu0 0.0
    %2483 = vmatprep.subr.mxu0 0.0
    %2484 = vmatpush1.msra.mxu0 0.0
    %2485 = vmatprep.subr.mxu0 0.0
    %2486 = vmatpush1.msra.mxu0 0.0
    %2487 = vmatprep.subr.mxu0 0.0
    %2488 = vmatpush1.msra.mxu0 0.0
    %2489 = vmatprep.subr.mxu0 0.0
    %2490 = vmatpush1.msra.mxu0 0.0
    %2491 = vmatprep.subr.mxu0 0.0
    %2492 = vmatpush1.msra.mxu0 0.0
    %2493 = vmatprep.subr.mxu0 0.0
    %2494 = vmatpush1.msra.mxu0 0.0
    %2495 = vmatprep.subr.mxu0 0.0
    %2496 = vmatpush1.msra.mxu0 0.0
    %2497 = vmatprep.subr.mxu0 0.0
    %2498 = vmatpush1.msra.mxu0 0.0
    %2499 = vmatprep.subr.mxu0 0.0
    %2500 = vmatpush1.msra.mxu0 0.0
    %2501 = vmatprep.subr.mxu0 0.0
    %2502 = vmatpush1.msra.mxu0 0.0
    %2503 = vmatprep.subr.mxu0 0.0
    %2504 = vmatpush1.msra.mxu0 0.0
    %2505 = vmatprep.subr.mxu0 0.0
    %2506 = vmatpush1.msra.mxu0 0.0
    %2507 = vmatprep.subr.mxu0 0.0
    %2508 = vmatpush1.msra.mxu0 0.0
    %2509 = vmatprep.subr.mxu0 0.0
    %2510 = vmatpush1.msra.mxu0 0.0
    %2511 = vmatprep.subr.mxu0 0.0
    %2512 = vmatpush1.msra.mxu0 0.0
    %2513 = vmatprep.subr.mxu0 0.0
    %2514 = vmatpush1.msra.mxu0 0.0
    %2515 = vmatprep.subr.mxu0 0.0
    %2516 = vmatpush1.msra.mxu0 0.0
    %2517 = vmatprep.subr.mxu0 0.0
    %2518 = vmatpush1.msra.mxu0 0.0
    %2519 = vmatprep.subr.mxu0 0.0
    %2520 = vmatpush1.msra.mxu0 0.0
    %2521 = vmatprep.subr.mxu0 0.0
    %2522 = vmatpush1.msra.mxu0 0.0
    %2523 = vmatprep.subr.mxu0 0.0
    %2524 = vmatpush1.msra.mxu0 0.0
    %2525 = vmatprep.subr.mxu0 0.0
    %2526 = vmatpush1.msra.mxu0 0.0
    %2527 = vmatprep.mubr.f32.mxu0 0.0
    %2528 = vmatmul.mubr.f32.gmra.mrb[0].mxu0 %v2461
    %v2529 = vpop.f32.mrb[0].mxu0
    %v2530 = vadd.f32 0.0, %v2529
    %v2531 = vpop.f32.mrb[0].mxu0
    %2532 = vdwg.mxu0
    %2533 = vrot.lane.b32.xlu0 %v2197, 120
    %v2534 = vpop.permute.xlu0 %2533
    %2535 = vrot.lane.b32.xlu0 %v2197, 88
    %v2536 = vpop.permute.xlu0 %2535
    %v2537 = vsel %vm165, %v2534, 0
    %v2539 = vsel %vm165, %v2536, 0
    %2541 = vmatprep.subr.mxu0 0.0
    %2542 = vmatpush1.xpose.msra.mxu0 %v2539
    %2543 = vmatprep.subr.mxu0 0.0
    %2544 = vmatpush1.xpose.msra.mxu0 0.0
    %2545 = vmatprep.subr.mxu0 0.0
    %2546 = vmatpush1.xpose.msra.mxu0 0.0
    %2547 = vmatprep.subr.mxu0 0.0
    %2548 = vmatpush1.xpose.msra.mxu0 0.0
    %2549 = vmatprep.subr.mxu0 0.0
    %2550 = vmatpush1.xpose.msra.mxu0 0.0
    %2551 = vmatprep.subr.mxu0 0.0
    %2552 = vmatpush1.xpose.msra.mxu0 0.0
    %2553 = vmatprep.subr.mxu0 0.0
    %2554 = vmatpush1.xpose.msra.mxu0 0.0
    %2555 = vmatprep.subr.mxu0 0.0
    %2556 = vmatpush1.xpose.msra.mxu0 0.0
    %2557 = vmatprep.subr.mxu0 0.0
    %2558 = vmatpush1.xpose.msra.mxu0 0.0
    %2559 = vmatprep.subr.mxu0 0.0
    %2560 = vmatpush1.xpose.msra.mxu0 0.0
    %2561 = vmatprep.subr.mxu0 0.0
    %2562 = vmatpush1.xpose.msra.mxu0 0.0
    %2563 = vmatprep.subr.mxu0 0.0
    %2564 = vmatpush1.xpose.msra.mxu0 0.0
    %2565 = vmatprep.subr.mxu0 0.0
    %2566 = vmatpush1.xpose.msra.mxu0 0.0
    %2567 = vmatprep.subr.mxu0 0.0
    %2568 = vmatpush1.xpose.msra.mxu0 0.0
    %2569 = vmatprep.subr.mxu0 0.0
    %2570 = vmatpush1.xpose.msra.mxu0 0.0
    %2571 = vmatprep.subr.mxu0 0.0
    %2572 = vmatpush1.xpose.msra.mxu0 0.0
    %2573 = vmatprep.subr.mxu0 0.0
    %2574 = vmatpush1.xpose.msra.mxu0 0.0
    %2575 = vmatprep.subr.mxu0 0.0
    %2576 = vmatpush1.xpose.msra.mxu0 0.0
    %2577 = vmatprep.subr.mxu0 0.0
    %2578 = vmatpush1.xpose.msra.mxu0 0.0
    %2579 = vmatprep.subr.mxu0 0.0
    %2580 = vmatpush1.xpose.msra.mxu0 0.0
    %2581 = vmatprep.subr.mxu0 0.0
    %2582 = vmatpush1.xpose.msra.mxu0 0.0
    %2583 = vmatprep.subr.mxu0 0.0
    %2584 = vmatpush1.xpose.msra.mxu0 0.0
    %2585 = vmatprep.subr.mxu0 0.0
    %2586 = vmatpush1.xpose.msra.mxu0 0.0
    %2587 = vmatprep.subr.mxu0 0.0
    %2588 = vmatpush1.xpose.msra.mxu0 0.0
    %2589 = vmatprep.subr.mxu0 0.0
    %2590 = vmatpush1.xpose.msra.mxu0 0.0
    %2591 = vmatprep.subr.mxu0 0.0
    %2592 = vmatpush1.xpose.msra.mxu0 0.0
    %2593 = vmatprep.subr.mxu0 0.0
    %2594 = vmatpush1.xpose.msra.mxu0 0.0
    %2595 = vmatprep.subr.mxu0 0.0
    %2596 = vmatpush1.xpose.msra.mxu0 0.0
    %2597 = vmatprep.subr.mxu0 0.0
    %2598 = vmatpush1.xpose.msra.mxu0 0.0
    %2599 = vmatprep.subr.mxu0 0.0
    %2600 = vmatpush1.xpose.msra.mxu0 0.0
    %2601 = vmatprep.subr.mxu0 0.0
    %2602 = vmatpush1.xpose.msra.mxu0 0.0
    %2603 = vmatprep.subr.mxu0 0.0
    %2604 = vmatpush1.xpose.msra.mxu0 0.0
    %2605 = vmatprep.mubr.f32.mxu0 0.0
    %2606 = vmatmul.mubr.f32.gmra.mrb[0].mxu0 %v2537
    %v2607 = vpop.f32.mrb[0].mxu0
    %v2608 = vadd.f32 0.0, %v2607
    %v2609 = vpop.f32.mrb[0].mxu0
    %2610 = vdwg.mxu0
    %2611 = vrot.lane.b32.xlu0 %v2202, 120
    %v2612 = vpop.permute.xlu0 %2611
    %2613 = vrot.lane.b32.xlu0 %v2202, 88
    %v2614 = vpop.permute.xlu0 %2613
    %v2615 = vsel %vm165, %v2612, 0
    %v2617 = vsel %vm165, %v2614, 0
    %2619 = vmatprep.subr.mxu0 0.0
    %2620 = vmatpush1.xpose.msra.mxu0 %v2617
    %2621 = vmatprep.subr.mxu0 0.0
    %2622 = vmatpush1.xpose.msra.mxu0 0.0
    %2623 = vmatprep.subr.mxu0 0.0
    %2624 = vmatpush1.xpose.msra.mxu0 0.0
    %2625 = vmatprep.subr.mxu0 0.0
    %2626 = vmatpush1.xpose.msra.mxu0 0.0
    %2627 = vmatprep.subr.mxu0 0.0
    %2628 = vmatpush1.xpose.msra.mxu0 0.0
    %2629 = vmatprep.subr.mxu0 0.0
    %2630 = vmatpush1.xpose.msra.mxu0 0.0
    %2631 = vmatprep.subr.mxu0 0.0
    %2632 = vmatpush1.xpose.msra.mxu0 0.0
    %2633 = vmatprep.subr.mxu0 0.0
    %2634 = vmatpush1.xpose.msra.mxu0 0.0
    %2635 = vmatprep.subr.mxu0 0.0
    %2636 = vmatpush1.xpose.msra.mxu0 0.0
    %2637 = vmatprep.subr.mxu0 0.0
    %2638 = vmatpush1.xpose.msra.mxu0 0.0
    %2639 = vmatprep.subr.mxu0 0.0
    %2640 = vmatpush1.xpose.msra.mxu0 0.0
    %2641 = vmatprep.subr.mxu0 0.0
    %2642 = vmatpush1.xpose.msra.mxu0 0.0
    %2643 = vmatprep.subr.mxu0 0.0
    %2644 = vmatpush1.xpose.msra.mxu0 0.0
    %2645 = vmatprep.subr.mxu0 0.0
    %2646 = vmatpush1.xpose.msra.mxu0 0.0
    %2647 = vmatprep.subr.mxu0 0.0
    %2648 = vmatpush1.xpose.msra.mxu0 0.0
    %2649 = vmatprep.subr.mxu0 0.0
    %2650 = vmatpush1.xpose.msra.mxu0 0.0
    %2651 = vmatprep.subr.mxu0 0.0
    %2652 = vmatpush1.xpose.msra.mxu0 0.0
    %2653 = vmatprep.subr.mxu0 0.0
    %2654 = vmatpush1.xpose.msra.mxu0 0.0
    %2655 = vmatprep.subr.mxu0 0.0
    %2656 = vmatpush1.xpose.msra.mxu0 0.0
    %2657 = vmatprep.subr.mxu0 0.0
    %2658 = vmatpush1.xpose.msra.mxu0 0.0
    %2659 = vmatprep.subr.mxu0 0.0
    %2660 = vmatpush1.xpose.msra.mxu0 0.0
    %2661 = vmatprep.subr.mxu0 0.0
    %2662 = vmatpush1.xpose.msra.mxu0 0.0
    %2663 = vmatprep.subr.mxu0 0.0
    %2664 = vmatpush1.xpose.msra.mxu0 0.0
    %2665 = vmatprep.subr.mxu0 0.0
    %2666 = vmatpush1.xpose.msra.mxu0 0.0
    %2667 = vmatprep.subr.mxu0 0.0
    %2668 = vmatpush1.xpose.msra.mxu0 0.0
    %2669 = vmatprep.subr.mxu0 0.0
    %2670 = vmatpush1.xpose.msra.mxu0 0.0
    %2671 = vmatprep.subr.mxu0 0.0
    %2672 = vmatpush1.xpose.msra.mxu0 0.0
    %2673 = vmatprep.subr.mxu0 0.0
    %2674 = vmatpush1.xpose.msra.mxu0 0.0
    %2675 = vmatprep.subr.mxu0 0.0
    %2676 = vmatpush1.xpose.msra.mxu0 0.0
    %2677 = vmatprep.subr.mxu0 0.0
    %2678 = vmatpush1.xpose.msra.mxu0 0.0
    %2679 = vmatprep.subr.mxu0 0.0
    %2680 = vmatpush1.xpose.msra.mxu0 0.0
    %2681 = vmatprep.subr.mxu0 0.0
    %2682 = vmatpush1.xpose.msra.mxu0 0.0
    %2683 = vmatprep.mubr.f32.mxu0 0.0
    %2684 = vmatmul.mubr.f32.gmra.mrb[0].mxu0 %v2615
    %v2685 = vpop.f32.mrb[0].mxu0
    %v2686 = vadd.f32 0.0, %v2685
    %v2687 = vpop.f32.mrb[0].mxu0
    %2688 = vdwg.mxu0
    %v2689 = vsel %vm165, %v2608, -inf
    %2690 = vmax.xlane.f32.xlu0 %v2689
    %v2691 = vpop.xlane.xlu0 %2690
    %v2692 = vsel %vm165, %v2686, -inf
    %2693 = vmax.xlane.f32.xlu0 %v2692
    %v2694 = vpop.xlane.xlu0 %2693
    %v2695 = vsub.f32 %v2608, %v2691
    %v2696 = vsub.f32 %v2686, %v2694
    %v2697 = vmul.f32 %v2695, 1.442695
    %v2698 = vpow.pop %v2697
    %v2699 = vmul.f32 %v2696, 1.442695
    %v2700 = vpow.pop %v2699
    %v2701 = vsel %vm165, %v2698, 0.0
    %2702 = vadd.xlane.f32.xlu0 %v2701
    %v2703 = vpop.xlane.xlu0 %2702
    %v2704 = vsel %vm165, %v2700, 0.0
    %2705 = vadd.xlane.f32.xlu0 %v2704
    %v2706 = vpop.xlane.xlu0 %2705
    %v2707 = vrcp.pop %v2703
    %v2708 = vrcp.pop %v2706
    %v2709 = vmul.f32 %v2698, %v2707
    %v2710 = vmul.f32 %v2700, %v2708
    %2711 = vrot.lane.b32.xlu0 %v2197, 56
    %v2712 = vpop.permute.xlu0 %2711
    %v2715 = vsel %vm165, %v2709, 0
    %2717 = vmatprep.subr.mxu0 0.0
    %2718 = vmatpush1.msra.mxu0 %v2712
    %2719 = vmatprep.subr.mxu0 0.0
    %2720 = vmatpush1.msra.mxu0 0.0
    %2721 = vmatprep.subr.mxu0 0.0
    %2722 = vmatpush1.msra.mxu0 0.0
    %2723 = vmatprep.subr.mxu0 0.0
    %2724 = vmatpush1.msra.mxu0 0.0
    %2725 = vmatprep.subr.mxu0 0.0
    %2726 = vmatpush1.msra.mxu0 0.0
    %2727 = vmatprep.subr.mxu0 0.0
    %2728 = vmatpush1.msra.mxu0 0.0
    %2729 = vmatprep.subr.mxu0 0.0
    %2730 = vmatpush1.msra.mxu0 0.0
    %2731 = vmatprep.subr.mxu0 0.0
    %2732 = vmatpush1.msra.mxu0 0.0
    %2733 = vmatprep.subr.mxu0 0.0
    %2734 = vmatpush1.msra.mxu0 0.0
    %2735 = vmatprep.subr.mxu0 0.0
    %2736 = vmatpush1.msra.mxu0 0.0
    %2737 = vmatprep.subr.mxu0 0.0
    %2738 = vmatpush1.msra.mxu0 0.0
    %2739 = vmatprep.subr.mxu0 0.0
    %2740 = vmatpush1.msra.mxu0 0.0
    %2741 = vmatprep.subr.mxu0 0.0
    %2742 = vmatpush1.msra.mxu0 0.0
    %2743 = vmatprep.subr.mxu0 0.0
    %2744 = vmatpush1.msra.mxu0 0.0
    %2745 = vmatprep.subr.mxu0 0.0
    %2746 = vmatpush1.msra.mxu0 0.0
    %2747 = vmatprep.subr.mxu0 0.0
    %2748 = vmatpush1.msra.mxu0 0.0
    %2749 = vmatprep.subr.mxu0 0.0
    %2750 = vmatpush1.msra.mxu0 0.0
    %2751 = vmatprep.subr.mxu0 0.0
    %2752 = vmatpush1.msra.mxu0 0.0
    %2753 = vmatprep.subr.mxu0 0.0
    %2754 = vmatpush1.msra.mxu0 0.0
    %2755 = vmatprep.subr.mxu0 0.0
    %2756 = vmatpush1.msra.mxu0 0.0
    %2757 = vmatprep.subr.mxu0 0.0
    %2758 = vmatpush1.msra.mxu0 0.0
    %2759 = vmatprep.subr.mxu0 0.0
    %2760 = vmatpush1.msra.mxu0 0.0
    %2761 = vmatprep.subr.mxu0 0.0
    %2762 = vmatpush1.msra.mxu0 0.0
    %2763 = vmatprep.subr.mxu0 0.0
    %2764 = vmatpush1.msra.mxu0 0.0
    %2765 = vmatprep.subr.mxu0 0.0
    %2766 = vmatpush1.msra.mxu0 0.0
    %2767 = vmatprep.subr.mxu0 0.0
    %2768 = vmatpush1.msra.mxu0 0.0
    %2769 = vmatprep.subr.mxu0 0.0
    %2770 = vmatpush1.msra.mxu0 0.0
    %2771 = vmatprep.subr.mxu0 0.0
    %2772 = vmatpush1.msra.mxu0 0.0
    %2773 = vmatprep.subr.mxu0 0.0
    %2774 = vmatpush1.msra.mxu0 0.0
    %2775 = vmatprep.subr.mxu0 0.0
    %2776 = vmatpush1.msra.mxu0 0.0
    %2777 = vmatprep.subr.mxu0 0.0
    %2778 = vmatpush1.msra.mxu0 0.0
    %2779 = vmatprep.subr.mxu0 0.0
    %2780 = vmatpush1.msra.mxu0 0.0
    %2781 = vmatprep.mubr.f32.mxu0 0.0
    %2782 = vmatmul.mubr.f32.gmra.mrb[0].mxu0 %v2715
    %v2783 = vpop.f32.mrb[0].mxu0
    %v2784 = vadd.f32 0.0, %v2783
    %v2785 = vpop.f32.mrb[0].mxu0
    %2786 = vdwg.mxu0
    %2787 = vrot.lane.b32.xlu0 %v2202, 56
    %v2788 = vpop.permute.xlu0 %2787
    %v2791 = vsel %vm165, %v2710, 0
    %2793 = vmatprep.subr.mxu0 0.0
    %2794 = vmatpush1.msra.mxu0 %v2788
    %2795 = vmatprep.subr.mxu0 0.0
    %2796 = vmatpush1.msra.mxu0 0.0
    %2797 = vmatprep.subr.mxu0 0.0
    %2798 = vmatpush1.msra.mxu0 0.0
    %2799 = vmatprep.subr.mxu0 0.0
    %2800 = vmatpush1.msra.mxu0 0.0
    %2801 = vmatprep.subr.mxu0 0.0
    %2802 = vmatpush1.msra.mxu0 0.0
    %2803 = vmatprep.subr.mxu0 0.0
    %2804 = vmatpush1.msra.mxu0 0.0
    %2805 = vmatprep.subr.mxu0 0.0
    %2806 = vmatpush1.msra.mxu0 0.0
    %2807 = vmatprep.subr.mxu0 0.0
    %2808 = vmatpush1.msra.mxu0 0.0
    %2809 = vmatprep.subr.mxu0 0.0
    %2810 = vmatpush1.msra.mxu0 0.0
    %2811 = vmatprep.subr.mxu0 0.0
    %2812 = vmatpush1.msra.mxu0 0.0
    %2813 = vmatprep.subr.mxu0 0.0
    %2814 = vmatpush1.msra.mxu0 0.0
    %2815 = vmatprep.subr.mxu0 0.0
    %2816 = vmatpush1.msra.mxu0 0.0
    %2817 = vmatprep.subr.mxu0 0.0
    %2818 = vmatpush1.msra.mxu0 0.0
    %2819 = vmatprep.subr.mxu0 0.0
    %2820 = vmatpush1.msra.mxu0 0.0
    %2821 = vmatprep.subr.mxu0 0.0
    %2822 = vmatpush1.msra.mxu0 0.0
    %2823 = vmatprep.subr.mxu0 0.0
    %2824 = vmatpush1.msra.mxu0 0.0
    %2825 = vmatprep.subr.mxu0 0.0
    %2826 = vmatpush1.msra.mxu0 0.0
    %2827 = vmatprep.subr.mxu0 0.0
    %2828 = vmatpush1.msra.mxu0 0.0
    %2829 = vmatprep.subr.mxu0 0.0
    %2830 = vmatpush1.msra.mxu0 0.0
    %2831 = vmatprep.subr.mxu0 0.0
    %2832 = vmatpush1.msra.mxu0 0.0
    %2833 = vmatprep.subr.mxu0 0.0
    %2834 = vmatpush1.msra.mxu0 0.0
    %2835 = vmatprep.subr.mxu0 0.0
    %2836 = vmatpush1.msra.mxu0 0.0
    %2837 = vmatprep.subr.mxu0 0.0
    %2838 = vmatpush1.msra.mxu0 0.0
    %2839 = vmatprep.subr.mxu0 0.0
    %2840 = vmatpush1.msra.mxu0 0.0
    %2841 = vmatprep.subr.mxu0 0.0
    %2842 = vmatpush1.msra.mxu0 0.0
    %2843 = vmatprep.subr.mxu0 0.0
    %2844 = vmatpush1.msra.mxu0 0.0
    %2845 = vmatprep.subr.mxu0 0.0
    %2846 = vmatpush1.msra.mxu0 0.0
    %2847 = vmatprep.subr.mxu0 0.0
    %2848 = vmatpush1.msra.mxu0 0.0
    %2849 = vmatprep.subr.mxu0 0.0
    %2850 = vmatpush1.msra.mxu0 0.0
    %2851 = vmatprep.subr.mxu0 0.0
    %2852 = vmatpush1.msra.mxu0 0.0
    %2853 = vmatprep.subr.mxu0 0.0
    %2854 = vmatpush1.msra.mxu0 0.0
    %2855 = vmatprep.subr.mxu0 0.0
    %2856 = vmatpush1.msra.mxu0 0.0
    %2857 = vmatprep.mubr.f32.mxu0 0.0
    %2858 = vmatmul.mubr.f32.gmra.mrb[0].mxu0 %v2791
    %v2859 = vpop.f32.mrb[0].mxu0
    %v2860 = vadd.f32 0.0, %v2859
    %v2861 = vpop.f32.mrb[0].mxu0
    %2862 = vdwg.mxu0
    %2864 = vrot.lane.b32.xlu0 %v2065, 32
    %v2865 = vpop.permute.xlu0 %2864
    %v2868 = vsel %vm165, %v2784, 0
    %v2871 = vsel %vm165, %v2860, 0
    %2873 = vmatprep.subr.mxu0 0.0
    %2874 = vmatpush1.msra.mxu0 %v2865
    %2875 = vmatprep.subr.mxu0 0.0
    %2876 = vmatpush1.msra.mxu0 0.0
    %2877 = vmatprep.subr.mxu0 0.0
    %2878 = vmatpush1.msra.mxu0 0.0
    %2879 = vmatprep.subr.mxu0 0.0
    %2880 = vmatpush1.msra.mxu0 0.0
    %2881 = vmatprep.subr.mxu0 0.0
    %2882 = vmatpush1.msra.mxu0 0.0
    %2883 = vmatprep.subr.mxu0 0.0
    %2884 = vmatpush1.msra.mxu0 0.0
    %2885 = vmatprep.subr.mxu0 0.0
    %2886 = vmatpush1.msra.mxu0 0.0
    %2887 = vmatprep.subr.mxu0 0.0
    %2888 = vmatpush1.msra.mxu0 0.0
    %2889 = vmatprep.subr.mxu0 0.0
    %2890 = vmatpush1.msra.mxu0 0.0
    %2891 = vmatprep.subr.mxu0 0.0
    %2892 = vmatpush1.msra.mxu0 0.0
    %2893 = vmatprep.subr.mxu0 0.0
    %2894 = vmatpush1.msra.mxu0 0.0
    %2895 = vmatprep.subr.mxu0 0.0
    %2896 = vmatpush1.msra.mxu0 0.0
    %2897 = vmatprep.subr.mxu0 0.0
    %2898 = vmatpush1.msra.mxu0 0.0
    %2899 = vmatprep.subr.mxu0 0.0
    %2900 = vmatpush1.msra.mxu0 0.0
    %2901 = vmatprep.subr.mxu0 0.0
    %2902 = vmatpush1.msra.mxu0 0.0
    %2903 = vmatprep.subr.mxu0 0.0
    %2904 = vmatpush1.msra.mxu0 0.0
    %2905 = vmatprep.subr.mxu0 0.0
    %2906 = vmatpush1.msra.mxu0 0.0
    %2907 = vmatprep.subr.mxu0 0.0
    %2908 = vmatpush1.msra.mxu0 0.0
    %2909 = vmatprep.subr.mxu0 0.0
    %2910 = vmatpush1.msra.mxu0 0.0
    %2911 = vmatprep.subr.mxu0 0.0
    %2912 = vmatpush1.msra.mxu0 0.0
    %2913 = vmatprep.subr.mxu0 0.0
    %2914 = vmatpush1.msra.mxu0 0.0
    %2915 = vmatprep.subr.mxu0 0.0
    %2916 = vmatpush1.msra.mxu0 0.0
    %2917 = vmatprep.subr.mxu0 0.0
    %2918 = vmatpush1.msra.mxu0 0.0
    %2919 = vmatprep.subr.mxu0 0.0
    %2920 = vmatpush1.msra.mxu0 0.0
    %2921 = vmatprep.subr.mxu0 0.0
    %2922 = vmatpush1.msra.mxu0 0.0
    %2923 = vmatprep.subr.mxu0 0.0
    %2924 = vmatpush1.msra.mxu0 0.0
    %2925 = vmatprep.subr.mxu0 0.0
    %2926 = vmatpush1.msra.mxu0 0.0
    %2927 = vmatprep.subr.mxu0 0.0
    %2928 = vmatpush1.msra.mxu0 0.0
    %2929 = vmatprep.subr.mxu0 0.0
    %2930 = vmatpush1.msra.mxu0 0.0
    %2931 = vmatprep.subr.mxu0 0.0
    %2932 = vmatpush1.msra.mxu0 0.0
    %2933 = vmatprep.subr.mxu0 0.0
    %2934 = vmatpush1.msra.mxu0 0.0
    %2935 = vmatprep.subr.mxu0 0.0
    %2936 = vmatpush1.msra.mxu0 0.0
    %2937 = vmatprep.mubr.f32.mxu0 0.0
    %2938 = vmatmul.mubr.f32.gmra.mrb[0].mxu0 %v2868
    %v2939 = vpop.f32.mrb[0].mxu0
    %v2940 = vadd.f32 0.0, %v2939
    %v2941 = vpop.f32.mrb[0].mxu0
    %2942 = vmatprep.mubr.f32.mxu0 0.0
    %2943 = vmatmul.mubr.f32.gmra.mrb[0].mxu0 %v2871
    %v2944 = vpop.f32.mrb[0].mxu0
    %v2945 = vadd.f32 0.0, %v2944
    %v2946 = vpop.f32.mrb[0].mxu0
    %2947 = vdwg.mxu0
    %2949 = vrot.lane.b32.xlu0 %v2063, 32
    %v2950 = vpop.permute.xlu0 %2949
    %v2953 = vsel %vm165, %v2454, 0
    %v2956 = vsel %vm165, %v2530, 0
    %2958 = vmatprep.subr.mxu0 0.0
    %2959 = vmatpush1.msra.mxu0 %v2950
    %2960 = vmatprep.subr.mxu0 0.0
    %2961 = vmatpush1.msra.mxu0 0.0
    %2962 = vmatprep.subr.mxu0 0.0
    %2963 = vmatpush1.msra.mxu0 0.0
    %2964 = vmatprep.subr.mxu0 0.0
    %2965 = vmatpush1.msra.mxu0 0.0
    %2966 = vmatprep.subr.mxu0 0.0
    %2967 = vmatpush1.msra.mxu0 0.0
    %2968 = vmatprep.subr.mxu0 0.0
    %2969 = vmatpush1.msra.mxu0 0.0
    %2970 = vmatprep.subr.mxu0 0.0
    %2971 = vmatpush1.msra.mxu0 0.0
    %2972 = vmatprep.subr.mxu0 0.0
    %2973 = vmatpush1.msra.mxu0 0.0
    %2974 = vmatprep.subr.mxu0 0.0
    %2975 = vmatpush1.msra.mxu0 0.0
    %2976 = vmatprep.subr.mxu0 0.0
    %2977 = vmatpush1.msra.mxu0 0.0
    %2978 = vmatprep.subr.mxu0 0.0
    %2979 = vmatpush1.msra.mxu0 0.0
    %2980 = vmatprep.subr.mxu0 0.0
    %2981 = vmatpush1.msra.mxu0 0.0
    %2982 = vmatprep.subr.mxu0 0.0
    %2983 = vmatpush1.msra.mxu0 0.0
    %2984 = vmatprep.subr.mxu0 0.0
    %2985 = vmatpush1.msra.mxu0 0.0
    %2986 = vmatprep.subr.mxu0 0.0
    %2987 = vmatpush1.msra.mxu0 0.0
    %2988 = vmatprep.subr.mxu0 0.0
    %2989 = vmatpush1.msra.mxu0 0.0
    %2990 = vmatprep.subr.mxu0 0.0
    %2991 = vmatpush1.msra.mxu0 0.0
    %2992 = vmatprep.subr.mxu0 0.0
    %2993 = vmatpush1.msra.mxu0 0.0
    %2994 = vmatprep.subr.mxu0 0.0
    %2995 = vmatpush1.msra.mxu0 0.0
    %2996 = vmatprep.subr.mxu0 0.0
    %2997 = vmatpush1.msra.mxu0 0.0
    %2998 = vmatprep.subr.mxu0 0.0
    %2999 = vmatpush1.msra.mxu0 0.0
    %3000 = vmatprep.subr.mxu0 0.0
    %3001 = vmatpush1.msra.mxu0 0.0
    %3002 = vmatprep.subr.mxu0 0.0
    %3003 = vmatpush1.msra.mxu0 0.0
    %3004 = vmatprep.subr.mxu0 0.0
    %3005 = vmatpush1.msra.mxu0 0.0
    %3006 = vmatprep.subr.mxu0 0.0
    %3007 = vmatpush1.msra.mxu0 0.0
    %3008 = vmatprep.subr.mxu0 0.0
    %3009 = vmatpush1.msra.mxu0 0.0
    %3010 = vmatprep.subr.mxu0 0.0
    %3011 = vmatpush1.msra.mxu0 0.0
    %3012 = vmatprep.subr.mxu0 0.0
    %3013 = vmatpush1.msra.mxu0 0.0
    %3014 = vmatprep.subr.mxu0 0.0
    %3015 = vmatpush1.msra.mxu0 0.0
    %3016 = vmatprep.subr.mxu0 0.0
    %3017 = vmatpush1.msra.mxu0 0.0
    %3018 = vmatprep.subr.mxu0 0.0
    %3019 = vmatpush1.msra.mxu0 0.0
    %3020 = vmatprep.subr.mxu0 0.0
    %3021 = vmatpush1.msra.mxu0 0.0
    %3022 = vmatprep.mubr.f32.mxu0 0.0
    %3023 = vmatmul.mubr.f32.gmra.mrb[0].mxu0 %v2953
    %v3024 = vpop.f32.mrb[0].mxu0
    %v3025 = vadd.f32 %v2940, %v3024
    %v3026 = vpop.f32.mrb[0].mxu0
    %3027 = vmatprep.mubr.f32.mxu0 0.0
    %3028 = vmatmul.mubr.f32.gmra.mrb[0].mxu0 %v2956
    %v3029 = vpop.f32.mrb[0].mxu0
    %v3030 = vadd.f32 %v2945, %v3029
    %v3031 = vpop.f32.mrb[0].mxu0
    %3032 = vdwg.mxu0
    %3033 = vrot.lane.b32.xlu0 %v2197, 112
    %v3034 = vpop.permute.xlu0 %3033
    %3035 = vrot.lane.b32.xlu0 %v2197, 80
    %v3036 = vpop.permute.xlu0 %3035
    %v3037 = vsel %vm165, %v3034, 0
    %v3039 = vsel %vm165, %v3036, 0
    %3041 = vmatprep.subr.mxu0 0.0
    %3042 = vmatpush1.xpose.msra.mxu0 %v3039
    %3043 = vmatprep.subr.mxu0 0.0
    %3044 = vmatpush1.xpose.msra.mxu0 0.0
    %3045 = vmatprep.subr.mxu0 0.0
    %3046 = vmatpush1.xpose.msra.mxu0 0.0
    %3047 = vmatprep.subr.mxu0 0.0
    %3048 = vmatpush1.xpose.msra.mxu0 0.0
    %3049 = vmatprep.subr.mxu0 0.0
    %3050 = vmatpush1.xpose.msra.mxu0 0.0
    %3051 = vmatprep.subr.mxu0 0.0
    %3052 = vmatpush1.xpose.msra.mxu0 0.0
    %3053 = vmatprep.subr.mxu0 0.0
    %3054 = vmatpush1.xpose.msra.mxu0 0.0
    %3055 = vmatprep.subr.mxu0 0.0
    %3056 = vmatpush1.xpose.msra.mxu0 0.0
    %3057 = vmatprep.subr.mxu0 0.0
    %3058 = vmatpush1.xpose.msra.mxu0 0.0
    %3059 = vmatprep.subr.mxu0 0.0
    %3060 = vmatpush1.xpose.msra.mxu0 0.0
    %3061 = vmatprep.subr.mxu0 0.0
    %3062 = vmatpush1.xpose.msra.mxu0 0.0
    %3063 = vmatprep.subr.mxu0 0.0
    %3064 = vmatpush1.xpose.msra.mxu0 0.0
    %3065 = vmatprep.subr.mxu0 0.0
    %3066 = vmatpush1.xpose.msra.mxu0 0.0
    %3067 = vmatprep.subr.mxu0 0.0
    %3068 = vmatpush1.xpose.msra.mxu0 0.0
    %3069 = vmatprep.subr.mxu0 0.0
    %3070 = vmatpush1.xpose.msra.mxu0 0.0
    %3071 = vmatprep.subr.mxu0 0.0
    %3072 = vmatpush1.xpose.msra.mxu0 0.0
    %3073 = vmatprep.subr.mxu0 0.0
    %3074 = vmatpush1.xpose.msra.mxu0 0.0
    %3075 = vmatprep.subr.mxu0 0.0
    %3076 = vmatpush1.xpose.msra.mxu0 0.0
    %3077 = vmatprep.subr.mxu0 0.0
    %3078 = vmatpush1.xpose.msra.mxu0 0.0
    %3079 = vmatprep.subr.mxu0 0.0
    %3080 = vmatpush1.xpose.msra.mxu0 0.0
    %3081 = vmatprep.subr.mxu0 0.0
    %3082 = vmatpush1.xpose.msra.mxu0 0.0
    %3083 = vmatprep.subr.mxu0 0.0
    %3084 = vmatpush1.xpose.msra.mxu0 0.0
    %3085 = vmatprep.subr.mxu0 0.0
    %3086 = vmatpush1.xpose.msra.mxu0 0.0
    %3087 = vmatprep.subr.mxu0 0.0
    %3088 = vmatpush1.xpose.msra.mxu0 0.0
    %3089 = vmatprep.subr.mxu0 0.0
    %3090 = vmatpush1.xpose.msra.mxu0 0.0
    %3091 = vmatprep.subr.mxu0 0.0
    %3092 = vmatpush1.xpose.msra.mxu0 0.0
    %3093 = vmatprep.subr.mxu0 0.0
    %3094 = vmatpush1.xpose.msra.mxu0 0.0
    %3095 = vmatprep.subr.mxu0 0.0
    %3096 = vmatpush1.xpose.msra.mxu0 0.0
    %3097 = vmatprep.subr.mxu0 0.0
    %3098 = vmatpush1.xpose.msra.mxu0 0.0
    %3099 = vmatprep.subr.mxu0 0.0
    %3100 = vmatpush1.xpose.msra.mxu0 0.0
    %3101 = vmatprep.subr.mxu0 0.0
    %3102 = vmatpush1.xpose.msra.mxu0 0.0
    %3103 = vmatprep.subr.mxu0 0.0
    %3104 = vmatpush1.xpose.msra.mxu0 0.0
    %3105 = vmatprep.mubr.f32.mxu0 0.0
    %3106 = vmatmul.mubr.f32.gmra.mrb[0].mxu0 %v3037
    %v3107 = vpop.f32.mrb[0].mxu0
    %v3108 = vadd.f32 0.0, %v3107
    %v3109 = vpop.f32.mrb[0].mxu0
    %3110 = vdwg.mxu0
    %3111 = vrot.lane.b32.xlu0 %v2202, 112
    %v3112 = vpop.permute.xlu0 %3111
    %3113 = vrot.lane.b32.xlu0 %v2202, 80
    %v3114 = vpop.permute.xlu0 %3113
    %v3115 = vsel %vm165, %v3112, 0
    %v3117 = vsel %vm165, %v3114, 0
    %3119 = vmatprep.subr.mxu0 0.0
    %3120 = vmatpush1.xpose.msra.mxu0 %v3117
    %3121 = vmatprep.subr.mxu0 0.0
    %3122 = vmatpush1.xpose.msra.mxu0 0.0
    %3123 = vmatprep.subr.mxu0 0.0
    %3124 = vmatpush1.xpose.msra.mxu0 0.0
    %3125 = vmatprep.subr.mxu0 0.0
    %3126 = vmatpush1.xpose.msra.mxu0 0.0
    %3127 = vmatprep.subr.mxu0 0.0
    %3128 = vmatpush1.xpose.msra.mxu0 0.0
    %3129 = vmatprep.subr.mxu0 0.0
    %3130 = vmatpush1.xpose.msra.mxu0 0.0
    %3131 = vmatprep.subr.mxu0 0.0
    %3132 = vmatpush1.xpose.msra.mxu0 0.0
    %3133 = vmatprep.subr.mxu0 0.0
    %3134 = vmatpush1.xpose.msra.mxu0 0.0
    %3135 = vmatprep.subr.mxu0 0.0
    %3136 = vmatpush1.xpose.msra.mxu0 0.0
    %3137 = vmatprep.subr.mxu0 0.0
    %3138 = vmatpush1.xpose.msra.mxu0 0.0
    %3139 = vmatprep.subr.mxu0 0.0
    %3140 = vmatpush1.xpose.msra.mxu0 0.0
    %3141 = vmatprep.subr.mxu0 0.0
    %3142 = vmatpush1.xpose.msra.mxu0 0.0
    %3143 = vmatprep.subr.mxu0 0.0
    %3144 = vmatpush1.xpose.msra.mxu0 0.0
    %3145 = vmatprep.subr.mxu0 0.0
    %3146 = vmatpush1.xpose.msra.mxu0 0.0
    %3147 = vmatprep.subr.mxu0 0.0
    %3148 = vmatpush1.xpose.msra.mxu0 0.0
    %3149 = vmatprep.subr.mxu0 0.0
    %3150 = vmatpush1.xpose.msra.mxu0 0.0
    %3151 = vmatprep.subr.mxu0 0.0
    %3152 = vmatpush1.xpose.msra.mxu0 0.0
    %3153 = vmatprep.subr.mxu0 0.0
    %3154 = vmatpush1.xpose.msra.mxu0 0.0
    %3155 = vmatprep.subr.mxu0 0.0
    %3156 = vmatpush1.xpose.msra.mxu0 0.0
    %3157 = vmatprep.subr.mxu0 0.0
    %3158 = vmatpush1.xpose.msra.mxu0 0.0
    %3159 = vmatprep.subr.mxu0 0.0
    %3160 = vmatpush1.xpose.msra.mxu0 0.0
    %3161 = vmatprep.subr.mxu0 0.0
    %3162 = vmatpush1.xpose.msra.mxu0 0.0
    %3163 = vmatprep.subr.mxu0 0.0
    %3164 = vmatpush1.xpose.msra.mxu0 0.0
    %3165 = vmatprep.subr.mxu0 0.0
    %3166 = vmatpush1.xpose.msra.mxu0 0.0
    %3167 = vmatprep.subr.mxu0 0.0
    %3168 = vmatpush1.xpose.msra.mxu0 0.0
    %3169 = vmatprep.subr.mxu0 0.0
    %3170 = vmatpush1.xpose.msra.mxu0 0.0
    %3171 = vmatprep.subr.mxu0 0.0
    %3172 = vmatpush1.xpose.msra.mxu0 0.0
    %3173 = vmatprep.subr.mxu0 0.0
    %3174 = vmatpush1.xpose.msra.mxu0 0.0
    %3175 = vmatprep.subr.mxu0 0.0
    %3176 = vmatpush1.xpose.msra.mxu0 0.0
    %3177 = vmatprep.subr.mxu0 0.0
    %3178 = vmatpush1.xpose.msra.mxu0 0.0
    %3179 = vmatprep.subr.mxu0 0.0
    %3180 = vmatpush1.xpose.msra.mxu0 0.0
    %3181 = vmatprep.subr.mxu0 0.0
    %3182 = vmatpush1.xpose.msra.mxu0 0.0
    %3183 = vmatprep.mubr.f32.mxu0 0.0
    %3184 = vmatmul.mubr.f32.gmra.mrb[0].mxu0 %v3115
    %v3185 = vpop.f32.mrb[0].mxu0
    %v3186 = vadd.f32 0.0, %v3185
    %v3187 = vpop.f32.mrb[0].mxu0
    %3188 = vdwg.mxu0
    %v3189 = vsel %vm165, %v3108, -inf
    %3190 = vmax.xlane.f32.xlu0 %v3189
    %v3191 = vpop.xlane.xlu0 %3190
    %v3192 = vsel %vm165, %v3186, -inf
    %3193 = vmax.xlane.f32.xlu0 %v3192
    %v3194 = vpop.xlane.xlu0 %3193
    %v3195 = vsub.f32 %v3108, %v3191
    %v3196 = vsub.f32 %v3186, %v3194
    %v3197 = vmul.f32 %v3195, 1.442695
    %v3198 = vpow.pop %v3197
    %v3199 = vmul.f32 %v3196, 1.442695
    %v3200 = vpow.pop %v3199
    %v3201 = vsel %vm165, %v3198, 0.0
    %3202 = vadd.xlane.f32.xlu0 %v3201
    %v3203 = vpop.xlane.xlu0 %3202
    %v3204 = vsel %vm165, %v3200, 0.0
    %3205 = vadd.xlane.f32.xlu0 %v3204
    %v3206 = vpop.xlane.xlu0 %3205
    %v3207 = vrcp.pop %v3203
    %v3208 = vrcp.pop %v3206
    %v3209 = vmul.f32 %v3198, %v3207
    %v3210 = vmul.f32 %v3200, %v3208
    %3211 = vrot.lane.b32.xlu0 %v2197, 48
    %v3212 = vpop.permute.xlu0 %3211
    %v3215 = vsel %vm165, %v3209, 0
    %3217 = vmatprep.subr.mxu0 0.0
    %3218 = vmatpush1.msra.mxu0 %v3212
    %3219 = vmatprep.subr.mxu0 0.0
    %3220 = vmatpush1.msra.mxu0 0.0
    %3221 = vmatprep.subr.mxu0 0.0
    %3222 = vmatpush1.msra.mxu0 0.0
    %3223 = vmatprep.subr.mxu0 0.0
    %3224 = vmatpush1.msra.mxu0 0.0
    %3225 = vmatprep.subr.mxu0 0.0
    %3226 = vmatpush1.msra.mxu0 0.0
    %3227 = vmatprep.subr.mxu0 0.0
    %3228 = vmatpush1.msra.mxu0 0.0
    %3229 = vmatprep.subr.mxu0 0.0
    %3230 = vmatpush1.msra.mxu0 0.0
    %3231 = vmatprep.subr.mxu0 0.0
    %3232 = vmatpush1.msra.mxu0 0.0
    %3233 = vmatprep.subr.mxu0 0.0
    %3234 = vmatpush1.msra.mxu0 0.0
    %3235 = vmatprep.subr.mxu0 0.0
    %3236 = vmatpush1.msra.mxu0 0.0
    %3237 = vmatprep.subr.mxu0 0.0
    %3238 = vmatpush1.msra.mxu0 0.0
    %3239 = vmatprep.subr.mxu0 0.0
    %3240 = vmatpush1.msra.mxu0 0.0
    %3241 = vmatprep.subr.mxu0 0.0
    %3242 = vmatpush1.msra.mxu0 0.0
    %3243 = vmatprep.subr.mxu0 0.0
    %3244 = vmatpush1.msra.mxu0 0.0
    %3245 = vmatprep.subr.mxu0 0.0
    %3246 = vmatpush1.msra.mxu0 0.0
    %3247 = vmatprep.subr.mxu0 0.0
    %3248 = vmatpush1.msra.mxu0 0.0
    %3249 = vmatprep.subr.mxu0 0.0
    %3250 = vmatpush1.msra.mxu0 0.0
    %3251 = vmatprep.subr.mxu0 0.0
    %3252 = vmatpush1.msra.mxu0 0.0
    %3253 = vmatprep.subr.mxu0 0.0
    %3254 = vmatpush1.msra.mxu0 0.0
    %3255 = vmatprep.subr.mxu0 0.0
    %3256 = vmatpush1.msra.mxu0 0.0
    %3257 = vmatprep.subr.mxu0 0.0
    %3258 = vmatpush1.msra.mxu0 0.0
    %3259 = vmatprep.subr.mxu0 0.0
    %3260 = vmatpush1.msra.mxu0 0.0
    %3261 = vmatprep.subr.mxu0 0.0
    %3262 = vmatpush1.msra.mxu0 0.0
    %3263 = vmatprep.subr.mxu0 0.0
    %3264 = vmatpush1.msra.mxu0 0.0
    %3265 = vmatprep.subr.mxu0 0.0
    %3266 = vmatpush1.msra.mxu0 0.0
    %3267 = vmatprep.subr.mxu0 0.0
    %3268 = vmatpush1.msra.mxu0 0.0
    %3269 = vmatprep.subr.mxu0 0.0
    %3270 = vmatpush1.msra.mxu0 0.0
    %3271 = vmatprep.subr.mxu0 0.0
    %3272 = vmatpush1.msra.mxu0 0.0
    %3273 = vmatprep.subr.mxu0 0.0
    %3274 = vmatpush1.msra.mxu0 0.0
    %3275 = vmatprep.subr.mxu0 0.0
    %3276 = vmatpush1.msra.mxu0 0.0
    %3277 = vmatprep.subr.mxu0 0.0
    %3278 = vmatpush1.msra.mxu0 0.0
    %3279 = vmatprep.subr.mxu0 0.0
    %3280 = vmatpush1.msra.mxu0 0.0
    %3281 = vmatprep.mubr.f32.mxu0 0.0
    %3282 = vmatmul.mubr.f32.gmra.mrb[0].mxu0 %v3215
    %v3283 = vpop.f32.mrb[0].mxu0
    %v3284 = vadd.f32 0.0, %v3283
    %v3285 = vpop.f32.mrb[0].mxu0
    %3286 = vdwg.mxu0
    %3287 = vrot.lane.b32.xlu0 %v2202, 48
    %v3288 = vpop.permute.xlu0 %3287
    %v3291 = vsel %vm165, %v3210, 0
    %3293 = vmatprep.subr.mxu0 0.0
    %3294 = vmatpush1.msra.mxu0 %v3288
    %3295 = vmatprep.subr.mxu0 0.0
    %3296 = vmatpush1.msra.mxu0 0.0
    %3297 = vmatprep.subr.mxu0 0.0
    %3298 = vmatpush1.msra.mxu0 0.0
    %3299 = vmatprep.subr.mxu0 0.0
    %3300 = vmatpush1.msra.mxu0 0.0
    %3301 = vmatprep.subr.mxu0 0.0
    %3302 = vmatpush1.msra.mxu0 0.0
    %3303 = vmatprep.subr.mxu0 0.0
    %3304 = vmatpush1.msra.mxu0 0.0
    %3305 = vmatprep.subr.mxu0 0.0
    %3306 = vmatpush1.msra.mxu0 0.0
    %3307 = vmatprep.subr.mxu0 0.0
    %3308 = vmatpush1.msra.mxu0 0.0
    %3309 = vmatprep.subr.mxu0 0.0
    %3310 = vmatpush1.msra.mxu0 0.0
    %3311 = vmatprep.subr.mxu0 0.0
    %3312 = vmatpush1.msra.mxu0 0.0
    %3313 = vmatprep.subr.mxu0 0.0
    %3314 = vmatpush1.msra.mxu0 0.0
    %3315 = vmatprep.subr.mxu0 0.0
    %3316 = vmatpush1.msra.mxu0 0.0
    %3317 = vmatprep.subr.mxu0 0.0
    %3318 = vmatpush1.msra.mxu0 0.0
    %3319 = vmatprep.subr.mxu0 0.0
    %3320 = vmatpush1.msra.mxu0 0.0
    %3321 = vmatprep.subr.mxu0 0.0
    %3322 = vmatpush1.msra.mxu0 0.0
    %3323 = vmatprep.subr.mxu0 0.0
    %3324 = vmatpush1.msra.mxu0 0.0
    %3325 = vmatprep.subr.mxu0 0.0
    %3326 = vmatpush1.msra.mxu0 0.0
    %3327 = vmatprep.subr.mxu0 0.0
    %3328 = vmatpush1.msra.mxu0 0.0
    %3329 = vmatprep.subr.mxu0 0.0
    %3330 = vmatpush1.msra.mxu0 0.0
    %3331 = vmatprep.subr.mxu0 0.0
    %3332 = vmatpush1.msra.mxu0 0.0
    %3333 = vmatprep.subr.mxu0 0.0
    %3334 = vmatpush1.msra.mxu0 0.0
    %3335 = vmatprep.subr.mxu0 0.0
    %3336 = vmatpush1.msra.mxu0 0.0
    %3337 = vmatprep.subr.mxu0 0.0
    %3338 = vmatpush1.msra.mxu0 0.0
    %3339 = vmatprep.subr.mxu0 0.0
    %3340 = vmatpush1.msra.mxu0 0.0
    %3341 = vmatprep.subr.mxu0 0.0
    %3342 = vmatpush1.msra.mxu0 0.0
    %3343 = vmatprep.subr.mxu0 0.0
    %3344 = vmatpush1.msra.mxu0 0.0
    %3345 = vmatprep.subr.mxu0 0.0
    %3346 = vmatpush1.msra.mxu0 0.0
    %3347 = vmatprep.subr.mxu0 0.0
    %3348 = vmatpush1.msra.mxu0 0.0
    %3349 = vmatprep.subr.mxu0 0.0
    %3350 = vmatpush1.msra.mxu0 0.0
    %3351 = vmatprep.subr.mxu0 0.0
    %3352 = vmatpush1.msra.mxu0 0.0
    %3353 = vmatprep.subr.mxu0 0.0
    %3354 = vmatpush1.msra.mxu0 0.0
    %3355 = vmatprep.subr.mxu0 0.0
    %3356 = vmatpush1.msra.mxu0 0.0
    %3357 = vmatprep.mubr.f32.mxu0 0.0
    %3358 = vmatmul.mubr.f32.gmra.mrb[0].mxu0 %v3291
    %v3359 = vpop.f32.mrb[0].mxu0
    %v3360 = vadd.f32 0.0, %v3359
    %v3361 = vpop.f32.mrb[0].mxu0
    %3362 = vdwg.mxu0
    %3364 = vrot.lane.b32.xlu0 %v2067, 32
    %v3365 = vpop.permute.xlu0 %3364
    %v3368 = vsel %vm165, %v3284, 0
    %v3371 = vsel %vm165, %v3360, 0
    %3373 = vmatprep.subr.mxu0 0.0
    %3374 = vmatpush1.msra.mxu0 %v3365
    %3375 = vmatprep.subr.mxu0 0.0
    %3376 = vmatpush1.msra.mxu0 0.0
    %3377 = vmatprep.subr.mxu0 0.0
    %3378 = vmatpush1.msra.mxu0 0.0
    %3379 = vmatprep.subr.mxu0 0.0
    %3380 = vmatpush1.msra.mxu0 0.0
    %3381 = vmatprep.subr.mxu0 0.0
    %3382 = vmatpush1.msra.mxu0 0.0
    %3383 = vmatprep.subr.mxu0 0.0
    %3384 = vmatpush1.msra.mxu0 0.0
    %3385 = vmatprep.subr.mxu0 0.0
    %3386 = vmatpush1.msra.mxu0 0.0
    %3387 = vmatprep.subr.mxu0 0.0
    %3388 = vmatpush1.msra.mxu0 0.0
    %3389 = vmatprep.subr.mxu0 0.0
    %3390 = vmatpush1.msra.mxu0 0.0
    %3391 = vmatprep.subr.mxu0 0.0
    %3392 = vmatpush1.msra.mxu0 0.0
    %3393 = vmatprep.subr.mxu0 0.0
    %3394 = vmatpush1.msra.mxu0 0.0
    %3395 = vmatprep.subr.mxu0 0.0
    %3396 = vmatpush1.msra.mxu0 0.0
    %3397 = vmatprep.subr.mxu0 0.0
    %3398 = vmatpush1.msra.mxu0 0.0
    %3399 = vmatprep.subr.mxu0 0.0
    %3400 = vmatpush1.msra.mxu0 0.0
    %3401 = vmatprep.subr.mxu0 0.0
    %3402 = vmatpush1.msra.mxu0 0.0
    %3403 = vmatprep.subr.mxu0 0.0
    %3404 = vmatpush1.msra.mxu0 0.0
    %3405 = vmatprep.subr.mxu0 0.0
    %3406 = vmatpush1.msra.mxu0 0.0
    %3407 = vmatprep.subr.mxu0 0.0
    %3408 = vmatpush1.msra.mxu0 0.0
    %3409 = vmatprep.subr.mxu0 0.0
    %3410 = vmatpush1.msra.mxu0 0.0
    %3411 = vmatprep.subr.mxu0 0.0
    %3412 = vmatpush1.msra.mxu0 0.0
    %3413 = vmatprep.subr.mxu0 0.0
    %3414 = vmatpush1.msra.mxu0 0.0
    %3415 = vmatprep.subr.mxu0 0.0
    %3416 = vmatpush1.msra.mxu0 0.0
    %3417 = vmatprep.subr.mxu0 0.0
    %3418 = vmatpush1.msra.mxu0 0.0
    %3419 = vmatprep.subr.mxu0 0.0
    %3420 = vmatpush1.msra.mxu0 0.0
    %3421 = vmatprep.subr.mxu0 0.0
    %3422 = vmatpush1.msra.mxu0 0.0
    %3423 = vmatprep.subr.mxu0 0.0
    %3424 = vmatpush1.msra.mxu0 0.0
    %3425 = vmatprep.subr.mxu0 0.0
    %3426 = vmatpush1.msra.mxu0 0.0
    %3427 = vmatprep.subr.mxu0 0.0
    %3428 = vmatpush1.msra.mxu0 0.0
    %3429 = vmatprep.subr.mxu0 0.0
    %3430 = vmatpush1.msra.mxu0 0.0
    %3431 = vmatprep.subr.mxu0 0.0
    %3432 = vmatpush1.msra.mxu0 0.0
    %3433 = vmatprep.subr.mxu0 0.0
    %3434 = vmatpush1.msra.mxu0 0.0
    %3435 = vmatprep.subr.mxu0 0.0
    %3436 = vmatpush1.msra.mxu0 0.0
    %3437 = vmatprep.mubr.f32.mxu0 0.0
    %3438 = vmatmul.mubr.f32.gmra.mrb[0].mxu0 %v3368
    %v3439 = vpop.f32.mrb[0].mxu0
    %v3440 = vadd.f32 0.0, %v3439
    %v3441 = vpop.f32.mrb[0].mxu0
    %3442 = vmatprep.mubr.f32.mxu0 0.0
    %3443 = vmatmul.mubr.f32.gmra.mrb[0].mxu0 %v3371
    %v3444 = vpop.f32.mrb[0].mxu0
    %v3445 = vadd.f32 0.0, %v3444
    %v3446 = vpop.f32.mrb[0].mxu0
    %3447 = vdwg.mxu0
    %v3448 = vadd.f32 %v3025, %v3440
    %v3449 = vadd.f32 %v3030, %v3445
    %3450 = vrot.lane.b32.xlu0 %v2197, 104
    %v3451 = vpop.permute.xlu0 %3450
    %3452 = vrot.lane.b32.xlu0 %v2197, 72
    %v3453 = vpop.permute.xlu0 %3452
    %v3454 = vsel %vm165, %v3451, 0
    %v3456 = vsel %vm165, %v3453, 0
    %3458 = vmatprep.subr.mxu0 0.0
    %3459 = vmatpush1.xpose.msra.mxu0 %v3456
    %3460 = vmatprep.subr.mxu0 0.0
    %3461 = vmatpush1.xpose.msra.mxu0 0.0
    %3462 = vmatprep.subr.mxu0 0.0
    %3463 = vmatpush1.xpose.msra.mxu0 0.0
    %3464 = vmatprep.subr.mxu0 0.0
    %3465 = vmatpush1.xpose.msra.mxu0 0.0
    %3466 = vmatprep.subr.mxu0 0.0
    %3467 = vmatpush1.xpose.msra.mxu0 0.0
    %3468 = vmatprep.subr.mxu0 0.0
    %3469 = vmatpush1.xpose.msra.mxu0 0.0
    %3470 = vmatprep.subr.mxu0 0.0
    %3471 = vmatpush1.xpose.msra.mxu0 0.0
    %3472 = vmatprep.subr.mxu0 0.0
    %3473 = vmatpush1.xpose.msra.mxu0 0.0
    %3474 = vmatprep.subr.mxu0 0.0
    %3475 = vmatpush1.xpose.msra.mxu0 0.0
    %3476 = vmatprep.subr.mxu0 0.0
    %3477 = vmatpush1.xpose.msra.mxu0 0.0
    %3478 = vmatprep.subr.mxu0 0.0
    %3479 = vmatpush1.xpose.msra.mxu0 0.0
    %3480 = vmatprep.subr.mxu0 0.0
    %3481 = vmatpush1.xpose.msra.mxu0 0.0
    %3482 = vmatprep.subr.mxu0 0.0
    %3483 = vmatpush1.xpose.msra.mxu0 0.0
    %3484 = vmatprep.subr.mxu0 0.0
    %3485 = vmatpush1.xpose.msra.mxu0 0.0
    %3486 = vmatprep.subr.mxu0 0.0
    %3487 = vmatpush1.xpose.msra.mxu0 0.0
    %3488 = vmatprep.subr.mxu0 0.0
    %3489 = vmatpush1.xpose.msra.mxu0 0.0
    %3490 = vmatprep.subr.mxu0 0.0
    %3491 = vmatpush1.xpose.msra.mxu0 0.0
    %3492 = vmatprep.subr.mxu0 0.0
    %3493 = vmatpush1.xpose.msra.mxu0 0.0
    %3494 = vmatprep.subr.mxu0 0.0
    %3495 = vmatpush1.xpose.msra.mxu0 0.0
    %3496 = vmatprep.subr.mxu0 0.0
    %3497 = vmatpush1.xpose.msra.mxu0 0.0
    %3498 = vmatprep.subr.mxu0 0.0
    %3499 = vmatpush1.xpose.msra.mxu0 0.0
    %3500 = vmatprep.subr.mxu0 0.0
    %3501 = vmatpush1.xpose.msra.mxu0 0.0
    %3502 = vmatprep.subr.mxu0 0.0
    %3503 = vmatpush1.xpose.msra.mxu0 0.0
    %3504 = vmatprep.subr.mxu0 0.0
    %3505 = vmatpush1.xpose.msra.mxu0 0.0
    %3506 = vmatprep.subr.mxu0 0.0
    %3507 = vmatpush1.xpose.msra.mxu0 0.0
    %3508 = vmatprep.subr.mxu0 0.0
    %3509 = vmatpush1.xpose.msra.mxu0 0.0
    %3510 = vmatprep.subr.mxu0 0.0
    %3511 = vmatpush1.xpose.msra.mxu0 0.0
    %3512 = vmatprep.subr.mxu0 0.0
    %3513 = vmatpush1.xpose.msra.mxu0 0.0
    %3514 = vmatprep.subr.mxu0 0.0
    %3515 = vmatpush1.xpose.msra.mxu0 0.0
    %3516 = vmatprep.subr.mxu0 0.0
    %3517 = vmatpush1.xpose.msra.mxu0 0.0
    %3518 = vmatprep.subr.mxu0 0.0
    %3519 = vmatpush1.xpose.msra.mxu0 0.0
    %3520 = vmatprep.subr.mxu0 0.0
    %3521 = vmatpush1.xpose.msra.mxu0 0.0
    %3522 = vmatprep.mubr.f32.mxu0 0.0
    %3523 = vmatmul.mubr.f32.gmra.mrb[0].mxu0 %v3454
    %v3524 = vpop.f32.mrb[0].mxu0
    %v3525 = vadd.f32 0.0, %v3524
    %v3526 = vpop.f32.mrb[0].mxu0
    %3527 = vdwg.mxu0
    %3528 = vrot.lane.b32.xlu0 %v2202, 104
    %v3529 = vpop.permute.xlu0 %3528
    %3530 = vrot.lane.b32.xlu0 %v2202, 72
    %v3531 = vpop.permute.xlu0 %3530
    %v3532 = vsel %vm165, %v3529, 0
    %v3534 = vsel %vm165, %v3531, 0
    %3536 = vmatprep.subr.mxu0 0.0
    %3537 = vmatpush1.xpose.msra.mxu0 %v3534
    %3538 = vmatprep.subr.mxu0 0.0
    %3539 = vmatpush1.xpose.msra.mxu0 0.0
    %3540 = vmatprep.subr.mxu0 0.0
    %3541 = vmatpush1.xpose.msra.mxu0 0.0
    %3542 = vmatprep.subr.mxu0 0.0
    %3543 = vmatpush1.xpose.msra.mxu0 0.0
    %3544 = vmatprep.subr.mxu0 0.0
    %3545 = vmatpush1.xpose.msra.mxu0 0.0
    %3546 = vmatprep.subr.mxu0 0.0
    %3547 = vmatpush1.xpose.msra.mxu0 0.0
    %3548 = vmatprep.subr.mxu0 0.0
    %3549 = vmatpush1.xpose.msra.mxu0 0.0
    %3550 = vmatprep.subr.mxu0 0.0
    %3551 = vmatpush1.xpose.msra.mxu0 0.0
    %3552 = vmatprep.subr.mxu0 0.0
    %3553 = vmatpush1.xpose.msra.mxu0 0.0
    %3554 = vmatprep.subr.mxu0 0.0
    %3555 = vmatpush1.xpose.msra.mxu0 0.0
    %3556 = vmatprep.subr.mxu0 0.0
    %3557 = vmatpush1.xpose.msra.mxu0 0.0
    %3558 = vmatprep.subr.mxu0 0.0
    %3559 = vmatpush1.xpose.msra.mxu0 0.0
    %3560 = vmatprep.subr.mxu0 0.0
    %3561 = vmatpush1.xpose.msra.mxu0 0.0
    %3562 = vmatprep.subr.mxu0 0.0
    %3563 = vmatpush1.xpose.msra.mxu0 0.0
    %3564 = vmatprep.subr.mxu0 0.0
    %3565 = vmatpush1.xpose.msra.mxu0 0.0
    %3566 = vmatprep.subr.mxu0 0.0
    %3567 = vmatpush1.xpose.msra.mxu0 0.0
    %3568 = vmatprep.subr.mxu0 0.0
    %3569 = vmatpush1.xpose.msra.mxu0 0.0
    %3570 = vmatprep.subr.mxu0 0.0
    %3571 = vmatpush1.xpose.msra.mxu0 0.0
    %3572 = vmatprep.subr.mxu0 0.0
    %3573 = vmatpush1.xpose.msra.mxu0 0.0
    %3574 = vmatprep.subr.mxu0 0.0
    %3575 = vmatpush1.xpose.msra.mxu0 0.0
    %3576 = vmatprep.subr.mxu0 0.0
    %3577 = vmatpush1.xpose.msra.mxu0 0.0
    %3578 = vmatprep.subr.mxu0 0.0
    %3579 = vmatpush1.xpose.msra.mxu0 0.0
    %3580 = vmatprep.subr.mxu0 0.0
    %3581 = vmatpush1.xpose.msra.mxu0 0.0
    %3582 = vmatprep.subr.mxu0 0.0
    %3583 = vmatpush1.xpose.msra.mxu0 0.0
    %3584 = vmatprep.subr.mxu0 0.0
    %3585 = vmatpush1.xpose.msra.mxu0 0.0
    %3586 = vmatprep.subr.mxu0 0.0
    %3587 = vmatpush1.xpose.msra.mxu0 0.0
    %3588 = vmatprep.subr.mxu0 0.0
    %3589 = vmatpush1.xpose.msra.mxu0 0.0
    %3590 = vmatprep.subr.mxu0 0.0
    %3591 = vmatpush1.xpose.msra.mxu0 0.0
    %3592 = vmatprep.subr.mxu0 0.0
    %3593 = vmatpush1.xpose.msra.mxu0 0.0
    %3594 = vmatprep.subr.mxu0 0.0
    %3595 = vmatpush1.xpose.msra.mxu0 0.0
    %3596 = vmatprep.subr.mxu0 0.0
    %3597 = vmatpush1.xpose.msra.mxu0 0.0
    %3598 = vmatprep.subr.mxu0 0.0
    %3599 = vmatpush1.xpose.msra.mxu0 0.0
    %3600 = vmatprep.mubr.f32.mxu0 0.0
    %3601 = vmatmul.mubr.f32.gmra.mrb[0].mxu0 %v3532
    %v3602 = vpop.f32.mrb[0].mxu0
    %v3603 = vadd.f32 0.0, %v3602
    %v3604 = vpop.f32.mrb[0].mxu0
    %3605 = vdwg.mxu0
    %v3606 = vsel %vm165, %v3525, -inf
    %3607 = vmax.xlane.f32.xlu0 %v3606
    %v3608 = vpop.xlane.xlu0 %3607
    %v3609 = vsel %vm165, %v3603, -inf
    %3610 = vmax.xlane.f32.xlu0 %v3609
    %v3611 = vpop.xlane.xlu0 %3610
    %v3612 = vsub.f32 %v3525, %v3608
    %v3613 = vsub.f32 %v3603, %v3611
    %v3614 = vmul.f32 %v3612, 1.442695
    %v3615 = vpow.pop %v3614
    %v3616 = vmul.f32 %v3613, 1.442695
    %v3617 = vpow.pop %v3616
    %v3618 = vsel %vm165, %v3615, 0.0
    %3619 = vadd.xlane.f32.xlu0 %v3618
    %v3620 = vpop.xlane.xlu0 %3619
    %v3621 = vsel %vm165, %v3617, 0.0
    %3622 = vadd.xlane.f32.xlu0 %v3621
    %v3623 = vpop.xlane.xlu0 %3622
    %v3624 = vrcp.pop %v3620
    %v3625 = vrcp.pop %v3623
    %v3626 = vmul.f32 %v3615, %v3624
    %v3627 = vmul.f32 %v3617, %v3625
    %3628 = vrot.lane.b32.xlu0 %v2197, 40
    %v3629 = vpop.permute.xlu0 %3628
    %v3632 = vsel %vm165, %v3626, 0
    %3634 = vmatprep.subr.mxu0 0.0
    %3635 = vmatpush1.msra.mxu0 %v3629
    %3636 = vmatprep.subr.mxu0 0.0
    %3637 = vmatpush1.msra.mxu0 0.0
    %3638 = vmatprep.subr.mxu0 0.0
    %3639 = vmatpush1.msra.mxu0 0.0
    %3640 = vmatprep.subr.mxu0 0.0
    %3641 = vmatpush1.msra.mxu0 0.0
    %3642 = vmatprep.subr.mxu0 0.0
    %3643 = vmatpush1.msra.mxu0 0.0
    %3644 = vmatprep.subr.mxu0 0.0
    %3645 = vmatpush1.msra.mxu0 0.0
    %3646 = vmatprep.subr.mxu0 0.0
    %3647 = vmatpush1.msra.mxu0 0.0
    %3648 = vmatprep.subr.mxu0 0.0
    %3649 = vmatpush1.msra.mxu0 0.0
    %3650 = vmatprep.subr.mxu0 0.0
    %3651 = vmatpush1.msra.mxu0 0.0
    %3652 = vmatprep.subr.mxu0 0.0
    %3653 = vmatpush1.msra.mxu0 0.0
    %3654 = vmatprep.subr.mxu0 0.0
    %3655 = vmatpush1.msra.mxu0 0.0
    %3656 = vmatprep.subr.mxu0 0.0
    %3657 = vmatpush1.msra.mxu0 0.0
    %3658 = vmatprep.subr.mxu0 0.0
    %3659 = vmatpush1.msra.mxu0 0.0
    %3660 = vmatprep.subr.mxu0 0.0
    %3661 = vmatpush1.msra.mxu0 0.0
    %3662 = vmatprep.subr.mxu0 0.0
    %3663 = vmatpush1.msra.mxu0 0.0
    %3664 = vmatprep.subr.mxu0 0.0
    %3665 = vmatpush1.msra.mxu0 0.0
    %3666 = vmatprep.subr.mxu0 0.0
    %3667 = vmatpush1.msra.mxu0 0.0
    %3668 = vmatprep.subr.mxu0 0.0
    %3669 = vmatpush1.msra.mxu0 0.0
    %3670 = vmatprep.subr.mxu0 0.0
    %3671 = vmatpush1.msra.mxu0 0.0
    %3672 = vmatprep.subr.mxu0 0.0
    %3673 = vmatpush1.msra.mxu0 0.0
    %3674 = vmatprep.subr.mxu0 0.0
    %3675 = vmatpush1.msra.mxu0 0.0
    %3676 = vmatprep.subr.mxu0 0.0
    %3677 = vmatpush1.msra.mxu0 0.0
    %3678 = vmatprep.subr.mxu0 0.0
    %3679 = vmatpush1.msra.mxu0 0.0
    %3680 = vmatprep.subr.mxu0 0.0
    %3681 = vmatpush1.msra.mxu0 0.0
    %3682 = vmatprep.subr.mxu0 0.0
    %3683 = vmatpush1.msra.mxu0 0.0
    %3684 = vmatprep.subr.mxu0 0.0
    %3685 = vmatpush1.msra.mxu0 0.0
    %3686 = vmatprep.subr.mxu0 0.0
    %3687 = vmatpush1.msra.mxu0 0.0
    %3688 = vmatprep.subr.mxu0 0.0
    %3689 = vmatpush1.msra.mxu0 0.0
    %3690 = vmatprep.subr.mxu0 0.0
    %3691 = vmatpush1.msra.mxu0 0.0
    %3692 = vmatprep.subr.mxu0 0.0
    %3693 = vmatpush1.msra.mxu0 0.0
    %3694 = vmatprep.subr.mxu0 0.0
    %3695 = vmatpush1.msra.mxu0 0.0
    %3696 = vmatprep.subr.mxu0 0.0
    %3697 = vmatpush1.msra.mxu0 0.0
    %3698 = vmatprep.mubr.f32.mxu0 0.0
    %3699 = vmatmul.mubr.f32.gmra.mrb[0].mxu0 %v3632
    %v3700 = vpop.f32.mrb[0].mxu0
    %v3701 = vadd.f32 0.0, %v3700
    %v3702 = vpop.f32.mrb[0].mxu0
    %3703 = vdwg.mxu0
    %3704 = vrot.lane.b32.xlu0 %v2202, 40
    %v3705 = vpop.permute.xlu0 %3704
    %v3708 = vsel %vm165, %v3627, 0
    %3710 = vmatprep.subr.mxu0 0.0
    %3711 = vmatpush1.msra.mxu0 %v3705
    %3712 = vmatprep.subr.mxu0 0.0
    %3713 = vmatpush1.msra.mxu0 0.0
    %3714 = vmatprep.subr.mxu0 0.0
    %3715 = vmatpush1.msra.mxu0 0.0
    %3716 = vmatprep.subr.mxu0 0.0
    %3717 = vmatpush1.msra.mxu0 0.0
    %3718 = vmatprep.subr.mxu0 0.0
    %3719 = vmatpush1.msra.mxu0 0.0
    %3720 = vmatprep.subr.mxu0 0.0
    %3721 = vmatpush1.msra.mxu0 0.0
    %3722 = vmatprep.subr.mxu0 0.0
    %3723 = vmatpush1.msra.mxu0 0.0
    %3724 = vmatprep.subr.mxu0 0.0
    %3725 = vmatpush1.msra.mxu0 0.0
    %3726 = vmatprep.subr.mxu0 0.0
    %3727 = vmatpush1.msra.mxu0 0.0
    %3728 = vmatprep.subr.mxu0 0.0
    %3729 = vmatpush1.msra.mxu0 0.0
    %3730 = vmatprep.subr.mxu0 0.0
    %3731 = vmatpush1.msra.mxu0 0.0
    %3732 = vmatprep.subr.mxu0 0.0
    %3733 = vmatpush1.msra.mxu0 0.0
    %3734 = vmatprep.subr.mxu0 0.0
    %3735 = vmatpush1.msra.mxu0 0.0
    %3736 = vmatprep.subr.mxu0 0.0
    %3737 = vmatpush1.msra.mxu0 0.0
    %3738 = vmatprep.subr.mxu0 0.0
    %3739 = vmatpush1.msra.mxu0 0.0
    %3740 = vmatprep.subr.mxu0 0.0
    %3741 = vmatpush1.msra.mxu0 0.0
    %3742 = vmatprep.subr.mxu0 0.0
    %3743 = vmatpush1.msra.mxu0 0.0
    %3744 = vmatprep.subr.mxu0 0.0
    %3745 = vmatpush1.msra.mxu0 0.0
    %3746 = vmatprep.subr.mxu0 0.0
    %3747 = vmatpush1.msra.mxu0 0.0
    %3748 = vmatprep.subr.mxu0 0.0
    %3749 = vmatpush1.msra.mxu0 0.0
    %3750 = vmatprep.subr.mxu0 0.0
    %3751 = vmatpush1.msra.mxu0 0.0
    %3752 = vmatprep.subr.mxu0 0.0
    %3753 = vmatpush1.msra.mxu0 0.0
    %3754 = vmatprep.subr.mxu0 0.0
    %3755 = vmatpush1.msra.mxu0 0.0
    %3756 = vmatprep.subr.mxu0 0.0
    %3757 = vmatpush1.msra.mxu0 0.0
    %3758 = vmatprep.subr.mxu0 0.0
    %3759 = vmatpush1.msra.mxu0 0.0
    %3760 = vmatprep.subr.mxu0 0.0
    %3761 = vmatpush1.msra.mxu0 0.0
    %3762 = vmatprep.subr.mxu0 0.0
    %3763 = vmatpush1.msra.mxu0 0.0
    %3764 = vmatprep.subr.mxu0 0.0
    %3765 = vmatpush1.msra.mxu0 0.0
    %3766 = vmatprep.subr.mxu0 0.0
    %3767 = vmatpush1.msra.mxu0 0.0
    %3768 = vmatprep.subr.mxu0 0.0
    %3769 = vmatpush1.msra.mxu0 0.0
    %3770 = vmatprep.subr.mxu0 0.0
    %3771 = vmatpush1.msra.mxu0 0.0
    %3772 = vmatprep.subr.mxu0 0.0
    %3773 = vmatpush1.msra.mxu0 0.0
    %3774 = vmatprep.mubr.f32.mxu0 0.0
    %3775 = vmatmul.mubr.f32.gmra.mrb[0].mxu0 %v3708
    %v3776 = vpop.f32.mrb[0].mxu0
    %v3777 = vadd.f32 0.0, %v3776
    %v3778 = vpop.f32.mrb[0].mxu0
    %3779 = vdwg.mxu0
    %3781 = vrot.lane.b32.xlu0 %v2069, 32
    %v3782 = vpop.permute.xlu0 %3781
    %v3785 = vsel %vm165, %v3701, 0
    %v3788 = vsel %vm165, %v3777, 0
    %3790 = vmatprep.subr.mxu0 0.0
    %3791 = vmatpush1.msra.mxu0 %v3782
    %3792 = vmatprep.subr.mxu0 0.0
    %3793 = vmatpush1.msra.mxu0 0.0
    %3794 = vmatprep.subr.mxu0 0.0
    %3795 = vmatpush1.msra.mxu0 0.0
    %3796 = vmatprep.subr.mxu0 0.0
    %3797 = vmatpush1.msra.mxu0 0.0
    %3798 = vmatprep.subr.mxu0 0.0
    %3799 = vmatpush1.msra.mxu0 0.0
    %3800 = vmatprep.subr.mxu0 0.0
    %3801 = vmatpush1.msra.mxu0 0.0
    %3802 = vmatprep.subr.mxu0 0.0
    %3803 = vmatpush1.msra.mxu0 0.0
    %3804 = vmatprep.subr.mxu0 0.0
    %3805 = vmatpush1.msra.mxu0 0.0
    %3806 = vmatprep.subr.mxu0 0.0
    %3807 = vmatpush1.msra.mxu0 0.0
    %3808 = vmatprep.subr.mxu0 0.0
    %3809 = vmatpush1.msra.mxu0 0.0
    %3810 = vmatprep.subr.mxu0 0.0
    %3811 = vmatpush1.msra.mxu0 0.0
    %3812 = vmatprep.subr.mxu0 0.0
    %3813 = vmatpush1.msra.mxu0 0.0
    %3814 = vmatprep.subr.mxu0 0.0
    %3815 = vmatpush1.msra.mxu0 0.0
    %3816 = vmatprep.subr.mxu0 0.0
    %3817 = vmatpush1.msra.mxu0 0.0
    %3818 = vmatprep.subr.mxu0 0.0
    %3819 = vmatpush1.msra.mxu0 0.0
    %3820 = vmatprep.subr.mxu0 0.0
    %3821 = vmatpush1.msra.mxu0 0.0
    %3822 = vmatprep.subr.mxu0 0.0
    %3823 = vmatpush1.msra.mxu0 0.0
    %3824 = vmatprep.subr.mxu0 0.0
    %3825 = vmatpush1.msra.mxu0 0.0
    %3826 = vmatprep.subr.mxu0 0.0
    %3827 = vmatpush1.msra.mxu0 0.0
    %3828 = vmatprep.subr.mxu0 0.0
    %3829 = vmatpush1.msra.mxu0 0.0
    %3830 = vmatprep.subr.mxu0 0.0
    %3831 = vmatpush1.msra.mxu0 0.0
    %3832 = vmatprep.subr.mxu0 0.0
    %3833 = vmatpush1.msra.mxu0 0.0
    %3834 = vmatprep.subr.mxu0 0.0
    %3835 = vmatpush1.msra.mxu0 0.0
    %3836 = vmatprep.subr.mxu0 0.0
    %3837 = vmatpush1.msra.mxu0 0.0
    %3838 = vmatprep.subr.mxu0 0.0
    %3839 = vmatpush1.msra.mxu0 0.0
    %3840 = vmatprep.subr.mxu0 0.0
    %3841 = vmatpush1.msra.mxu0 0.0
    %3842 = vmatprep.subr.mxu0 0.0
    %3843 = vmatpush1.msra.mxu0 0.0
    %3844 = vmatprep.subr.mxu0 0.0
    %3845 = vmatpush1.msra.mxu0 0.0
    %3846 = vmatprep.subr.mxu0 0.0
    %3847 = vmatpush1.msra.mxu0 0.0
    %3848 = vmatprep.subr.mxu0 0.0
    %3849 = vmatpush1.msra.mxu0 0.0
    %3850 = vmatprep.subr.mxu0 0.0
    %3851 = vmatpush1.msra.mxu0 0.0
    %3852 = vmatprep.subr.mxu0 0.0
    %3853 = vmatpush1.msra.mxu0 0.0
    %3854 = vmatprep.mubr.f32.mxu0 0.0
    %3855 = vmatmul.mubr.f32.gmra.mrb[0].mxu0 %v3785
    %v3856 = vpop.f32.mrb[0].mxu0
    %v3857 = vadd.f32 0.0, %v3856
    %v3858 = vpop.f32.mrb[0].mxu0
    %3859 = vmatprep.mubr.f32.mxu0 0.0
    %3860 = vmatmul.mubr.f32.gmra.mrb[0].mxu0 %v3788
    %v3861 = vpop.f32.mrb[0].mxu0
    %v3862 = vadd.f32 0.0, %v3861
    %v3863 = vpop.f32.mrb[0].mxu0
    %3864 = vdwg.mxu0
    %v3865 = vadd.f32 %v3448, %v3857
    %v3866 = vadd.f32 %v3449, %v3862
    %v3867 = vlaneseq
    %v3868 = vshrl.u32 %v3867, 7
    %v3869 = vsub.s32 1, %v3868
    %v3870 = vrot.slane %v2081, %v3869
    %v3871 = vadd.f32 %v3865, %v3870
    %v3872 = vadd.f32 %v3866, %v3870
    %v3873 = vadd.f32 %v2060, %v3871
    %v3874 = vadd.f32 %v2061, %v3872
    %v3875 = vsel %vm37, %v3873, 0.0
    %3876 = vadd.xlane.f32.xlu0 %v3875
    %v3877 = vpop.xlane.xlu0 %3876
    %v3878 = vsel %vm37, %v3874, 0.0
    %3879 = vadd.xlane.f32.xlu0 %v3878
    %v3880 = vpop.xlane.xlu0 %3879
    %v3881 = vmul.f32 %v3877, %v44
    %v3882 = vmul.f32 %v3880, %v44
    %v3883 = vsub.f32 %v3873, %v3881
    %v3884 = vsub.f32 %v3874, %v3882
    %v3885 = vmul.f32 %v3883, %v3883
    %v3886 = vmul.f32 %v3884, %v3884
    %v3887 = vsel %vm37, %v3885, 0.0
    %3888 = vadd.xlane.f32.xlu0 %v3887
    %v3889 = vpop.xlane.xlu0 %3888
    %v3890 = vsel %vm37, %v3886, 0.0
    %3891 = vadd.xlane.f32.xlu0 %v3890
    %v3892 = vpop.xlane.xlu0 %3891
    %v3893 = vmul.f32 %v3889, %v44
    %v3894 = vmul.f32 %v3892, %v44
    %v3895 = vadd.f32 %v3893, 1e-05
    %v3896 = vadd.f32 %v3894, 1e-05
    %v3897 = vrsqrt.pop %v3895
    %v3898 = vrsqrt.pop %v3896
    %v3899 = vmul.f32 %v3883, %v3897
    %v3900 = vmul.f32 %v3884, %v3898
    %v3901 = vlaneseq
    %v3902 = vshrl.u32 %v3901, 7
    %v3903 = vsub.s32 4, %v3902
    %v3904 = vrot.slane %v2081, %v3903
    %v3905 = vmul.f32 %v3899, %v3904
    %v3906 = vmul.f32 %v3900, %v3904
    %v3907 = vlaneseq
    %v3908 = vshrl.u32 %v3907, 7
    %v3909 = vsub.s32 5, %v3908
    %v3910 = vrot.slane %v2081, %v3909
    %v3911 = vadd.f32 %v3905, %v3910
    %v3912 = vadd.f32 %v3906, %v3910
    %v3913 = vlaneseq
    %v3914 = vshrl.u32 %v3913, 7
    %v3915 = vsub.s32 6, %v3914
    %v3916 = vrot.slane %v2081, %v3915
    %v3918 = vsel %vm37, %v3911, 0
    %v3921 = vsel %vm37, %v3912, 0
    %3923 = vmatprep.subr.mxu0 0.0
    %3924 = vmatpush1.msra.mxu0 %v2064
    %3925 = vmatprep.subr.mxu0 0.0
    %3926 = vmatpush1.msra.mxu0 %v2066
    %3927 = vmatprep.subr.mxu0 0.0
    %3928 = vmatpush1.msra.mxu0 %v2068
    %3929 = vmatprep.subr.mxu0 0.0
    %3930 = vmatpush1.msra.mxu0 %v2070
    %3931 = vmatprep.subr.mxu0 0.0
    %3932 = vmatpush1.msra.mxu0 0.0
    %3933 = vmatprep.subr.mxu0 0.0
    %3934 = vmatpush1.msra.mxu0 0.0
    %3935 = vmatprep.subr.mxu0 0.0
    %3936 = vmatpush1.msra.mxu0 0.0
    %3937 = vmatprep.subr.mxu0 0.0
    %3938 = vmatpush1.msra.mxu0 0.0
    %3939 = vmatprep.subr.mxu0 0.0
    %3940 = vmatpush1.msra.mxu0 0.0
    %3941 = vmatprep.subr.mxu0 0.0
    %3942 = vmatpush1.msra.mxu0 0.0
    %3943 = vmatprep.subr.mxu0 0.0
    %3944 = vmatpush1.msra.mxu0 0.0
    %3945 = vmatprep.subr.mxu0 0.0
    %3946 = vmatpush1.msra.mxu0 0.0
    %3947 = vmatprep.subr.mxu0 0.0
    %3948 = vmatpush1.msra.mxu0 0.0
    %3949 = vmatprep.subr.mxu0 0.0
    %3950 = vmatpush1.msra.mxu0 0.0
    %3951 = vmatprep.subr.mxu0 0.0
    %3952 = vmatpush1.msra.mxu0 0.0
    %3953 = vmatprep.subr.mxu0 0.0
    %3954 = vmatpush1.msra.mxu0 0.0
    %3955 = vmatprep.subr.mxu0 0.0
    %3956 = vmatpush1.msra.mxu0 0.0
    %3957 = vmatprep.subr.mxu0 0.0
    %3958 = vmatpush1.msra.mxu0 0.0
    %3959 = vmatprep.subr.mxu0 0.0
    %3960 = vmatpush1.msra.mxu0 0.0
    %3961 = vmatprep.subr.mxu0 0.0
    %3962 = vmatpush1.msra.mxu0 0.0
    %3963 = vmatprep.subr.mxu0 0.0
    %3964 = vmatpush1.msra.mxu0 0.0
    %3965 = vmatprep.subr.mxu0 0.0
    %3966 = vmatpush1.msra.mxu0 0.0
    %3967 = vmatprep.subr.mxu0 0.0
    %3968 = vmatpush1.msra.mxu0 0.0
    %3969 = vmatprep.subr.mxu0 0.0
    %3970 = vmatpush1.msra.mxu0 0.0
    %3971 = vmatprep.subr.mxu0 0.0
    %3972 = vmatpush1.msra.mxu0 0.0
    %3973 = vmatprep.subr.mxu0 0.0
    %3974 = vmatpush1.msra.mxu0 0.0
    %3975 = vmatprep.subr.mxu0 0.0
    %3976 = vmatpush1.msra.mxu0 0.0
    %3977 = vmatprep.subr.mxu0 0.0
    %3978 = vmatpush1.msra.mxu0 0.0
    %3979 = vmatprep.subr.mxu0 0.0
    %3980 = vmatpush1.msra.mxu0 0.0
    %3981 = vmatprep.subr.mxu0 0.0
    %3982 = vmatpush1.msra.mxu0 0.0
    %3983 = vmatprep.subr.mxu0 0.0
    %3984 = vmatpush1.msra.mxu0 0.0
    %3985 = vmatprep.subr.mxu0 0.0
    %3986 = vmatpush1.msra.mxu0 0.0
    %3987 = vmatprep.mubr.f32.mxu0 0.0
    %3988 = vmatmul.mubr.f32.gmra.mrb[0].mxu0 %v3918
    %v3989 = vpop.f32.mrb[0].mxu0
    %v3990 = vadd.f32 %v3916, %v3989
    %v3991 = vpop.f32.mrb[0].mxu0
    %3992 = vmatprep.mubr.f32.mxu0 0.0
    %3993 = vmatmul.mubr.f32.gmra.mrb[0].mxu0 %v3921
    %v3994 = vpop.f32.mrb[0].mxu0
    %v3995 = vadd.f32 %v3916, %v3994
    %v3996 = vpop.f32.mrb[0].mxu0
    %3997 = vdwg.mxu0
    %v3998 = vmul.f32 %v3990, %v3990
    %v3999 = vmul.f32 %v3995, %v3995
    %v4000 = vmul.f32 %v3990, %v3998
    %v4001 = vmul.f32 %v3995, %v3999
    %v4002 = vmul.f32 %v4000, 0.044715
    %v4003 = vmul.f32 %v4001, 0.044715
    %v4004 = vadd.f32 %v3990, %v4002
    %v4005 = vadd.f32 %v3995, %v4003
    %v4006 = vmul.f32 %v4004, 0.7978846
    %v4007 = vmul.f32 %v4005, 0.7978846
    %v4008 = vtanh.pop %v4006
    %v4009 = vtanh.pop %v4007
    %v4010 = vadd.f32 %v4008, 1.0
    %v4011 = vadd.f32 %v4009, 1.0
    %v4012 = vmul.f32 %v4010, 0.5
    %v4013 = vmul.f32 %v4011, 0.5
    %v4014 = vmul.f32 %v3990, %v4012
    %v4015 = vmul.f32 %v3995, %v4013
    %v4016 = vlaneseq
    %v4017 = vshrl.u32 %v4016, 7
    %v4018 = vsub.s32 7, %v4017
    %v4019 = vrot.slane %v2081, %v4018
    %v4021 = vsel %vm1978, %v4014, 0
    %v4024 = vsel %vm1978, %v4015, 0
    %4026 = vmatprep.subr.mxu0 0.0
    %4027 = vmatpush1.msra.mxu0 %v2072
    %4028 = vmatprep.subr.mxu0 0.0
    %4029 = vmatpush1.msra.mxu0 %v2073
    %4030 = vmatprep.subr.mxu0 0.0
    %4031 = vmatpush1.msra.mxu0 %v2074
    %4032 = vmatprep.subr.mxu0 0.0
    %4033 = vmatpush1.msra.mxu0 %v2075
    %4034 = vmatprep.subr.mxu0 0.0
    %4035 = vmatpush1.msra.mxu0 %v2076
    %4036 = vmatprep.subr.mxu0 0.0
    %4037 = vmatpush1.msra.mxu0 %v2077
    %4038 = vmatprep.subr.mxu0 0.0
    %4039 = vmatpush1.msra.mxu0 %v2078
    %4040 = vmatprep.subr.mxu0 0.0
    %4041 = vmatpush1.msra.mxu0 %v2079
    %4042 = vmatprep.subr.mxu0 0.0
    %4043 = vmatpush1.msra.mxu0 0.0
    %4044 = vmatprep.subr.mxu0 0.0
    %4045 = vmatpush1.msra.mxu0 0.0
    %4046 = vmatprep.subr.mxu0 0.0
    %4047 = vmatpush1.msra.mxu0 0.0
    %4048 = vmatprep.subr.mxu0 0.0
    %4049 = vmatpush1.msra.mxu0 0.0
    %4050 = vmatprep.subr.mxu0 0.0
    %4051 = vmatpush1.msra.mxu0 0.0
    %4052 = vmatprep.subr.mxu0 0.0
    %4053 = vmatpush1.msra.mxu0 0.0
    %4054 = vmatprep.subr.mxu0 0.0
    %4055 = vmatpush1.msra.mxu0 0.0
    %4056 = vmatprep.subr.mxu0 0.0
    %4057 = vmatpush1.msra.mxu0 0.0
    %4058 = vmatprep.subr.mxu0 0.0
    %4059 = vmatpush1.msra.mxu0 0.0
    %4060 = vmatprep.subr.mxu0 0.0
    %4061 = vmatpush1.msra.mxu0 0.0
    %4062 = vmatprep.subr.mxu0 0.0
    %4063 = vmatpush1.msra.mxu0 0.0
    %4064 = vmatprep.subr.mxu0 0.0
    %4065 = vmatpush1.msra.mxu0 0.0
    %4066 = vmatprep.subr.mxu0 0.0
    %4067 = vmatpush1.msra.mxu0 0.0
    %4068 = vmatprep.subr.mxu0 0.0
    %4069 = vmatpush1.msra.mxu0 0.0
    %4070 = vmatprep.subr.mxu0 0.0
    %4071 = vmatpush1.msra.mxu0 0.0
    %4072 = vmatprep.subr.mxu0 0.0
    %4073 = vmatpush1.msra.mxu0 0.0
    %4074 = vmatprep.subr.mxu0 0.0
    %4075 = vmatpush1.msra.mxu0 0.0
    %4076 = vmatprep.subr.mxu0 0.0
    %4077 = vmatpush1.msra.mxu0 0.0
    %4078 = vmatprep.subr.mxu0 0.0
    %4079 = vmatpush1.msra.mxu0 0.0
    %4080 = vmatprep.subr.mxu0 0.0
    %4081 = vmatpush1.msra.mxu0 0.0
    %4082 = vmatprep.subr.mxu0 0.0
    %4083 = vmatpush1.msra.mxu0 0.0
    %4084 = vmatprep.subr.mxu0 0.0
    %4085 = vmatpush1.msra.mxu0 0.0
    %4086 = vmatprep.subr.mxu0 0.0
    %4087 = vmatpush1.msra.mxu0 0.0
    %4088 = vmatprep.subr.mxu0 0.0
    %4089 = vmatpush1.msra.mxu0 0.0
    %4090 = vmatprep.mubr.f32.mxu0 0.0
    %4091 = vmatmul.mubr.f32.gmra.mrb[0].mxu0 %v4021
    %v4092 = vpop.f32.mrb[0].mxu0
    %v4093 = vadd.f32 %v4019, %v4092
    %v4094 = vpop.f32.mrb[0].mxu0
    %4095 = vmatprep.mubr.f32.mxu0 0.0
    %4096 = vmatmul.mubr.f32.gmra.mrb[0].mxu0 %v4024
    %v4097 = vpop.f32.mrb[0].mxu0
    %v4098 = vadd.f32 %v4019, %v4097
    %v4099 = vpop.f32.mrb[0].mxu0
    %4100 = vdwg.mxu0
    %v4101 = vadd.f32 %v3873, %v4093
    %v4102 = vadd.f32 %v3874, %v4098
    %4103 = vst.msk [vmem:[#allocation2] sm:$0xff] %vm37, %v4101
    %4104 = vst.msk [vmem:[#allocation2 + $0x8] sm:$0xff] %vm37, %v4102
    // Predicated region
    $region18: #{encoder_forward.1} parent=1 // pred_check
      _
    $region19: #{encoder_forward.1} parent=1 // pred_check_branch
      %4106 = sbr.rel (0) target = $region21
    $region20: #{encoder_forward.1} parent=1 // pred_region
      %s4108 = ssub.s32 256, 256
      %4109 = vsyncadd [#allocation3], %s4108
      %s4110 = sshll.u32 [#allocation2], 4
      %s4111 = int_to_ptr.vmem [resolvable:$true] %s4110
      %4116 = dma.vmem_to_hbm [thread:$0]  %s4111, 256, %s4, [#allocation3], 128, 128, 8
    $region21: #{encoder_forward.1} parent=1 // pred_fallthru
      _
    // Predicated region
    $region22: #{encoder_forward.1} parent=1 // pred_check
      _
    $region23: #{encoder_forward.1} parent=1 // pred_check_branch
      %4118 = sbr.rel (0) target = $region25
    $region24: #{encoder_forward.1} parent=1 // pred_region
      %4119 = dma.done [#allocation3], 256
    $region25: #{encoder_forward.1} parent=1 // pred_fallthru
      _
    %4120 = vsyncpa [#allocation3], 1

</llo_original>
